<compile_context>
chip_gen: v5e
topology: v5e:2x2
jax: 0.10.0
libtpu: 0.0.40
codegen_flags: <defaults>
</compile_context>

<pallas_src>
import numpy as np
import jax
import jax.numpy as jnp
from jax.experimental import pallas as pl
from jax.experimental.pallas import tpu as pltpu

_HI = jax.lax.Precision.HIGHEST


# --------------------------- packing helpers ---------------------------------

class _Packer:
    """Packs [W ; bias] slabs row-wise into one 2-D f32 buffer (single DMA)."""

    def __init__(self, buf_id, width):
        self.buf_id = buf_id
        self.width = width
        self.slabs = []
        self.nrows = 0

    def add(self, w, b=None):
        w = np.asarray(w, np.float32)
        din, dout = w.shape
        assert dout <= self.width
        nrows = din + (1 if b is not None else 0)
        slab = np.zeros((nrows + (-nrows) % 8, self.width), np.float32)
        slab[:din, :dout] = w
        if b is not None:
            slab[din, :dout] = np.asarray(b, np.float32).reshape(-1)
        ent = (self.buf_id, self.nrows, din, dout, b is not None)
        self.slabs.append(slab)
        self.nrows += slab.shape[0]
        return ent

    def finalize(self):
        return jnp.asarray(np.concatenate(self.slabs, axis=0))


def _bd(w):          # (G, din, dout) grouped conv -> block-diag (G*din, G*dout)
    w = np.asarray(w, np.float32)
    G, din, dout = w.shape
    out = np.zeros((G * din, G * dout), np.float32)
    for g in range(G):
        out[g * din:(g + 1) * din, g * dout:(g + 1) * dout] = w[g]
    return out


def _fb(b):          # (G, 1, dout) -> flat channel-major bias (G*dout,)
    b = np.asarray(b, np.float32)
    return np.transpose(b, (1, 0, 2)).reshape(-1)


def _blkdiag2(a, b):
    ra, ca = a.shape
    rb, cb = b.shape
    out = np.zeros((ra + rb, ca + cb), np.float32)
    out[:ra, :ca] = a
    out[ra:, ca:] = b
    return out


def _embed(w, rows, cols, r0, c0):
    out = np.zeros((rows, cols), np.float32)
    out[r0:r0 + w.shape[0], c0:c0 + w.shape[1]] = np.asarray(w, np.float32)
    return out


# ----------------------- parameter init (per-group "raw") --------------------

def init_raw_params(key, cfg):
    assert cfg["dup"] >= 2 and cfg["depth"] >= 2
    G, bl, fl, inner, depth = cfg["dup"], cfg["bl"], cfg["fl"], cfg["inner"], cfg["depth"]
    NB = cfg["stacks"] * cfg["blocks_per_stack"]
    T = cfg["boosting_round"] * (2 ** cfg["outer_loop"] - 1)
    scale = 0.1
    counter = [0]

    def nk():
        counter[0] += 1
        return jax.random.fold_in(key, counter[0])

    def glin(din, dout):     # grouped 1x1 conv parameters
        return (scale * jax.random.normal(nk(), (G, din, dout), jnp.float32),
                scale * jax.random.normal(nk(), (G, 1, dout), jnp.float32))

    def lin(din, dout):      # plain Linear parameters
        return (scale * jax.random.normal(nk(), (din, dout), jnp.float32),
                scale * jax.random.normal(nk(), (1, dout), jnp.float32))

    trees = []
    for _ in range(T):
        ctrl = {"l0": glin(bl, inner),
                "mid": [glin(inner, inner) for _ in range(depth - 1)],
                "fin": glin(inner, bl)}
        blocks = [{"l0": glin(bl, inner),
                   "mid": [glin(inner, inner) for _ in range(depth - 1)],
                   "tb": glin(inner, bl),
                   "tf": glin(inner, fl)} for _ in range(NB)]
        trees.append({"ctrl": ctrl, "blocks": blocks})
    reuse = [{"l0": lin(fl, inner),
              "mid": [lin(inner, inner) for _ in range(depth - 1)],
              "fin": lin(inner, bl)} for _ in range(cfg["boosting_round"])]
    return {"trees": trees, "reuse": reuse}


# ------------------- pack raw params into the kernel layout ------------------

def pack_params(cfg, raw):
    G, bl, fl, inner, depth = cfg["dup"], cfg["bl"], cfg["fl"], cfg["inner"], cfg["depth"]
    NB = cfg["stacks"] * cfg["blocks_per_stack"]
    OL, R = cfg["outer_loop"], cfg["boosting_round"]
    assert OL == 2, "fused L/R-sibling kernel is implemented for outer_loop == 2"
    TPM = 2 ** OL - 1
    n_bc, n_fc = G * bl, G * fl
    sb = n_bc + n_fc                 # single-tree fused [bc | fc] state width
    sp = 2 * sb                      # L/R fused state width
    st = bl + fl                     # outer [x | y] state width
    h1 = G * inner                   # per-tree hidden width
    h2 = 2 * h1                      # fused L/R hidden width
    nxs = 1 + 4 * (2 ** (OL - 1) - 1)    # number of xs entries in the multitree mean
    nys = 2 ** OL - 1                    # number of ys entries

    pka = _Packer(0, h2)                     # wide buffer (dout == h2)
    pkb = _Packer(1, max(h1, sp))            # narrow buffer (dout <= h1)

    # --- constant matrices (hoisted host-side, packed with the weights) ---
    Txr_base = np.zeros((st, sb), np.float32)        # x -> x.repeat(1,dup), fc cols 0
    for k in range(n_bc):
        Txr_base[k % bl, k] = 1.0
    Txr_pair = np.zeros((st, sp), np.float32)        # bm0 (stored as -bm0/nxs) -> xr for L and R
    for side in range(2):
        for k in range(n_bc):
            Txr_pair[k % bl, side * sb + k] = -float(nxs)

    def ppair(n):                                    # per-dup-group softmax sum matrix
        i = np.arange(n)
        return (i[:, None] // G == i[None, :] // G).astype(np.float32)

    P1, P2 = ppair(sb), ppair(sp)

    MF = np.zeros((sb, st), np.float32)              # [bc|fc] -> [-bm/nxs | +fm/nys]
    for k in range(n_bc):
        MF[k, k // G] = -1.0 / (G * NB * nxs)
    for k in range(n_fc):
        MF[n_bc + k, bl + k // G] = 1.0 / (G * NB * nys)

    PE = np.zeros((sp, st), np.float32)              # Sel0+Sel1 residual projection, signed/scaled
    for side in range(2):
        for k in range(n_bc):
            if k % G < 2:
                PE[side * sb + k, k // G] = -1.0 / nxs
    PF = np.zeros((sp, st), np.float32)              # fmL+fmR, signed/scaled
    for side in range(2):
        for k in range(n_fc):
            PF[side * sb + n_bc + k, bl + k // G] = 1.0 / (G * NB * nys)

    consts = dict(Txr_base=pkb.add(Txr_base), Txr_pair=pkb.add(Txr_pair),
                  P1=pkb.add(P1), P2=pkb.add(P2),
                  MF=pkb.add(MF), PE=pkb.add(PE), PFmE=pkb.add(PF - PE))

    # x (outer state) -> flat repeated input of the grouped layer0
    T0 = np.zeros((st, n_bc), np.float32)
    for k in range(n_bc):
        T0[k % bl, k] = 1.0

    rounds = []
    for r in range(R):
        t0 = r * TPM
        tree0 = raw["trees"][t0]
        treeL = raw["trees"][t0 + 1]
        treeR = raw["trees"][t0 + 2]

        # ---------------- base tree (reads the x half of the outer state) ----
        c = tree0["ctrl"]
        base_ctrl = (
            pkb.add(T0 @ _bd(c["l0"][0]), _fb(c["l0"][1])),
            [pkb.add(_bd(w), _fb(b)) for (w, b) in c["mid"]],
            pkb.add(_embed(_bd(c["fin"][0]), h1, sb, 0, 0),
                    _embed(_fb(c["fin"][1])[None, :], 1, sb, 0, 0)[0]),
        )
        base_blocks = []
        for blk in tree0["blocks"]:
            hw = np.concatenate([-_bd(blk["tb"][0]), _bd(blk["tf"][0])], axis=1)
            hb = np.concatenate([-_fb(blk["tb"][1]), _fb(blk["tf"][1])])
            base_blocks.append((
                pkb.add(_embed(_bd(blk["l0"][0]), sb, h1, 0, 0), _fb(blk["l0"][1])),
                [pkb.add(_bd(w), _fb(b)) for (w, b) in blk["mid"]],
                pkb.add(hw, hb)))

        # ---------------- fused left/right sibling trees ---------------------
        cL, cR = treeL["ctrl"], treeR["ctrl"]
        pw0 = np.concatenate([-float(nxs) * (T0 @ _bd(cL["l0"][0])),
                              -float(nxs) * (T0 @ _bd(cR["l0"][0]))], axis=1)
        pb0 = np.concatenate([_fb(cL["l0"][1]), _fb(cR["l0"][1])])
        pfw = np.zeros((h2, sp), np.float32)
        pfw[:h1, :n_bc] = _bd(cL["fin"][0])
        pfw[h1:, sb:sb + n_bc] = _bd(cR["fin"][0])
        pfb = np.zeros((sp,), np.float32)
        pfb[:n_bc] = _fb(cL["fin"][1])
        pfb[sb:sb + n_bc] = _fb(cR["fin"][1])
        pair_ctrl = (
            pka.add(pw0, pb0),
            [pka.add(_blkdiag2(_bd(wL), _bd(wR)), np.concatenate([_fb(bL), _fb(bR)]))
             for (wL, bL), (wR, bR) in zip(cL["mid"], cR["mid"])],
            pkb.add(pfw, pfb),
        )
        pair_blocks = []
        for blkL, blkR in zip(treeL["blocks"], treeR["blocks"]):
            l0w = np.zeros((sp, h2), np.float32)
            l0w[:n_bc, :h1] = _bd(blkL["l0"][0])
            l0w[sb:sb + n_bc, h1:] = _bd(blkR["l0"][0])
            l0b = np.concatenate([_fb(blkL["l0"][1]), _fb(blkR["l0"][1])])
            hw = np.zeros((h2, sp), np.float32)
            hw[:h1, :n_bc] = -_bd(blkL["tb"][0])
            hw[:h1, n_bc:sb] = _bd(blkL["tf"][0])
            hw[h1:, sb:sb + n_bc] = -_bd(blkR["tb"][0])
            hw[h1:, sb + n_bc:] = _bd(blkR["tf"][0])
            hb = np.concatenate([-_fb(blkL["tb"][1]), _fb(blkL["tf"][1]),
                                 -_fb(blkR["tb"][1]), _fb(blkR["tf"][1])])
            pair_blocks.append((
                pka.add(l0w, l0b),
                [pka.add(_blkdiag2(_bd(wL), _bd(wR)), np.concatenate([_fb(bL), _fb(bR)]))
                 for (wL, bL), (wR, bR) in zip(blkL["mid"], blkR["mid"])],
                pkb.add(hw, hb)))

        # -------- reuse MLP (reads y half of state, writes -out into x half) --
        m = raw["reuse"][r]
        rfb = np.zeros((st,), np.float32)
        rfb[:bl] = -np.asarray(m["fin"][1], np.float32).reshape(-1)
        reuse = (
            pkb.add(_embed(m["l0"][0], st, inner, bl, 0),
                    np.asarray(m["l0"][1], np.float32).reshape(-1)),
            [pkb.add(np.asarray(w, np.float32), np.asarray(b, np.float32).reshape(-1))
             for (w, b) in m["mid"]],
            pkb.add(_embed(-np.asarray(m["fin"][0], np.float32), inner, st, 0, 0), rfb),
        )

        rounds.append(dict(base=dict(ctrl=base_ctrl, blocks=base_blocks),
                           pair=dict(ctrl=pair_ctrl, blocks=pair_blocks),
                           reuse=reuse))

    ents = {"consts": consts, "rounds": rounds}
    return (pka.finalize(), pkb.finalize()), ents


# ----------------------- fused whole-model Pallas kernel ---------------------

def build_forward(cfg, batch, ents):
    bl, fl = cfg["bl"], cfg["fl"]
    B = batch
    f32 = jnp.float32

    def kernel(x_ref, wa_ref, wb_ref, x_out, y_out):
        refs = (wa_ref, wb_ref)

        def getw(ent):
            bid, r0, din, dout, has_b = ent
            ref = refs[bid]
            w = ref[r0:r0 + din, :dout]
            b = ref[r0 + din:r0 + din + 1, :dout] if has_b else None
            return w, b

        def dot(a, w):
            return jnp.dot(a, w, preferred_element_type=f32)

        def dense(h, ent, relu=False):
            w, b = getw(ent)
            y = dot(h, w)
            if b is not None:
                y = y + b
            return jnp.maximum(y, 0.0) if relu else y

        def mlp(h, l0, mids):
            h = dense(h, l0, relu=True)
            for e in mids:
                h = dense(h, e, relu=True)
            return h

        def tri(inp, spec, xr_ent, p_ent):
            # one fused controlled N-Beats tree (single tree or L/R sibling pair)
            c_l0, c_mid, c_fin = spec["ctrl"]
            xr = dot(inp, getw(xr_ent)[0])                # x repeated over dup (fc cols = 0)
            f = dense(mlp(inp, c_l0, c_mid), c_fin)       # controller logits
            # row-global max is a uniform per-group shift -> per-group softmax unchanged
            f = f - jnp.max(f, axis=-1, keepdims=True)
            e = jnp.exp(f)
            w = e * pl.reciprocal(dot(e, getw(p_ent)[0]), approx=True)
            s0 = xr * w                                   # fused [bc0 | fc=0] state
            s = s0
            for b_l0, b_mid, b_hd in spec["blocks"]:
                h = mlp(s, b_l0, b_mid)
                s = s + dense(h, b_hd)                    # head = [-theta_b | +theta_f]
            return s0, s

        state = jnp.concatenate(
            [x_ref[...], jnp.zeros((B, fl), f32)], axis=-1)   # fused [x | y]

        C = ents["consts"]
        for rnd in ents["rounds"]:
            # base tree of the multi-tree (reads the x half of `state`)
            _, s_b = tri(state, rnd["base"], C["Txr_base"], C["P1"])
            base_out = dot(s_b, getw(C["MF"])[0])             # [-bm0/5 | +fm0/3]
            # fused left/right sibling trees, both fed with bm0
            s0_p, s_p = tri(base_out, rnd["pair"], C["Txr_pair"], C["P2"])
            pair_out = (dot(s0_p, getw(C["PE"])[0]) +
                        dot(s_p, getw(C["PFmE"])[0]))         # [-sel_sum/5 | +(fmL+fmR)/3]
            state = state + base_out + pair_out
            # boosting reuse MLP on the accumulated forecast (y half of state)
            r_l0, r_mid, r_fin = rnd["reuse"]
            state = state + dense(mlp(state, r_l0, r_mid), r_fin)

        x_out[...] = state[:, :bl]
        y_out[...] = state[:, bl:bl + fl]

    return pl.pallas_call(
        kernel,
        out_shape=(jax.ShapeDtypeStruct((B, bl), f32),
                   jax.ShapeDtypeStruct((B, fl), f32)),
        compiler_params=pltpu.CompilerParams(vmem_limit_bytes=32 * 1024 * 1024),
    )


# ------------- pure-JAX reference (mirrors the PyTorch module) ---------------

def _ref_glin(x, w, b, relu):
    y = jnp.einsum("gbi,gio->gbo", x, w, precision=_HI) + b
    return jnp.maximum(y, 0.0) if relu else y


def _ref_dense(x, w, b, relu):
    y = jnp.dot(x, w, precision=_HI) + b
    return jnp.maximum(y, 0.0) if relu else y


def _ref_controler(cfg, ctrl, x):
    G, bl = cfg["dup"], cfg["bl"]
    B = x.shape[0]
    h = jnp.broadcast_to(x[None], (G, B, bl))
    h = _ref_glin(h, *ctrl["l0"], relu=True)
    for wb in ctrl["mid"]:
        h = _ref_glin(h, *wb, relu=True)
    f = _ref_glin(h, *ctrl["fin"], relu=False)
    flat = jnp.transpose(f, (1, 0, 2)).reshape(B, G * bl)
    return jax.nn.softmax(flat.reshape(B, bl, G), axis=2)


def _ref_tri(cfg, tree, x):
    G, bl, fl = cfg["dup"], cfg["bl"], cfg["fl"]
    NB = cfg["stacks"] * cfg["blocks_per_stack"]
    B = x.shape[0]
    w = _ref_controler(cfg, tree["ctrl"], x)
    bc0_flat = jnp.tile(x, (1, G)) * w.reshape(B, bl * G)
    bc = bc0_flat.reshape(B, G, bl).transpose(1, 0, 2)
    fc = jnp.zeros((G, B, fl), jnp.float32)
    for blk in tree["blocks"]:
        h = _ref_glin(bc, *blk["l0"], relu=True)
        for wb in blk["mid"]:
            h = _ref_glin(h, *wb, relu=True)
        bc = bc - _ref_glin(h, *blk["tb"], relu=False)
        fc = fc + _ref_glin(h, *blk["tf"], relu=False)
    bc_flat = bc.transpose(1, 0, 2).reshape(B, G * bl)
    fc_flat = fc.transpose(1, 0, 2).reshape(B, G * fl)
    bm = jnp.mean(bc_flat.reshape(B, bl, G), axis=2) / NB
    fm = jnp.mean(fc_flat.reshape(B, fl, G), axis=2) / NB
    return bm, fm, (bc0_flat - bc_flat).reshape(B, bl, G)


def _ref_multitree(cfg, trees, x):
    bm0, fm0, _ = _ref_tri(cfg, trees[0], x)
    xs, ys = [bm0], [fm0]
    for i in range(1, cfg["outer_loop"]):
        start, end = 2 ** (i - 1), 2 ** i
        for j in range(start, end):
            _, fmL, rL = _ref_tri(cfg, trees[(j - start) * 2 + end - 1], xs[j - 1])
            _, fmR, rR = _ref_tri(cfg, trees[(j - start) * 2 + end], xs[j - 1])
            xs += [rL[:, :, 0], rL[:, :, 1], rR[:, :, 0], rR[:, :, 1]]
            ys += [fmL, fmR]
    return sum(xs) / len(xs), sum(ys) / len(ys)


def ref_model(cfg, raw, x):
    TPM = 2 ** cfg["outer_loop"] - 1
    y = None
    for r in range(cfg["boosting_round"]):
        xo, yt = _ref_multitree(cfg, raw["trees"][r * TPM:(r + 1) * TPM], x)
        y = yt if r == 0 else y + yt
        m = raw["reuse"][r]
        h = _ref_dense(y, *m["l0"], relu=True)
        for wb in m["mid"]:
            h = _ref_dense(h, *wb, relu=True)
        x = x - xo - _ref_dense(h, *m["fin"], relu=False)
    return x, y


# ----------------------------------- main ------------------------------------

if __name__ == "__main__":
    cfg = dict(
        bl=10,            # backcast_length
        fl=5,             # forecast_length
        inner=32,         # inner_size (small synthetic)
        dup=2,            # duplicate (>=2 required by the reference forward)
        depth=2,
        stacks=2,
        blocks_per_stack=2,
        outer_loop=2,
        boosting_round=2,
    )
    key = jax.random.PRNGKey(0)
    kp, kx = jax.random.split(key)
    raw = init_raw_params(kp, cfg)
    (buf_a, buf_b), ents = pack_params(cfg, raw)

    B = 8                 # full f32 sublane -> unmasked vregs/stores
    x = jax.random.normal(kx, (B, cfg["bl"]), jnp.float32)

    fwd = build_forward(cfg, B, ents)
    run = jax.jit(lambda xx, wa, wb: fwd(xx, wa, wb))
    x_out, y_out = run(x, buf_a, buf_b)
    jax.block_until_ready((x_out, y_out))

    # pure-JAX reference in the per-group layout (independent derivation)
    x_ref, y_ref = jax.jit(lambda p, xx: ref_model(cfg, p, xx))(raw, x)
    jax.block_until_ready((x_ref, y_ref))

    assert x_out.shape == (B, cfg["bl"]) and y_out.shape == (B, cfg["fl"])
    assert bool(jnp.all(jnp.isfinite(x_out))) and bool(jnp.all(jnp.isfinite(y_out)))
    assert bool(jnp.allclose(x_out, x_ref, atol=2e-2, rtol=2e-2)), \
        f"x mismatch, max diff {float(jnp.max(jnp.abs(x_out - x_ref)))}"
    assert bool(jnp.allclose(y_out, y_ref, atol=2e-2, rtol=2e-2)), \
        f"y mismatch, max diff {float(jnp.max(jnp.abs(y_out - y_ref)))}"
    print("KERNEL_OK")
</pallas_src>

<mosaic_0001>
module attributes {stable_mosaic.version = 11 : i64} {
  func.func @kernel(%arg0: memref<8x10xf32, #tpu.memory_space<vmem>>, %arg1: memref<1904x128xf32, #tpu.memory_space<vmem>>, %arg2: memref<3568x64xf32, #tpu.memory_space<vmem>>, %arg3: memref<8x10xf32, #tpu.memory_space<vmem>>, %arg4: memref<8x5xf32, #tpu.memory_space<vmem>>) attributes {dimension_semantics = [], scalar_prefetch = 0 : i64, scratch_operands = 0 : i64, tpu.core_type = #tpu.core_type<tc>} {
    %c0 = arith.constant 0 : index
    %c0_0 = arith.constant 0 : index
    %0 = vector.load %arg0[%c0, %c0_0] : memref<8x10xf32, #tpu.memory_space<vmem>>, vector<8x10xf32>
    %cst = arith.constant 0.000000e+00 : f32
    %1 = vector.broadcast %cst : f32 to vector<8x5xf32>
    %2 = tpu.concatenate %0, %1 in 1 : vector<8x10xf32>, vector<8x5xf32> -> vector<8x15xf32>
    %c0_1 = arith.constant 0 : index
    %c0_2 = arith.constant 0 : index
    %3 = vector.load %arg2[%c0_1, %c0_2] : memref<3568x64xf32, #tpu.memory_space<vmem>>, vector<15x30xf32>
    %cst_3 = arith.constant dense<0.000000e+00> : vector<8x30xf32>
    %4 = tpu.matmul %2, %3, %cst_3 {dimension_numbers = #tpu.dot_dimension_numbers<[1], [0], [0], [1], [0, 0, 1, 1], [], []>} : vector<8x15xf32>, vector<15x30xf32>, vector<8x30xf32> -> vector<8x30xf32>
    %c288 = arith.constant 288 : index
    %c0_4 = arith.constant 0 : index
    %5 = vector.load %arg2[%c288, %c0_4] : memref<3568x64xf32, #tpu.memory_space<vmem>>, vector<15x64xf32>
    %c303 = arith.constant 303 : index
    %c0_5 = arith.constant 0 : index
    %6 = vector.load %arg2[%c303, %c0_5] : memref<3568x64xf32, #tpu.memory_space<vmem>>, vector<1x64xf32>
    %cst_6 = arith.constant dense<0.000000e+00> : vector<8x64xf32>
    %7 = tpu.matmul %2, %5, %cst_6 {dimension_numbers = #tpu.dot_dimension_numbers<[1], [0], [0], [1], [0, 0, 1, 1], [], []>} : vector<8x15xf32>, vector<15x64xf32>, vector<8x64xf32> -> vector<8x64xf32>
    %8 = vector.broadcast %6 : vector<1x64xf32> to vector<8x64xf32>
    %9 = arith.addf %7, %8 : vector<8x64xf32>
    %cst_7 = arith.constant 0.000000e+00 : f32
    %10 = vector.broadcast %cst_7 : f32 to vector<8x64xf32>
    %11 = arith.maximumf %9, %10 : vector<8x64xf32>
    %c304 = arith.constant 304 : index
    %c0_8 = arith.constant 0 : index
    %12 = vector.load %arg2[%c304, %c0_8] : memref<3568x64xf32, #tpu.memory_space<vmem>>, vector<64x64xf32>
    %c368 = arith.constant 368 : index
    %c0_9 = arith.constant 0 : index
    %13 = vector.load %arg2[%c368, %c0_9] : memref<3568x64xf32, #tpu.memory_space<vmem>>, vector<1x64xf32>
    %cst_10 = arith.constant dense<0.000000e+00> : vector<8x64xf32>
    %14 = tpu.matmul %11, %12, %cst_10 {dimension_numbers = #tpu.dot_dimension_numbers<[1], [0], [0], [1], [0, 0, 1, 1], [], []>} : vector<8x64xf32>, vector<64x64xf32>, vector<8x64xf32> -> vector<8x64xf32>
    %15 = vector.broadcast %13 : vector<1x64xf32> to vector<8x64xf32>
    %16 = arith.addf %14, %15 : vector<8x64xf32>
    %cst_11 = arith.constant 0.000000e+00 : f32
    %17 = vector.broadcast %cst_11 : f32 to vector<8x64xf32>
    %18 = arith.maximumf %16, %17 : vector<8x64xf32>
    %c376 = arith.constant 376 : index
    %c0_12 = arith.constant 0 : index
    %19 = vector.load %arg2[%c376, %c0_12] : memref<3568x64xf32, #tpu.memory_space<vmem>>, vector<64x30xf32>
    %c440 = arith.constant 440 : index
    %c0_13 = arith.constant 0 : index
    %20 = vector.load %arg2[%c440, %c0_13] : memref<3568x64xf32, #tpu.memory_space<vmem>>, vector<1x30xf32>
    %cst_14 = arith.constant dense<0.000000e+00> : vector<8x30xf32>
    %21 = tpu.matmul %18, %19, %cst_14 {dimension_numbers = #tpu.dot_dimension_numbers<[1], [0], [0], [1], [0, 0, 1, 1], [], []>} : vector<8x64xf32>, vector<64x30xf32>, vector<8x30xf32> -> vector<8x30xf32>
    %22 = vector.broadcast %20 : vector<1x30xf32> to vector<8x30xf32>
    %23 = arith.addf %21, %22 : vector<8x30xf32>
    %cst_15 = arith.constant dense<0xFF800000> : vector<8xf32>
    %24 = vector.multi_reduction <maximumf>, %23, %cst_15 [1] : vector<8x30xf32> to vector<8xf32>
    %25 = vector.shape_cast %24 : vector<8xf32> to vector<8x1xf32>
    %26 = vector.broadcast %25 : vector<8x1xf32> to vector<8x30xf32>
    %27 = arith.subf %23, %26 : vector<8x30xf32>
    %28 = math.exp %27 : vector<8x30xf32>
    %c32 = arith.constant 32 : index
    %c0_16 = arith.constant 0 : index
    %29 = vector.load %arg2[%c32, %c0_16] : memref<3568x64xf32, #tpu.memory_space<vmem>>, vector<30x30xf32>
    %cst_17 = arith.constant dense<0.000000e+00> : vector<8x30xf32>
    %30 = tpu.matmul %28, %29, %cst_17 {dimension_numbers = #tpu.dot_dimension_numbers<[1], [0], [0], [1], [0, 0, 1, 1], [], []>} : vector<8x30xf32>, vector<30x30xf32>, vector<8x30xf32> -> vector<8x30xf32>
    %31 = tpu.reciprocal %30 {approx = true} : vector<8x30xf32> -> vector<8x30xf32>
    %32 = arith.mulf %28, %31 : vector<8x30xf32>
    %33 = arith.mulf %4, %32 : vector<8x30xf32>
    %c448 = arith.constant 448 : index
    %c0_18 = arith.constant 0 : index
    %34 = vector.load %arg2[%c448, %c0_18] : memref<3568x64xf32, #tpu.memory_space<vmem>>, vector<30x64xf32>
    %c478 = arith.constant 478 : index
    %c0_19 = arith.constant 0 : index
    %35 = vector.load %arg2[%c478, %c0_19] : memref<3568x64xf32, #tpu.memory_space<vmem>>, vector<1x64xf32>
    %cst_20 = arith.constant dense<0.000000e+00> : vector<8x64xf32>
    %36 = tpu.matmul %33, %34, %cst_20 {dimension_numbers = #tpu.dot_dimension_numbers<[1], [0], [0], [1], [0, 0, 1, 1], [], []>} : vector<8x30xf32>, vector<30x64xf32>, vector<8x64xf32> -> vector<8x64xf32>
    %37 = vector.broadcast %35 : vector<1x64xf32> to vector<8x64xf32>
    %38 = arith.addf %36, %37 : vector<8x64xf32>
    %cst_21 = arith.constant 0.000000e+00 : f32
    %39 = vector.broadcast %cst_21 : f32 to vector<8x64xf32>
    %40 = arith.maximumf %38, %39 : vector<8x64xf32>
    %c480 = arith.constant 480 : index
    %c0_22 = arith.constant 0 : index
    %41 = vector.load %arg2[%c480, %c0_22] : memref<3568x64xf32, #tpu.memory_space<vmem>>, vector<64x64xf32>
    %c544 = arith.constant 544 : index
    %c0_23 = arith.constant 0 : index
    %42 = vector.load %arg2[%c544, %c0_23] : memref<3568x64xf32, #tpu.memory_space<vmem>>, vector<1x64xf32>
    %cst_24 = arith.constant dense<0.000000e+00> : vector<8x64xf32>
    %43 = tpu.matmul %40, %41, %cst_24 {dimension_numbers = #tpu.dot_dimension_numbers<[1], [0], [0], [1], [0, 0, 1, 1], [], []>} : vector<8x64xf32>, vector<64x64xf32>, vector<8x64xf32> -> vector<8x64xf32>
    %44 = vector.broadcast %42 : vector<1x64xf32> to vector<8x64xf32>
    %45 = arith.addf %43, %44 : vector<8x64xf32>
    %cst_25 = arith.constant 0.000000e+00 : f32
    %46 = vector.broadcast %cst_25 : f32 to vector<8x64xf32>
    %47 = arith.maximumf %45, %46 : vector<8x64xf32>
    %c552 = arith.constant 552 : index
    %c0_26 = arith.constant 0 : index
    %48 = vector.load %arg2[%c552, %c0_26] : memref<3568x64xf32, #tpu.memory_space<vmem>>, vector<64x30xf32>
    %c616 = arith.constant 616 : index
    %c0_27 = arith.constant 0 : index
    %49 = vector.load %arg2[%c616, %c0_27] : memref<3568x64xf32, #tpu.memory_space<vmem>>, vector<1x30xf32>
    %cst_28 = arith.constant dense<0.000000e+00> : vector<8x30xf32>
    %50 = tpu.matmul %47, %48, %cst_28 {dimension_numbers = #tpu.dot_dimension_numbers<[1], [0], [0], [1], [0, 0, 1, 1], [], []>} : vector<8x64xf32>, vector<64x30xf32>, vector<8x30xf32> -> vector<8x30xf32>
    %51 = vector.broadcast %49 : vector<1x30xf32> to vector<8x30xf32>
    %52 = arith.addf %50, %51 : vector<8x30xf32>
    %53 = arith.addf %33, %52 : vector<8x30xf32>
    %c624 = arith.constant 624 : index
    %c0_29 = arith.constant 0 : index
    %54 = vector.load %arg2[%c624, %c0_29] : memref<3568x64xf32, #tpu.memory_space<vmem>>, vector<30x64xf32>
    %c654 = arith.constant 654 : index
    %c0_30 = arith.constant 0 : index
    %55 = vector.load %arg2[%c654, %c0_30] : memref<3568x64xf32, #tpu.memory_space<vmem>>, vector<1x64xf32>
    %cst_31 = arith.constant dense<0.000000e+00> : vector<8x64xf32>
    %56 = tpu.matmul %53, %54, %cst_31 {dimension_numbers = #tpu.dot_dimension_numbers<[1], [0], [0], [1], [0, 0, 1, 1], [], []>} : vector<8x30xf32>, vector<30x64xf32>, vector<8x64xf32> -> vector<8x64xf32>
    %57 = vector.broadcast %55 : vector<1x64xf32> to vector<8x64xf32>
    %58 = arith.addf %56, %57 : vector<8x64xf32>
    %cst_32 = arith.constant 0.000000e+00 : f32
    %59 = vector.broadcast %cst_32 : f32 to vector<8x64xf32>
    %60 = arith.maximumf %58, %59 : vector<8x64xf32>
    %c656 = arith.constant 656 : index
    %c0_33 = arith.constant 0 : index
    %61 = vector.load %arg2[%c656, %c0_33] : memref<3568x64xf32, #tpu.memory_space<vmem>>, vector<64x64xf32>
    %c720 = arith.constant 720 : index
    %c0_34 = arith.constant 0 : index
    %62 = vector.load %arg2[%c720, %c0_34] : memref<3568x64xf32, #tpu.memory_space<vmem>>, vector<1x64xf32>
    %cst_35 = arith.constant dense<0.000000e+00> : vector<8x64xf32>
    %63 = tpu.matmul %60, %61, %cst_35 {dimension_numbers = #tpu.dot_dimension_numbers<[1], [0], [0], [1], [0, 0, 1, 1], [], []>} : vector<8x64xf32>, vector<64x64xf32>, vector<8x64xf32> -> vector<8x64xf32>
    %64 = vector.broadcast %62 : vector<1x64xf32> to vector<8x64xf32>
    %65 = arith.addf %63, %64 : vector<8x64xf32>
    %cst_36 = arith.constant 0.000000e+00 : f32
    %66 = vector.broadcast %cst_36 : f32 to vector<8x64xf32>
    %67 = arith.maximumf %65, %66 : vector<8x64xf32>
    %c728 = arith.constant 728 : index
    %c0_37 = arith.constant 0 : index
    %68 = vector.load %arg2[%c728, %c0_37] : memref<3568x64xf32, #tpu.memory_space<vmem>>, vector<64x30xf32>
    %c792 = arith.constant 792 : index
    %c0_38 = arith.constant 0 : index
    %69 = vector.load %arg2[%c792, %c0_38] : memref<3568x64xf32, #tpu.memory_space<vmem>>, vector<1x30xf32>
    %cst_39 = arith.constant dense<0.000000e+00> : vector<8x30xf32>
    %70 = tpu.matmul %67, %68, %cst_39 {dimension_numbers = #tpu.dot_dimension_numbers<[1], [0], [0], [1], [0, 0, 1, 1], [], []>} : vector<8x64xf32>, vector<64x30xf32>, vector<8x30xf32> -> vector<8x30xf32>
    %71 = vector.broadcast %69 : vector<1x30xf32> to vector<8x30xf32>
    %72 = arith.addf %70, %71 : vector<8x30xf32>
    %73 = arith.addf %53, %72 : vector<8x30xf32>
    %c800 = arith.constant 800 : index
    %c0_40 = arith.constant 0 : index
    %74 = vector.load %arg2[%c800, %c0_40] : memref<3568x64xf32, #tpu.memory_space<vmem>>, vector<30x64xf32>
    %c830 = arith.constant 830 : index
    %c0_41 = arith.constant 0 : index
    %75 = vector.load %arg2[%c830, %c0_41] : memref<3568x64xf32, #tpu.memory_space<vmem>>, vector<1x64xf32>
    %cst_42 = arith.constant dense<0.000000e+00> : vector<8x64xf32>
    %76 = tpu.matmul %73, %74, %cst_42 {dimension_numbers = #tpu.dot_dimension_numbers<[1], [0], [0], [1], [0, 0, 1, 1], [], []>} : vector<8x30xf32>, vector<30x64xf32>, vector<8x64xf32> -> vector<8x64xf32>
    %77 = vector.broadcast %75 : vector<1x64xf32> to vector<8x64xf32>
    %78 = arith.addf %76, %77 : vector<8x64xf32>
    %cst_43 = arith.constant 0.000000e+00 : f32
    %79 = vector.broadcast %cst_43 : f32 to vector<8x64xf32>
    %80 = arith.maximumf %78, %79 : vector<8x64xf32>
    %c832 = arith.constant 832 : index
    %c0_44 = arith.constant 0 : index
    %81 = vector.load %arg2[%c832, %c0_44] : memref<3568x64xf32, #tpu.memory_space<vmem>>, vector<64x64xf32>
    %c896 = arith.constant 896 : index
    %c0_45 = arith.constant 0 : index
    %82 = vector.load %arg2[%c896, %c0_45] : memref<3568x64xf32, #tpu.memory_space<vmem>>, vector<1x64xf32>
    %cst_46 = arith.constant dense<0.000000e+00> : vector<8x64xf32>
    %83 = tpu.matmul %80, %81, %cst_46 {dimension_numbers = #tpu.dot_dimension_numbers<[1], [0], [0], [1], [0, 0, 1, 1], [], []>} : vector<8x64xf32>, vector<64x64xf32>, vector<8x64xf32> -> vector<8x64xf32>
    %84 = vector.broadcast %82 : vector<1x64xf32> to vector<8x64xf32>
    %85 = arith.addf %83, %84 : vector<8x64xf32>
    %cst_47 = arith.constant 0.000000e+00 : f32
    %86 = vector.broadcast %cst_47 : f32 to vector<8x64xf32>
    %87 = arith.maximumf %85, %86 : vector<8x64xf32>
    %c904 = arith.constant 904 : index
    %c0_48 = arith.constant 0 : index
    %88 = vector.load %arg2[%c904, %c0_48] : memref<3568x64xf32, #tpu.memory_space<vmem>>, vector<64x30xf32>
    %c968 = arith.constant 968 : index
    %c0_49 = arith.constant 0 : index
    %89 = vector.load %arg2[%c968, %c0_49] : memref<3568x64xf32, #tpu.memory_space<vmem>>, vector<1x30xf32>
    %cst_50 = arith.constant dense<0.000000e+00> : vector<8x30xf32>
    %90 = tpu.matmul %87, %88, %cst_50 {dimension_numbers = #tpu.dot_dimension_numbers<[1], [0], [0], [1], [0, 0, 1, 1], [], []>} : vector<8x64xf32>, vector<64x30xf32>, vector<8x30xf32> -> vector<8x30xf32>
    %91 = vector.broadcast %89 : vector<1x30xf32> to vector<8x30xf32>
    %92 = arith.addf %90, %91 : vector<8x30xf32>
    %93 = arith.addf %73, %92 : vector<8x30xf32>
    %c976 = arith.constant 976 : index
    %c0_51 = arith.constant 0 : index
    %94 = vector.load %arg2[%c976, %c0_51] : memref<3568x64xf32, #tpu.memory_space<vmem>>, vector<30x64xf32>
    %c1006 = arith.constant 1006 : index
    %c0_52 = arith.constant 0 : index
    %95 = vector.load %arg2[%c1006, %c0_52] : memref<3568x64xf32, #tpu.memory_space<vmem>>, vector<1x64xf32>
    %cst_53 = arith.constant dense<0.000000e+00> : vector<8x64xf32>
    %96 = tpu.matmul %93, %94, %cst_53 {dimension_numbers = #tpu.dot_dimension_numbers<[1], [0], [0], [1], [0, 0, 1, 1], [], []>} : vector<8x30xf32>, vector<30x64xf32>, vector<8x64xf32> -> vector<8x64xf32>
    %97 = vector.broadcast %95 : vector<1x64xf32> to vector<8x64xf32>
    %98 = arith.addf %96, %97 : vector<8x64xf32>
    %cst_54 = arith.constant 0.000000e+00 : f32
    %99 = vector.broadcast %cst_54 : f32 to vector<8x64xf32>
    %100 = arith.maximumf %98, %99 : vector<8x64xf32>
    %c1008 = arith.constant 1008 : index
    %c0_55 = arith.constant 0 : index
    %101 = vector.load %arg2[%c1008, %c0_55] : memref<3568x64xf32, #tpu.memory_space<vmem>>, vector<64x64xf32>
    %c1072 = arith.constant 1072 : index
    %c0_56 = arith.constant 0 : index
    %102 = vector.load %arg2[%c1072, %c0_56] : memref<3568x64xf32, #tpu.memory_space<vmem>>, vector<1x64xf32>
    %cst_57 = arith.constant dense<0.000000e+00> : vector<8x64xf32>
    %103 = tpu.matmul %100, %101, %cst_57 {dimension_numbers = #tpu.dot_dimension_numbers<[1], [0], [0], [1], [0, 0, 1, 1], [], []>} : vector<8x64xf32>, vector<64x64xf32>, vector<8x64xf32> -> vector<8x64xf32>
    %104 = vector.broadcast %102 : vector<1x64xf32> to vector<8x64xf32>
    %105 = arith.addf %103, %104 : vector<8x64xf32>
    %cst_58 = arith.constant 0.000000e+00 : f32
    %106 = vector.broadcast %cst_58 : f32 to vector<8x64xf32>
    %107 = arith.maximumf %105, %106 : vector<8x64xf32>
    %c1080 = arith.constant 1080 : index
    %c0_59 = arith.constant 0 : index
    %108 = vector.load %arg2[%c1080, %c0_59] : memref<3568x64xf32, #tpu.memory_space<vmem>>, vector<64x30xf32>
    %c1144 = arith.constant 1144 : index
    %c0_60 = arith.constant 0 : index
    %109 = vector.load %arg2[%c1144, %c0_60] : memref<3568x64xf32, #tpu.memory_space<vmem>>, vector<1x30xf32>
    %cst_61 = arith.constant dense<0.000000e+00> : vector<8x30xf32>
    %110 = tpu.matmul %107, %108, %cst_61 {dimension_numbers = #tpu.dot_dimension_numbers<[1], [0], [0], [1], [0, 0, 1, 1], [], []>} : vector<8x64xf32>, vector<64x30xf32>, vector<8x30xf32> -> vector<8x30xf32>
    %111 = vector.broadcast %109 : vector<1x30xf32> to vector<8x30xf32>
    %112 = arith.addf %110, %111 : vector<8x30xf32>
    %113 = arith.addf %93, %112 : vector<8x30xf32>
    %c128 = arith.constant 128 : index
    %c0_62 = arith.constant 0 : index
    %114 = vector.load %arg2[%c128, %c0_62] : memref<3568x64xf32, #tpu.memory_space<vmem>>, vector<30x15xf32>
    %cst_63 = arith.constant dense<0.000000e+00> : vector<8x15xf32>
    %115 = tpu.matmul %113, %114, %cst_63 {dimension_numbers = #tpu.dot_dimension_numbers<[1], [0], [0], [1], [0, 0, 1, 1], [], []>} : vector<8x30xf32>, vector<30x15xf32>, vector<8x15xf32> -> vector<8x15xf32>
    %c16 = arith.constant 16 : index
    %c0_64 = arith.constant 0 : index
    %116 = vector.load %arg2[%c16, %c0_64] : memref<3568x64xf32, #tpu.memory_space<vmem>>, vector<15x60xf32>
    %cst_65 = arith.constant dense<0.000000e+00> : vector<8x60xf32>
    %117 = tpu.matmul %115, %116, %cst_65 {dimension_numbers = #tpu.dot_dimension_numbers<[1], [0], [0], [1], [0, 0, 1, 1], [], []>} : vector<8x15xf32>, vector<15x60xf32>, vector<8x60xf32> -> vector<8x60xf32>
    %c0_66 = arith.constant 0 : index
    %c0_67 = arith.constant 0 : index
    %118 = vector.load %arg1[%c0_66, %c0_67] : memref<1904x128xf32, #tpu.memory_space<vmem>>, vector<15x128xf32>
    %c15 = arith.constant 15 : index
    %c0_68 = arith.constant 0 : index
    %119 = vector.load %arg1[%c15, %c0_68] : memref<1904x128xf32, #tpu.memory_space<vmem>>, vector<1x128xf32>
    %cst_69 = arith.constant dense<0.000000e+00> : vector<8x128xf32>
    %120 = tpu.matmul %115, %118, %cst_69 {dimension_numbers = #tpu.dot_dimension_numbers<[1], [0], [0], [1], [0, 0, 1, 1], [], []>} : vector<8x15xf32>, vector<15x128xf32>, vector<8x128xf32> -> vector<8x128xf32>
    %121 = vector.broadcast %119 : vector<1x128xf32> to vector<8x128xf32>
    %122 = arith.addf %120, %121 : vector<8x128xf32>
    %cst_70 = arith.constant 0.000000e+00 : f32
    %123 = vector.broadcast %cst_70 : f32 to vector<8x128xf32>
    %124 = arith.maximumf %122, %123 : vector<8x128xf32>
    %c16_71 = arith.constant 16 : index
    %c0_72 = arith.constant 0 : index
    %125 = vector.load %arg1[%c16_71, %c0_72] : memref<1904x128xf32, #tpu.memory_space<vmem>>, vector<128x128xf32>
    %c144 = arith.constant 144 : index
    %c0_73 = arith.constant 0 : index
    %126 = vector.load %arg1[%c144, %c0_73] : memref<1904x128xf32, #tpu.memory_space<vmem>>, vector<1x128xf32>
    %cst_74 = arith.constant dense<0.000000e+00> : vector<8x128xf32>
    %127 = tpu.matmul %124, %125, %cst_74 {dimension_numbers = #tpu.dot_dimension_numbers<[1], [0], [0], [1], [0, 0, 1, 1], [], []>} : vector<8x128xf32>, vector<128x128xf32>, vector<8x128xf32> -> vector<8x128xf32>
    %128 = vector.broadcast %126 : vector<1x128xf32> to vector<8x128xf32>
    %129 = arith.addf %127, %128 : vector<8x128xf32>
    %cst_75 = arith.constant 0.000000e+00 : f32
    %130 = vector.broadcast %cst_75 : f32 to vector<8x128xf32>
    %131 = arith.maximumf %129, %130 : vector<8x128xf32>
    %c1152 = arith.constant 1152 : index
    %c0_76 = arith.constant 0 : index
    %132 = vector.load %arg2[%c1152, %c0_76] : memref<3568x64xf32, #tpu.memory_space<vmem>>, vector<128x60xf32>
    %c1280 = arith.constant 1280 : index
    %c0_77 = arith.constant 0 : index
    %133 = vector.load %arg2[%c1280, %c0_77] : memref<3568x64xf32, #tpu.memory_space<vmem>>, vector<1x60xf32>
    %cst_78 = arith.constant dense<0.000000e+00> : vector<8x60xf32>
    %134 = tpu.matmul %131, %132, %cst_78 {dimension_numbers = #tpu.dot_dimension_numbers<[1], [0], [0], [1], [0, 0, 1, 1], [], []>} : vector<8x128xf32>, vector<128x60xf32>, vector<8x60xf32> -> vector<8x60xf32>
    %135 = vector.broadcast %133 : vector<1x60xf32> to vector<8x60xf32>
    %136 = arith.addf %134, %135 : vector<8x60xf32>
    %cst_79 = arith.constant dense<0xFF800000> : vector<8xf32>
    %137 = vector.multi_reduction <maximumf>, %136, %cst_79 [1] : vector<8x60xf32> to vector<8xf32>
    %138 = vector.shape_cast %137 : vector<8xf32> to vector<8x1xf32>
    %139 = vector.broadcast %138 : vector<8x1xf32> to vector<8x60xf32>
    %140 = arith.subf %136, %139 : vector<8x60xf32>
    %141 = math.exp %140 : vector<8x60xf32>
    %c64 = arith.constant 64 : index
    %c0_80 = arith.constant 0 : index
    %142 = vector.load %arg2[%c64, %c0_80] : memref<3568x64xf32, #tpu.memory_space<vmem>>, vector<60x60xf32>
    %cst_81 = arith.constant dense<0.000000e+00> : vector<8x60xf32>
    %143 = tpu.matmul %141, %142, %cst_81 {dimension_numbers = #tpu.dot_dimension_numbers<[1], [0], [0], [1], [0, 0, 1, 1], [], []>} : vector<8x60xf32>, vector<60x60xf32>, vector<8x60xf32> -> vector<8x60xf32>
    %144 = tpu.reciprocal %143 {approx = true} : vector<8x60xf32> -> vector<8x60xf32>
    %145 = arith.mulf %141, %144 : vector<8x60xf32>
    %146 = arith.mulf %117, %145 : vector<8x60xf32>
    %c152 = arith.constant 152 : index
    %c0_82 = arith.constant 0 : index
    %147 = vector.load %arg1[%c152, %c0_82] : memref<1904x128xf32, #tpu.memory_space<vmem>>, vector<60x128xf32>
    %c212 = arith.constant 212 : index
    %c0_83 = arith.constant 0 : index
    %148 = vector.load %arg1[%c212, %c0_83] : memref<1904x128xf32, #tpu.memory_space<vmem>>, vector<1x128xf32>
    %cst_84 = arith.constant dense<0.000000e+00> : vector<8x128xf32>
    %149 = tpu.matmul %146, %147, %cst_84 {dimension_numbers = #tpu.dot_dimension_numbers<[1], [0], [0], [1], [0, 0, 1, 1], [], []>} : vector<8x60xf32>, vector<60x128xf32>, vector<8x128xf32> -> vector<8x128xf32>
    %150 = vector.broadcast %148 : vector<1x128xf32> to vector<8x128xf32>
    %151 = arith.addf %149, %150 : vector<8x128xf32>
    %cst_85 = arith.constant 0.000000e+00 : f32
    %152 = vector.broadcast %cst_85 : f32 to vector<8x128xf32>
    %153 = arith.maximumf %151, %152 : vector<8x128xf32>
    %c216 = arith.constant 216 : index
    %c0_86 = arith.constant 0 : index
    %154 = vector.load %arg1[%c216, %c0_86] : memref<1904x128xf32, #tpu.memory_space<vmem>>, vector<128x128xf32>
    %c344 = arith.constant 344 : index
    %c0_87 = arith.constant 0 : index
    %155 = vector.load %arg1[%c344, %c0_87] : memref<1904x128xf32, #tpu.memory_space<vmem>>, vector<1x128xf32>
    %cst_88 = arith.constant dense<0.000000e+00> : vector<8x128xf32>
    %156 = tpu.matmul %153, %154, %cst_88 {dimension_numbers = #tpu.dot_dimension_numbers<[1], [0], [0], [1], [0, 0, 1, 1], [], []>} : vector<8x128xf32>, vector<128x128xf32>, vector<8x128xf32> -> vector<8x128xf32>
    %157 = vector.broadcast %155 : vector<1x128xf32> to vector<8x128xf32>
    %158 = arith.addf %156, %157 : vector<8x128xf32>
    %cst_89 = arith.constant 0.000000e+00 : f32
    %159 = vector.broadcast %cst_89 : f32 to vector<8x128xf32>
    %160 = arith.maximumf %158, %159 : vector<8x128xf32>
    %c1288 = arith.constant 1288 : index
    %c0_90 = arith.constant 0 : index
    %161 = vector.load %arg2[%c1288, %c0_90] : memref<3568x64xf32, #tpu.memory_space<vmem>>, vector<128x60xf32>
    %c1416 = arith.constant 1416 : index
    %c0_91 = arith.constant 0 : index
    %162 = vector.load %arg2[%c1416, %c0_91] : memref<3568x64xf32, #tpu.memory_space<vmem>>, vector<1x60xf32>
    %cst_92 = arith.constant dense<0.000000e+00> : vector<8x60xf32>
    %163 = tpu.matmul %160, %161, %cst_92 {dimension_numbers = #tpu.dot_dimension_numbers<[1], [0], [0], [1], [0, 0, 1, 1], [], []>} : vector<8x128xf32>, vector<128x60xf32>, vector<8x60xf32> -> vector<8x60xf32>
    %164 = vector.broadcast %162 : vector<1x60xf32> to vector<8x60xf32>
    %165 = arith.addf %163, %164 : vector<8x60xf32>
    %166 = arith.addf %146, %165 : vector<8x60xf32>
    %c352 = arith.constant 352 : index
    %c0_93 = arith.constant 0 : index
    %167 = vector.load %arg1[%c352, %c0_93] : memref<1904x128xf32, #tpu.memory_space<vmem>>, vector<60x128xf32>
    %c412 = arith.constant 412 : index
    %c0_94 = arith.constant 0 : index
    %168 = vector.load %arg1[%c412, %c0_94] : memref<1904x128xf32, #tpu.memory_space<vmem>>, vector<1x128xf32>
    %cst_95 = arith.constant dense<0.000000e+00> : vector<8x128xf32>
    %169 = tpu.matmul %166, %167, %cst_95 {dimension_numbers = #tpu.dot_dimension_numbers<[1], [0], [0], [1], [0, 0, 1, 1], [], []>} : vector<8x60xf32>, vector<60x128xf32>, vector<8x128xf32> -> vector<8x128xf32>
    %170 = vector.broadcast %168 : vector<1x128xf32> to vector<8x128xf32>
    %171 = arith.addf %169, %170 : vector<8x128xf32>
    %cst_96 = arith.constant 0.000000e+00 : f32
    %172 = vector.broadcast %cst_96 : f32 to vector<8x128xf32>
    %173 = arith.maximumf %171, %172 : vector<8x128xf32>
    %c416 = arith.constant 416 : index
    %c0_97 = arith.constant 0 : index
    %174 = vector.load %arg1[%c416, %c0_97] : memref<1904x128xf32, #tpu.memory_space<vmem>>, vector<128x128xf32>
    %c544_98 = arith.constant 544 : index
    %c0_99 = arith.constant 0 : index
    %175 = vector.load %arg1[%c544_98, %c0_99] : memref<1904x128xf32, #tpu.memory_space<vmem>>, vector<1x128xf32>
    %cst_100 = arith.constant dense<0.000000e+00> : vector<8x128xf32>
    %176 = tpu.matmul %173, %174, %cst_100 {dimension_numbers = #tpu.dot_dimension_numbers<[1], [0], [0], [1], [0, 0, 1, 1], [], []>} : vector<8x128xf32>, vector<128x128xf32>, vector<8x128xf32> -> vector<8x128xf32>
    %177 = vector.broadcast %175 : vector<1x128xf32> to vector<8x128xf32>
    %178 = arith.addf %176, %177 : vector<8x128xf32>
    %cst_101 = arith.constant 0.000000e+00 : f32
    %179 = vector.broadcast %cst_101 : f32 to vector<8x128xf32>
    %180 = arith.maximumf %178, %179 : vector<8x128xf32>
    %c1424 = arith.constant 1424 : index
    %c0_102 = arith.constant 0 : index
    %181 = vector.load %arg2[%c1424, %c0_102] : memref<3568x64xf32, #tpu.memory_space<vmem>>, vector<128x60xf32>
    %c1552 = arith.constant 1552 : index
    %c0_103 = arith.constant 0 : index
    %182 = vector.load %arg2[%c1552, %c0_103] : memref<3568x64xf32, #tpu.memory_space<vmem>>, vector<1x60xf32>
    %cst_104 = arith.constant dense<0.000000e+00> : vector<8x60xf32>
    %183 = tpu.matmul %180, %181, %cst_104 {dimension_numbers = #tpu.dot_dimension_numbers<[1], [0], [0], [1], [0, 0, 1, 1], [], []>} : vector<8x128xf32>, vector<128x60xf32>, vector<8x60xf32> -> vector<8x60xf32>
    %184 = vector.broadcast %182 : vector<1x60xf32> to vector<8x60xf32>
    %185 = arith.addf %183, %184 : vector<8x60xf32>
    %186 = arith.addf %166, %185 : vector<8x60xf32>
    %c552_105 = arith.constant 552 : index
    %c0_106 = arith.constant 0 : index
    %187 = vector.load %arg1[%c552_105, %c0_106] : memref<1904x128xf32, #tpu.memory_space<vmem>>, vector<60x128xf32>
    %c612 = arith.constant 612 : index
    %c0_107 = arith.constant 0 : index
    %188 = vector.load %arg1[%c612, %c0_107] : memref<1904x128xf32, #tpu.memory_space<vmem>>, vector<1x128xf32>
    %cst_108 = arith.constant dense<0.000000e+00> : vector<8x128xf32>
    %189 = tpu.matmul %186, %187, %cst_108 {dimension_numbers = #tpu.dot_dimension_numbers<[1], [0], [0], [1], [0, 0, 1, 1], [], []>} : vector<8x60xf32>, vector<60x128xf32>, vector<8x128xf32> -> vector<8x128xf32>
    %190 = vector.broadcast %188 : vector<1x128xf32> to vector<8x128xf32>
    %191 = arith.addf %189, %190 : vector<8x128xf32>
    %cst_109 = arith.constant 0.000000e+00 : f32
    %192 = vector.broadcast %cst_109 : f32 to vector<8x128xf32>
    %193 = arith.maximumf %191, %192 : vector<8x128xf32>
    %c616_110 = arith.constant 616 : index
    %c0_111 = arith.constant 0 : index
    %194 = vector.load %arg1[%c616_110, %c0_111] : memref<1904x128xf32, #tpu.memory_space<vmem>>, vector<128x128xf32>
    %c744 = arith.constant 744 : index
    %c0_112 = arith.constant 0 : index
    %195 = vector.load %arg1[%c744, %c0_112] : memref<1904x128xf32, #tpu.memory_space<vmem>>, vector<1x128xf32>
    %cst_113 = arith.constant dense<0.000000e+00> : vector<8x128xf32>
    %196 = tpu.matmul %193, %194, %cst_113 {dimension_numbers = #tpu.dot_dimension_numbers<[1], [0], [0], [1], [0, 0, 1, 1], [], []>} : vector<8x128xf32>, vector<128x128xf32>, vector<8x128xf32> -> vector<8x128xf32>
    %197 = vector.broadcast %195 : vector<1x128xf32> to vector<8x128xf32>
    %198 = arith.addf %196, %197 : vector<8x128xf32>
    %cst_114 = arith.constant 0.000000e+00 : f32
    %199 = vector.broadcast %cst_114 : f32 to vector<8x128xf32>
    %200 = arith.maximumf %198, %199 : vector<8x128xf32>
    %c1560 = arith.constant 1560 : index
    %c0_115 = arith.constant 0 : index
    %201 = vector.load %arg2[%c1560, %c0_115] : memref<3568x64xf32, #tpu.memory_space<vmem>>, vector<128x60xf32>
    %c1688 = arith.constant 1688 : index
    %c0_116 = arith.constant 0 : index
    %202 = vector.load %arg2[%c1688, %c0_116] : memref<3568x64xf32, #tpu.memory_space<vmem>>, vector<1x60xf32>
    %cst_117 = arith.constant dense<0.000000e+00> : vector<8x60xf32>
    %203 = tpu.matmul %200, %201, %cst_117 {dimension_numbers = #tpu.dot_dimension_numbers<[1], [0], [0], [1], [0, 0, 1, 1], [], []>} : vector<8x128xf32>, vector<128x60xf32>, vector<8x60xf32> -> vector<8x60xf32>
    %204 = vector.broadcast %202 : vector<1x60xf32> to vector<8x60xf32>
    %205 = arith.addf %203, %204 : vector<8x60xf32>
    %206 = arith.addf %186, %205 : vector<8x60xf32>
    %c752 = arith.constant 752 : index
    %c0_118 = arith.constant 0 : index
    %207 = vector.load %arg1[%c752, %c0_118] : memref<1904x128xf32, #tpu.memory_space<vmem>>, vector<60x128xf32>
    %c812 = arith.constant 812 : index
    %c0_119 = arith.constant 0 : index
    %208 = vector.load %arg1[%c812, %c0_119] : memref<1904x128xf32, #tpu.memory_space<vmem>>, vector<1x128xf32>
    %cst_120 = arith.constant dense<0.000000e+00> : vector<8x128xf32>
    %209 = tpu.matmul %206, %207, %cst_120 {dimension_numbers = #tpu.dot_dimension_numbers<[1], [0], [0], [1], [0, 0, 1, 1], [], []>} : vector<8x60xf32>, vector<60x128xf32>, vector<8x128xf32> -> vector<8x128xf32>
    %210 = vector.broadcast %208 : vector<1x128xf32> to vector<8x128xf32>
    %211 = arith.addf %209, %210 : vector<8x128xf32>
    %cst_121 = arith.constant 0.000000e+00 : f32
    %212 = vector.broadcast %cst_121 : f32 to vector<8x128xf32>
    %213 = arith.maximumf %211, %212 : vector<8x128xf32>
    %c816 = arith.constant 816 : index
    %c0_122 = arith.constant 0 : index
    %214 = vector.load %arg1[%c816, %c0_122] : memref<1904x128xf32, #tpu.memory_space<vmem>>, vector<128x128xf32>
    %c944 = arith.constant 944 : index
    %c0_123 = arith.constant 0 : index
    %215 = vector.load %arg1[%c944, %c0_123] : memref<1904x128xf32, #tpu.memory_space<vmem>>, vector<1x128xf32>
    %cst_124 = arith.constant dense<0.000000e+00> : vector<8x128xf32>
    %216 = tpu.matmul %213, %214, %cst_124 {dimension_numbers = #tpu.dot_dimension_numbers<[1], [0], [0], [1], [0, 0, 1, 1], [], []>} : vector<8x128xf32>, vector<128x128xf32>, vector<8x128xf32> -> vector<8x128xf32>
    %217 = vector.broadcast %215 : vector<1x128xf32> to vector<8x128xf32>
    %218 = arith.addf %216, %217 : vector<8x128xf32>
    %cst_125 = arith.constant 0.000000e+00 : f32
    %219 = vector.broadcast %cst_125 : f32 to vector<8x128xf32>
    %220 = arith.maximumf %218, %219 : vector<8x128xf32>
    %c1696 = arith.constant 1696 : index
    %c0_126 = arith.constant 0 : index
    %221 = vector.load %arg2[%c1696, %c0_126] : memref<3568x64xf32, #tpu.memory_space<vmem>>, vector<128x60xf32>
    %c1824 = arith.constant 1824 : index
    %c0_127 = arith.constant 0 : index
    %222 = vector.load %arg2[%c1824, %c0_127] : memref<3568x64xf32, #tpu.memory_space<vmem>>, vector<1x60xf32>
    %cst_128 = arith.constant dense<0.000000e+00> : vector<8x60xf32>
    %223 = tpu.matmul %220, %221, %cst_128 {dimension_numbers = #tpu.dot_dimension_numbers<[1], [0], [0], [1], [0, 0, 1, 1], [], []>} : vector<8x128xf32>, vector<128x60xf32>, vector<8x60xf32> -> vector<8x60xf32>
    %224 = vector.broadcast %222 : vector<1x60xf32> to vector<8x60xf32>
    %225 = arith.addf %223, %224 : vector<8x60xf32>
    %226 = arith.addf %206, %225 : vector<8x60xf32>
    %c160 = arith.constant 160 : index
    %c0_129 = arith.constant 0 : index
    %227 = vector.load %arg2[%c160, %c0_129] : memref<3568x64xf32, #tpu.memory_space<vmem>>, vector<60x15xf32>
    %cst_130 = arith.constant dense<0.000000e+00> : vector<8x15xf32>
    %228 = tpu.matmul %146, %227, %cst_130 {dimension_numbers = #tpu.dot_dimension_numbers<[1], [0], [0], [1], [0, 0, 1, 1], [], []>} : vector<8x60xf32>, vector<60x15xf32>, vector<8x15xf32> -> vector<8x15xf32>
    %c224 = arith.constant 224 : index
    %c0_131 = arith.constant 0 : index
    %229 = vector.load %arg2[%c224, %c0_131] : memref<3568x64xf32, #tpu.memory_space<vmem>>, vector<60x15xf32>
    %cst_132 = arith.constant dense<0.000000e+00> : vector<8x15xf32>
    %230 = tpu.matmul %226, %229, %cst_132 {dimension_numbers = #tpu.dot_dimension_numbers<[1], [0], [0], [1], [0, 0, 1, 1], [], []>} : vector<8x60xf32>, vector<60x15xf32>, vector<8x15xf32> -> vector<8x15xf32>
    %231 = arith.addf %228, %230 : vector<8x15xf32>
    %232 = arith.addf %2, %115 : vector<8x15xf32>
    %233 = arith.addf %232, %231 : vector<8x15xf32>
    %c1832 = arith.constant 1832 : index
    %c0_133 = arith.constant 0 : index
    %234 = vector.load %arg2[%c1832, %c0_133] : memref<3568x64xf32, #tpu.memory_space<vmem>>, vector<15x32xf32>
    %c1847 = arith.constant 1847 : index
    %c0_134 = arith.constant 0 : index
    %235 = vector.load %arg2[%c1847, %c0_134] : memref<3568x64xf32, #tpu.memory_space<vmem>>, vector<1x32xf32>
    %cst_135 = arith.constant dense<0.000000e+00> : vector<8x32xf32>
    %236 = tpu.matmul %233, %234, %cst_135 {dimension_numbers = #tpu.dot_dimension_numbers<[1], [0], [0], [1], [0, 0, 1, 1], [], []>} : vector<8x15xf32>, vector<15x32xf32>, vector<8x32xf32> -> vector<8x32xf32>
    %237 = vector.broadcast %235 : vector<1x32xf32> to vector<8x32xf32>
    %238 = arith.addf %236, %237 : vector<8x32xf32>
    %cst_136 = arith.constant 0.000000e+00 : f32
    %239 = vector.broadcast %cst_136 : f32 to vector<8x32xf32>
    %240 = arith.maximumf %238, %239 : vector<8x32xf32>
    %c1848 = arith.constant 1848 : index
    %c0_137 = arith.constant 0 : index
    %241 = vector.load %arg2[%c1848, %c0_137] : memref<3568x64xf32, #tpu.memory_space<vmem>>, vector<32x32xf32>
    %c1880 = arith.constant 1880 : index
    %c0_138 = arith.constant 0 : index
    %242 = vector.load %arg2[%c1880, %c0_138] : memref<3568x64xf32, #tpu.memory_space<vmem>>, vector<1x32xf32>
    %cst_139 = arith.constant dense<0.000000e+00> : vector<8x32xf32>
    %243 = tpu.matmul %240, %241, %cst_139 {dimension_numbers = #tpu.dot_dimension_numbers<[1], [0], [0], [1], [0, 0, 1, 1], [], []>} : vector<8x32xf32>, vector<32x32xf32>, vector<8x32xf32> -> vector<8x32xf32>
    %244 = vector.broadcast %242 : vector<1x32xf32> to vector<8x32xf32>
    %245 = arith.addf %243, %244 : vector<8x32xf32>
    %cst_140 = arith.constant 0.000000e+00 : f32
    %246 = vector.broadcast %cst_140 : f32 to vector<8x32xf32>
    %247 = arith.maximumf %245, %246 : vector<8x32xf32>
    %c1888 = arith.constant 1888 : index
    %c0_141 = arith.constant 0 : index
    %248 = vector.load %arg2[%c1888, %c0_141] : memref<3568x64xf32, #tpu.memory_space<vmem>>, vector<32x15xf32>
    %c1920 = arith.constant 1920 : index
    %c0_142 = arith.constant 0 : index
    %249 = vector.load %arg2[%c1920, %c0_142] : memref<3568x64xf32, #tpu.memory_space<vmem>>, vector<1x15xf32>
    %cst_143 = arith.constant dense<0.000000e+00> : vector<8x15xf32>
    %250 = tpu.matmul %247, %248, %cst_143 {dimension_numbers = #tpu.dot_dimension_numbers<[1], [0], [0], [1], [0, 0, 1, 1], [], []>} : vector<8x32xf32>, vector<32x15xf32>, vector<8x15xf32> -> vector<8x15xf32>
    %251 = vector.broadcast %249 : vector<1x15xf32> to vector<8x15xf32>
    %252 = arith.addf %250, %251 : vector<8x15xf32>
    %253 = arith.addf %233, %252 : vector<8x15xf32>
    %c0_144 = arith.constant 0 : index
    %c0_145 = arith.constant 0 : index
    %254 = vector.load %arg2[%c0_144, %c0_145] : memref<3568x64xf32, #tpu.memory_space<vmem>>, vector<15x30xf32>
    %cst_146 = arith.constant dense<0.000000e+00> : vector<8x30xf32>
    %255 = tpu.matmul %253, %254, %cst_146 {dimension_numbers = #tpu.dot_dimension_numbers<[1], [0], [0], [1], [0, 0, 1, 1], [], []>} : vector<8x15xf32>, vector<15x30xf32>, vector<8x30xf32> -> vector<8x30xf32>
    %c1928 = arith.constant 1928 : index
    %c0_147 = arith.constant 0 : index
    %256 = vector.load %arg2[%c1928, %c0_147] : memref<3568x64xf32, #tpu.memory_space<vmem>>, vector<15x64xf32>
    %c1943 = arith.constant 1943 : index
    %c0_148 = arith.constant 0 : index
    %257 = vector.load %arg2[%c1943, %c0_148] : memref<3568x64xf32, #tpu.memory_space<vmem>>, vector<1x64xf32>
    %cst_149 = arith.constant dense<0.000000e+00> : vector<8x64xf32>
    %258 = tpu.matmul %253, %256, %cst_149 {dimension_numbers = #tpu.dot_dimension_numbers<[1], [0], [0], [1], [0, 0, 1, 1], [], []>} : vector<8x15xf32>, vector<15x64xf32>, vector<8x64xf32> -> vector<8x64xf32>
    %259 = vector.broadcast %257 : vector<1x64xf32> to vector<8x64xf32>
    %260 = arith.addf %258, %259 : vector<8x64xf32>
    %cst_150 = arith.constant 0.000000e+00 : f32
    %261 = vector.broadcast %cst_150 : f32 to vector<8x64xf32>
    %262 = arith.maximumf %260, %261 : vector<8x64xf32>
    %c1944 = arith.constant 1944 : index
    %c0_151 = arith.constant 0 : index
    %263 = vector.load %arg2[%c1944, %c0_151] : memref<3568x64xf32, #tpu.memory_space<vmem>>, vector<64x64xf32>
    %c2008 = arith.constant 2008 : index
    %c0_152 = arith.constant 0 : index
    %264 = vector.load %arg2[%c2008, %c0_152] : memref<3568x64xf32, #tpu.memory_space<vmem>>, vector<1x64xf32>
    %cst_153 = arith.constant dense<0.000000e+00> : vector<8x64xf32>
    %265 = tpu.matmul %262, %263, %cst_153 {dimension_numbers = #tpu.dot_dimension_numbers<[1], [0], [0], [1], [0, 0, 1, 1], [], []>} : vector<8x64xf32>, vector<64x64xf32>, vector<8x64xf32> -> vector<8x64xf32>
    %266 = vector.broadcast %264 : vector<1x64xf32> to vector<8x64xf32>
    %267 = arith.addf %265, %266 : vector<8x64xf32>
    %cst_154 = arith.constant 0.000000e+00 : f32
    %268 = vector.broadcast %cst_154 : f32 to vector<8x64xf32>
    %269 = arith.maximumf %267, %268 : vector<8x64xf32>
    %c2016 = arith.constant 2016 : index
    %c0_155 = arith.constant 0 : index
    %270 = vector.load %arg2[%c2016, %c0_155] : memref<3568x64xf32, #tpu.memory_space<vmem>>, vector<64x30xf32>
    %c2080 = arith.constant 2080 : index
    %c0_156 = arith.constant 0 : index
    %271 = vector.load %arg2[%c2080, %c0_156] : memref<3568x64xf32, #tpu.memory_space<vmem>>, vector<1x30xf32>
    %cst_157 = arith.constant dense<0.000000e+00> : vector<8x30xf32>
    %272 = tpu.matmul %269, %270, %cst_157 {dimension_numbers = #tpu.dot_dimension_numbers<[1], [0], [0], [1], [0, 0, 1, 1], [], []>} : vector<8x64xf32>, vector<64x30xf32>, vector<8x30xf32> -> vector<8x30xf32>
    %273 = vector.broadcast %271 : vector<1x30xf32> to vector<8x30xf32>
    %274 = arith.addf %272, %273 : vector<8x30xf32>
    %cst_158 = arith.constant dense<0xFF800000> : vector<8xf32>
    %275 = vector.multi_reduction <maximumf>, %274, %cst_158 [1] : vector<8x30xf32> to vector<8xf32>
    %276 = vector.shape_cast %275 : vector<8xf32> to vector<8x1xf32>
    %277 = vector.broadcast %276 : vector<8x1xf32> to vector<8x30xf32>
    %278 = arith.subf %274, %277 : vector<8x30xf32>
    %279 = math.exp %278 : vector<8x30xf32>
    %c32_159 = arith.constant 32 : index
    %c0_160 = arith.constant 0 : index
    %280 = vector.load %arg2[%c32_159, %c0_160] : memref<3568x64xf32, #tpu.memory_space<vmem>>, vector<30x30xf32>
    %cst_161 = arith.constant dense<0.000000e+00> : vector<8x30xf32>
    %281 = tpu.matmul %279, %280, %cst_161 {dimension_numbers = #tpu.dot_dimension_numbers<[1], [0], [0], [1], [0, 0, 1, 1], [], []>} : vector<8x30xf32>, vector<30x30xf32>, vector<8x30xf32> -> vector<8x30xf32>
    %282 = tpu.reciprocal %281 {approx = true} : vector<8x30xf32> -> vector<8x30xf32>
    %283 = arith.mulf %279, %282 : vector<8x30xf32>
    %284 = arith.mulf %255, %283 : vector<8x30xf32>
    %c2088 = arith.constant 2088 : index
    %c0_162 = arith.constant 0 : index
    %285 = vector.load %arg2[%c2088, %c0_162] : memref<3568x64xf32, #tpu.memory_space<vmem>>, vector<30x64xf32>
    %c2118 = arith.constant 2118 : index
    %c0_163 = arith.constant 0 : index
    %286 = vector.load %arg2[%c2118, %c0_163] : memref<3568x64xf32, #tpu.memory_space<vmem>>, vector<1x64xf32>
    %cst_164 = arith.constant dense<0.000000e+00> : vector<8x64xf32>
    %287 = tpu.matmul %284, %285, %cst_164 {dimension_numbers = #tpu.dot_dimension_numbers<[1], [0], [0], [1], [0, 0, 1, 1], [], []>} : vector<8x30xf32>, vector<30x64xf32>, vector<8x64xf32> -> vector<8x64xf32>
    %288 = vector.broadcast %286 : vector<1x64xf32> to vector<8x64xf32>
    %289 = arith.addf %287, %288 : vector<8x64xf32>
    %cst_165 = arith.constant 0.000000e+00 : f32
    %290 = vector.broadcast %cst_165 : f32 to vector<8x64xf32>
    %291 = arith.maximumf %289, %290 : vector<8x64xf32>
    %c2120 = arith.constant 2120 : index
    %c0_166 = arith.constant 0 : index
    %292 = vector.load %arg2[%c2120, %c0_166] : memref<3568x64xf32, #tpu.memory_space<vmem>>, vector<64x64xf32>
    %c2184 = arith.constant 2184 : index
    %c0_167 = arith.constant 0 : index
    %293 = vector.load %arg2[%c2184, %c0_167] : memref<3568x64xf32, #tpu.memory_space<vmem>>, vector<1x64xf32>
    %cst_168 = arith.constant dense<0.000000e+00> : vector<8x64xf32>
    %294 = tpu.matmul %291, %292, %cst_168 {dimension_numbers = #tpu.dot_dimension_numbers<[1], [0], [0], [1], [0, 0, 1, 1], [], []>} : vector<8x64xf32>, vector<64x64xf32>, vector<8x64xf32> -> vector<8x64xf32>
    %295 = vector.broadcast %293 : vector<1x64xf32> to vector<8x64xf32>
    %296 = arith.addf %294, %295 : vector<8x64xf32>
    %cst_169 = arith.constant 0.000000e+00 : f32
    %297 = vector.broadcast %cst_169 : f32 to vector<8x64xf32>
    %298 = arith.maximumf %296, %297 : vector<8x64xf32>
    %c2192 = arith.constant 2192 : index
    %c0_170 = arith.constant 0 : index
    %299 = vector.load %arg2[%c2192, %c0_170] : memref<3568x64xf32, #tpu.memory_space<vmem>>, vector<64x30xf32>
    %c2256 = arith.constant 2256 : index
    %c0_171 = arith.constant 0 : index
    %300 = vector.load %arg2[%c2256, %c0_171] : memref<3568x64xf32, #tpu.memory_space<vmem>>, vector<1x30xf32>
    %cst_172 = arith.constant dense<0.000000e+00> : vector<8x30xf32>
    %301 = tpu.matmul %298, %299, %cst_172 {dimension_numbers = #tpu.dot_dimension_numbers<[1], [0], [0], [1], [0, 0, 1, 1], [], []>} : vector<8x64xf32>, vector<64x30xf32>, vector<8x30xf32> -> vector<8x30xf32>
    %302 = vector.broadcast %300 : vector<1x30xf32> to vector<8x30xf32>
    %303 = arith.addf %301, %302 : vector<8x30xf32>
    %304 = arith.addf %284, %303 : vector<8x30xf32>
    %c2264 = arith.constant 2264 : index
    %c0_173 = arith.constant 0 : index
    %305 = vector.load %arg2[%c2264, %c0_173] : memref<3568x64xf32, #tpu.memory_space<vmem>>, vector<30x64xf32>
    %c2294 = arith.constant 2294 : index
    %c0_174 = arith.constant 0 : index
    %306 = vector.load %arg2[%c2294, %c0_174] : memref<3568x64xf32, #tpu.memory_space<vmem>>, vector<1x64xf32>
    %cst_175 = arith.constant dense<0.000000e+00> : vector<8x64xf32>
    %307 = tpu.matmul %304, %305, %cst_175 {dimension_numbers = #tpu.dot_dimension_numbers<[1], [0], [0], [1], [0, 0, 1, 1], [], []>} : vector<8x30xf32>, vector<30x64xf32>, vector<8x64xf32> -> vector<8x64xf32>
    %308 = vector.broadcast %306 : vector<1x64xf32> to vector<8x64xf32>
    %309 = arith.addf %307, %308 : vector<8x64xf32>
    %cst_176 = arith.constant 0.000000e+00 : f32
    %310 = vector.broadcast %cst_176 : f32 to vector<8x64xf32>
    %311 = arith.maximumf %309, %310 : vector<8x64xf32>
    %c2296 = arith.constant 2296 : index
    %c0_177 = arith.constant 0 : index
    %312 = vector.load %arg2[%c2296, %c0_177] : memref<3568x64xf32, #tpu.memory_space<vmem>>, vector<64x64xf32>
    %c2360 = arith.constant 2360 : index
    %c0_178 = arith.constant 0 : index
    %313 = vector.load %arg2[%c2360, %c0_178] : memref<3568x64xf32, #tpu.memory_space<vmem>>, vector<1x64xf32>
    %cst_179 = arith.constant dense<0.000000e+00> : vector<8x64xf32>
    %314 = tpu.matmul %311, %312, %cst_179 {dimension_numbers = #tpu.dot_dimension_numbers<[1], [0], [0], [1], [0, 0, 1, 1], [], []>} : vector<8x64xf32>, vector<64x64xf32>, vector<8x64xf32> -> vector<8x64xf32>
    %315 = vector.broadcast %313 : vector<1x64xf32> to vector<8x64xf32>
    %316 = arith.addf %314, %315 : vector<8x64xf32>
    %cst_180 = arith.constant 0.000000e+00 : f32
    %317 = vector.broadcast %cst_180 : f32 to vector<8x64xf32>
    %318 = arith.maximumf %316, %317 : vector<8x64xf32>
    %c2368 = arith.constant 2368 : index
    %c0_181 = arith.constant 0 : index
    %319 = vector.load %arg2[%c2368, %c0_181] : memref<3568x64xf32, #tpu.memory_space<vmem>>, vector<64x30xf32>
    %c2432 = arith.constant 2432 : index
    %c0_182 = arith.constant 0 : index
    %320 = vector.load %arg2[%c2432, %c0_182] : memref<3568x64xf32, #tpu.memory_space<vmem>>, vector<1x30xf32>
    %cst_183 = arith.constant dense<0.000000e+00> : vector<8x30xf32>
    %321 = tpu.matmul %318, %319, %cst_183 {dimension_numbers = #tpu.dot_dimension_numbers<[1], [0], [0], [1], [0, 0, 1, 1], [], []>} : vector<8x64xf32>, vector<64x30xf32>, vector<8x30xf32> -> vector<8x30xf32>
    %322 = vector.broadcast %320 : vector<1x30xf32> to vector<8x30xf32>
    %323 = arith.addf %321, %322 : vector<8x30xf32>
    %324 = arith.addf %304, %323 : vector<8x30xf32>
    %c2440 = arith.constant 2440 : index
    %c0_184 = arith.constant 0 : index
    %325 = vector.load %arg2[%c2440, %c0_184] : memref<3568x64xf32, #tpu.memory_space<vmem>>, vector<30x64xf32>
    %c2470 = arith.constant 2470 : index
    %c0_185 = arith.constant 0 : index
    %326 = vector.load %arg2[%c2470, %c0_185] : memref<3568x64xf32, #tpu.memory_space<vmem>>, vector<1x64xf32>
    %cst_186 = arith.constant dense<0.000000e+00> : vector<8x64xf32>
    %327 = tpu.matmul %324, %325, %cst_186 {dimension_numbers = #tpu.dot_dimension_numbers<[1], [0], [0], [1], [0, 0, 1, 1], [], []>} : vector<8x30xf32>, vector<30x64xf32>, vector<8x64xf32> -> vector<8x64xf32>
    %328 = vector.broadcast %326 : vector<1x64xf32> to vector<8x64xf32>
    %329 = arith.addf %327, %328 : vector<8x64xf32>
    %cst_187 = arith.constant 0.000000e+00 : f32
    %330 = vector.broadcast %cst_187 : f32 to vector<8x64xf32>
    %331 = arith.maximumf %329, %330 : vector<8x64xf32>
    %c2472 = arith.constant 2472 : index
    %c0_188 = arith.constant 0 : index
    %332 = vector.load %arg2[%c2472, %c0_188] : memref<3568x64xf32, #tpu.memory_space<vmem>>, vector<64x64xf32>
    %c2536 = arith.constant 2536 : index
    %c0_189 = arith.constant 0 : index
    %333 = vector.load %arg2[%c2536, %c0_189] : memref<3568x64xf32, #tpu.memory_space<vmem>>, vector<1x64xf32>
    %cst_190 = arith.constant dense<0.000000e+00> : vector<8x64xf32>
    %334 = tpu.matmul %331, %332, %cst_190 {dimension_numbers = #tpu.dot_dimension_numbers<[1], [0], [0], [1], [0, 0, 1, 1], [], []>} : vector<8x64xf32>, vector<64x64xf32>, vector<8x64xf32> -> vector<8x64xf32>
    %335 = vector.broadcast %333 : vector<1x64xf32> to vector<8x64xf32>
    %336 = arith.addf %334, %335 : vector<8x64xf32>
    %cst_191 = arith.constant 0.000000e+00 : f32
    %337 = vector.broadcast %cst_191 : f32 to vector<8x64xf32>
    %338 = arith.maximumf %336, %337 : vector<8x64xf32>
    %c2544 = arith.constant 2544 : index
    %c0_192 = arith.constant 0 : index
    %339 = vector.load %arg2[%c2544, %c0_192] : memref<3568x64xf32, #tpu.memory_space<vmem>>, vector<64x30xf32>
    %c2608 = arith.constant 2608 : index
    %c0_193 = arith.constant 0 : index
    %340 = vector.load %arg2[%c2608, %c0_193] : memref<3568x64xf32, #tpu.memory_space<vmem>>, vector<1x30xf32>
    %cst_194 = arith.constant dense<0.000000e+00> : vector<8x30xf32>
    %341 = tpu.matmul %338, %339, %cst_194 {dimension_numbers = #tpu.dot_dimension_numbers<[1], [0], [0], [1], [0, 0, 1, 1], [], []>} : vector<8x64xf32>, vector<64x30xf32>, vector<8x30xf32> -> vector<8x30xf32>
    %342 = vector.broadcast %340 : vector<1x30xf32> to vector<8x30xf32>
    %343 = arith.addf %341, %342 : vector<8x30xf32>
    %344 = arith.addf %324, %343 : vector<8x30xf32>
    %c2616 = arith.constant 2616 : index
    %c0_195 = arith.constant 0 : index
    %345 = vector.load %arg2[%c2616, %c0_195] : memref<3568x64xf32, #tpu.memory_space<vmem>>, vector<30x64xf32>
    %c2646 = arith.constant 2646 : index
    %c0_196 = arith.constant 0 : index
    %346 = vector.load %arg2[%c2646, %c0_196] : memref<3568x64xf32, #tpu.memory_space<vmem>>, vector<1x64xf32>
    %cst_197 = arith.constant dense<0.000000e+00> : vector<8x64xf32>
    %347 = tpu.matmul %344, %345, %cst_197 {dimension_numbers = #tpu.dot_dimension_numbers<[1], [0], [0], [1], [0, 0, 1, 1], [], []>} : vector<8x30xf32>, vector<30x64xf32>, vector<8x64xf32> -> vector<8x64xf32>
    %348 = vector.broadcast %346 : vector<1x64xf32> to vector<8x64xf32>
    %349 = arith.addf %347, %348 : vector<8x64xf32>
    %cst_198 = arith.constant 0.000000e+00 : f32
    %350 = vector.broadcast %cst_198 : f32 to vector<8x64xf32>
    %351 = arith.maximumf %349, %350 : vector<8x64xf32>
    %c2648 = arith.constant 2648 : index
    %c0_199 = arith.constant 0 : index
    %352 = vector.load %arg2[%c2648, %c0_199] : memref<3568x64xf32, #tpu.memory_space<vmem>>, vector<64x64xf32>
    %c2712 = arith.constant 2712 : index
    %c0_200 = arith.constant 0 : index
    %353 = vector.load %arg2[%c2712, %c0_200] : memref<3568x64xf32, #tpu.memory_space<vmem>>, vector<1x64xf32>
    %cst_201 = arith.constant dense<0.000000e+00> : vector<8x64xf32>
    %354 = tpu.matmul %351, %352, %cst_201 {dimension_numbers = #tpu.dot_dimension_numbers<[1], [0], [0], [1], [0, 0, 1, 1], [], []>} : vector<8x64xf32>, vector<64x64xf32>, vector<8x64xf32> -> vector<8x64xf32>
    %355 = vector.broadcast %353 : vector<1x64xf32> to vector<8x64xf32>
    %356 = arith.addf %354, %355 : vector<8x64xf32>
    %cst_202 = arith.constant 0.000000e+00 : f32
    %357 = vector.broadcast %cst_202 : f32 to vector<8x64xf32>
    %358 = arith.maximumf %356, %357 : vector<8x64xf32>
    %c2720 = arith.constant 2720 : index
    %c0_203 = arith.constant 0 : index
    %359 = vector.load %arg2[%c2720, %c0_203] : memref<3568x64xf32, #tpu.memory_space<vmem>>, vector<64x30xf32>
    %c2784 = arith.constant 2784 : index
    %c0_204 = arith.constant 0 : index
    %360 = vector.load %arg2[%c2784, %c0_204] : memref<3568x64xf32, #tpu.memory_space<vmem>>, vector<1x30xf32>
    %cst_205 = arith.constant dense<0.000000e+00> : vector<8x30xf32>
    %361 = tpu.matmul %358, %359, %cst_205 {dimension_numbers = #tpu.dot_dimension_numbers<[1], [0], [0], [1], [0, 0, 1, 1], [], []>} : vector<8x64xf32>, vector<64x30xf32>, vector<8x30xf32> -> vector<8x30xf32>
    %362 = vector.broadcast %360 : vector<1x30xf32> to vector<8x30xf32>
    %363 = arith.addf %361, %362 : vector<8x30xf32>
    %364 = arith.addf %344, %363 : vector<8x30xf32>
    %c128_206 = arith.constant 128 : index
    %c0_207 = arith.constant 0 : index
    %365 = vector.load %arg2[%c128_206, %c0_207] : memref<3568x64xf32, #tpu.memory_space<vmem>>, vector<30x15xf32>
    %cst_208 = arith.constant dense<0.000000e+00> : vector<8x15xf32>
    %366 = tpu.matmul %364, %365, %cst_208 {dimension_numbers = #tpu.dot_dimension_numbers<[1], [0], [0], [1], [0, 0, 1, 1], [], []>} : vector<8x30xf32>, vector<30x15xf32>, vector<8x15xf32> -> vector<8x15xf32>
    %c16_209 = arith.constant 16 : index
    %c0_210 = arith.constant 0 : index
    %367 = vector.load %arg2[%c16_209, %c0_210] : memref<3568x64xf32, #tpu.memory_space<vmem>>, vector<15x60xf32>
    %cst_211 = arith.constant dense<0.000000e+00> : vector<8x60xf32>
    %368 = tpu.matmul %366, %367, %cst_211 {dimension_numbers = #tpu.dot_dimension_numbers<[1], [0], [0], [1], [0, 0, 1, 1], [], []>} : vector<8x15xf32>, vector<15x60xf32>, vector<8x60xf32> -> vector<8x60xf32>
    %c952 = arith.constant 952 : index
    %c0_212 = arith.constant 0 : index
    %369 = vector.load %arg1[%c952, %c0_212] : memref<1904x128xf32, #tpu.memory_space<vmem>>, vector<15x128xf32>
    %c967 = arith.constant 967 : index
    %c0_213 = arith.constant 0 : index
    %370 = vector.load %arg1[%c967, %c0_213] : memref<1904x128xf32, #tpu.memory_space<vmem>>, vector<1x128xf32>
    %cst_214 = arith.constant dense<0.000000e+00> : vector<8x128xf32>
    %371 = tpu.matmul %366, %369, %cst_214 {dimension_numbers = #tpu.dot_dimension_numbers<[1], [0], [0], [1], [0, 0, 1, 1], [], []>} : vector<8x15xf32>, vector<15x128xf32>, vector<8x128xf32> -> vector<8x128xf32>
    %372 = vector.broadcast %370 : vector<1x128xf32> to vector<8x128xf32>
    %373 = arith.addf %371, %372 : vector<8x128xf32>
    %cst_215 = arith.constant 0.000000e+00 : f32
    %374 = vector.broadcast %cst_215 : f32 to vector<8x128xf32>
    %375 = arith.maximumf %373, %374 : vector<8x128xf32>
    %c968_216 = arith.constant 968 : index
    %c0_217 = arith.constant 0 : index
    %376 = vector.load %arg1[%c968_216, %c0_217] : memref<1904x128xf32, #tpu.memory_space<vmem>>, vector<128x128xf32>
    %c1096 = arith.constant 1096 : index
    %c0_218 = arith.constant 0 : index
    %377 = vector.load %arg1[%c1096, %c0_218] : memref<1904x128xf32, #tpu.memory_space<vmem>>, vector<1x128xf32>
    %cst_219 = arith.constant dense<0.000000e+00> : vector<8x128xf32>
    %378 = tpu.matmul %375, %376, %cst_219 {dimension_numbers = #tpu.dot_dimension_numbers<[1], [0], [0], [1], [0, 0, 1, 1], [], []>} : vector<8x128xf32>, vector<128x128xf32>, vector<8x128xf32> -> vector<8x128xf32>
    %379 = vector.broadcast %377 : vector<1x128xf32> to vector<8x128xf32>
    %380 = arith.addf %378, %379 : vector<8x128xf32>
    %cst_220 = arith.constant 0.000000e+00 : f32
    %381 = vector.broadcast %cst_220 : f32 to vector<8x128xf32>
    %382 = arith.maximumf %380, %381 : vector<8x128xf32>
    %c2792 = arith.constant 2792 : index
    %c0_221 = arith.constant 0 : index
    %383 = vector.load %arg2[%c2792, %c0_221] : memref<3568x64xf32, #tpu.memory_space<vmem>>, vector<128x60xf32>
    %c2920 = arith.constant 2920 : index
    %c0_222 = arith.constant 0 : index
    %384 = vector.load %arg2[%c2920, %c0_222] : memref<3568x64xf32, #tpu.memory_space<vmem>>, vector<1x60xf32>
    %cst_223 = arith.constant dense<0.000000e+00> : vector<8x60xf32>
    %385 = tpu.matmul %382, %383, %cst_223 {dimension_numbers = #tpu.dot_dimension_numbers<[1], [0], [0], [1], [0, 0, 1, 1], [], []>} : vector<8x128xf32>, vector<128x60xf32>, vector<8x60xf32> -> vector<8x60xf32>
    %386 = vector.broadcast %384 : vector<1x60xf32> to vector<8x60xf32>
    %387 = arith.addf %385, %386 : vector<8x60xf32>
    %cst_224 = arith.constant dense<0xFF800000> : vector<8xf32>
    %388 = vector.multi_reduction <maximumf>, %387, %cst_224 [1] : vector<8x60xf32> to vector<8xf32>
    %389 = vector.shape_cast %388 : vector<8xf32> to vector<8x1xf32>
    %390 = vector.broadcast %389 : vector<8x1xf32> to vector<8x60xf32>
    %391 = arith.subf %387, %390 : vector<8x60xf32>
    %392 = math.exp %391 : vector<8x60xf32>
    %c64_225 = arith.constant 64 : index
    %c0_226 = arith.constant 0 : index
    %393 = vector.load %arg2[%c64_225, %c0_226] : memref<3568x64xf32, #tpu.memory_space<vmem>>, vector<60x60xf32>
    %cst_227 = arith.constant dense<0.000000e+00> : vector<8x60xf32>
    %394 = tpu.matmul %392, %393, %cst_227 {dimension_numbers = #tpu.dot_dimension_numbers<[1], [0], [0], [1], [0, 0, 1, 1], [], []>} : vector<8x60xf32>, vector<60x60xf32>, vector<8x60xf32> -> vector<8x60xf32>
    %395 = tpu.reciprocal %394 {approx = true} : vector<8x60xf32> -> vector<8x60xf32>
    %396 = arith.mulf %392, %395 : vector<8x60xf32>
    %397 = arith.mulf %368, %396 : vector<8x60xf32>
    %c1104 = arith.constant 1104 : index
    %c0_228 = arith.constant 0 : index
    %398 = vector.load %arg1[%c1104, %c0_228] : memref<1904x128xf32, #tpu.memory_space<vmem>>, vector<60x128xf32>
    %c1164 = arith.constant 1164 : index
    %c0_229 = arith.constant 0 : index
    %399 = vector.load %arg1[%c1164, %c0_229] : memref<1904x128xf32, #tpu.memory_space<vmem>>, vector<1x128xf32>
    %cst_230 = arith.constant dense<0.000000e+00> : vector<8x128xf32>
    %400 = tpu.matmul %397, %398, %cst_230 {dimension_numbers = #tpu.dot_dimension_numbers<[1], [0], [0], [1], [0, 0, 1, 1], [], []>} : vector<8x60xf32>, vector<60x128xf32>, vector<8x128xf32> -> vector<8x128xf32>
    %401 = vector.broadcast %399 : vector<1x128xf32> to vector<8x128xf32>
    %402 = arith.addf %400, %401 : vector<8x128xf32>
    %cst_231 = arith.constant 0.000000e+00 : f32
    %403 = vector.broadcast %cst_231 : f32 to vector<8x128xf32>
    %404 = arith.maximumf %402, %403 : vector<8x128xf32>
    %c1168 = arith.constant 1168 : index
    %c0_232 = arith.constant 0 : index
    %405 = vector.load %arg1[%c1168, %c0_232] : memref<1904x128xf32, #tpu.memory_space<vmem>>, vector<128x128xf32>
    %c1296 = arith.constant 1296 : index
    %c0_233 = arith.constant 0 : index
    %406 = vector.load %arg1[%c1296, %c0_233] : memref<1904x128xf32, #tpu.memory_space<vmem>>, vector<1x128xf32>
    %cst_234 = arith.constant dense<0.000000e+00> : vector<8x128xf32>
    %407 = tpu.matmul %404, %405, %cst_234 {dimension_numbers = #tpu.dot_dimension_numbers<[1], [0], [0], [1], [0, 0, 1, 1], [], []>} : vector<8x128xf32>, vector<128x128xf32>, vector<8x128xf32> -> vector<8x128xf32>
    %408 = vector.broadcast %406 : vector<1x128xf32> to vector<8x128xf32>
    %409 = arith.addf %407, %408 : vector<8x128xf32>
    %cst_235 = arith.constant 0.000000e+00 : f32
    %410 = vector.broadcast %cst_235 : f32 to vector<8x128xf32>
    %411 = arith.maximumf %409, %410 : vector<8x128xf32>
    %c2928 = arith.constant 2928 : index
    %c0_236 = arith.constant 0 : index
    %412 = vector.load %arg2[%c2928, %c0_236] : memref<3568x64xf32, #tpu.memory_space<vmem>>, vector<128x60xf32>
    %c3056 = arith.constant 3056 : index
    %c0_237 = arith.constant 0 : index
    %413 = vector.load %arg2[%c3056, %c0_237] : memref<3568x64xf32, #tpu.memory_space<vmem>>, vector<1x60xf32>
    %cst_238 = arith.constant dense<0.000000e+00> : vector<8x60xf32>
    %414 = tpu.matmul %411, %412, %cst_238 {dimension_numbers = #tpu.dot_dimension_numbers<[1], [0], [0], [1], [0, 0, 1, 1], [], []>} : vector<8x128xf32>, vector<128x60xf32>, vector<8x60xf32> -> vector<8x60xf32>
    %415 = vector.broadcast %413 : vector<1x60xf32> to vector<8x60xf32>
    %416 = arith.addf %414, %415 : vector<8x60xf32>
    %417 = arith.addf %397, %416 : vector<8x60xf32>
    %c1304 = arith.constant 1304 : index
    %c0_239 = arith.constant 0 : index
    %418 = vector.load %arg1[%c1304, %c0_239] : memref<1904x128xf32, #tpu.memory_space<vmem>>, vector<60x128xf32>
    %c1364 = arith.constant 1364 : index
    %c0_240 = arith.constant 0 : index
    %419 = vector.load %arg1[%c1364, %c0_240] : memref<1904x128xf32, #tpu.memory_space<vmem>>, vector<1x128xf32>
    %cst_241 = arith.constant dense<0.000000e+00> : vector<8x128xf32>
    %420 = tpu.matmul %417, %418, %cst_241 {dimension_numbers = #tpu.dot_dimension_numbers<[1], [0], [0], [1], [0, 0, 1, 1], [], []>} : vector<8x60xf32>, vector<60x128xf32>, vector<8x128xf32> -> vector<8x128xf32>
    %421 = vector.broadcast %419 : vector<1x128xf32> to vector<8x128xf32>
    %422 = arith.addf %420, %421 : vector<8x128xf32>
    %cst_242 = arith.constant 0.000000e+00 : f32
    %423 = vector.broadcast %cst_242 : f32 to vector<8x128xf32>
    %424 = arith.maximumf %422, %423 : vector<8x128xf32>
    %c1368 = arith.constant 1368 : index
    %c0_243 = arith.constant 0 : index
    %425 = vector.load %arg1[%c1368, %c0_243] : memref<1904x128xf32, #tpu.memory_space<vmem>>, vector<128x128xf32>
    %c1496 = arith.constant 1496 : index
    %c0_244 = arith.constant 0 : index
    %426 = vector.load %arg1[%c1496, %c0_244] : memref<1904x128xf32, #tpu.memory_space<vmem>>, vector<1x128xf32>
    %cst_245 = arith.constant dense<0.000000e+00> : vector<8x128xf32>
    %427 = tpu.matmul %424, %425, %cst_245 {dimension_numbers = #tpu.dot_dimension_numbers<[1], [0], [0], [1], [0, 0, 1, 1], [], []>} : vector<8x128xf32>, vector<128x128xf32>, vector<8x128xf32> -> vector<8x128xf32>
    %428 = vector.broadcast %426 : vector<1x128xf32> to vector<8x128xf32>
    %429 = arith.addf %427, %428 : vector<8x128xf32>
    %cst_246 = arith.constant 0.000000e+00 : f32
    %430 = vector.broadcast %cst_246 : f32 to vector<8x128xf32>
    %431 = arith.maximumf %429, %430 : vector<8x128xf32>
    %c3064 = arith.constant 3064 : index
    %c0_247 = arith.constant 0 : index
    %432 = vector.load %arg2[%c3064, %c0_247] : memref<3568x64xf32, #tpu.memory_space<vmem>>, vector<128x60xf32>
    %c3192 = arith.constant 3192 : index
    %c0_248 = arith.constant 0 : index
    %433 = vector.load %arg2[%c3192, %c0_248] : memref<3568x64xf32, #tpu.memory_space<vmem>>, vector<1x60xf32>
    %cst_249 = arith.constant dense<0.000000e+00> : vector<8x60xf32>
    %434 = tpu.matmul %431, %432, %cst_249 {dimension_numbers = #tpu.dot_dimension_numbers<[1], [0], [0], [1], [0, 0, 1, 1], [], []>} : vector<8x128xf32>, vector<128x60xf32>, vector<8x60xf32> -> vector<8x60xf32>
    %435 = vector.broadcast %433 : vector<1x60xf32> to vector<8x60xf32>
    %436 = arith.addf %434, %435 : vector<8x60xf32>
    %437 = arith.addf %417, %436 : vector<8x60xf32>
    %c1504 = arith.constant 1504 : index
    %c0_250 = arith.constant 0 : index
    %438 = vector.load %arg1[%c1504, %c0_250] : memref<1904x128xf32, #tpu.memory_space<vmem>>, vector<60x128xf32>
    %c1564 = arith.constant 1564 : index
    %c0_251 = arith.constant 0 : index
    %439 = vector.load %arg1[%c1564, %c0_251] : memref<1904x128xf32, #tpu.memory_space<vmem>>, vector<1x128xf32>
    %cst_252 = arith.constant dense<0.000000e+00> : vector<8x128xf32>
    %440 = tpu.matmul %437, %438, %cst_252 {dimension_numbers = #tpu.dot_dimension_numbers<[1], [0], [0], [1], [0, 0, 1, 1], [], []>} : vector<8x60xf32>, vector<60x128xf32>, vector<8x128xf32> -> vector<8x128xf32>
    %441 = vector.broadcast %439 : vector<1x128xf32> to vector<8x128xf32>
    %442 = arith.addf %440, %441 : vector<8x128xf32>
    %cst_253 = arith.constant 0.000000e+00 : f32
    %443 = vector.broadcast %cst_253 : f32 to vector<8x128xf32>
    %444 = arith.maximumf %442, %443 : vector<8x128xf32>
    %c1568 = arith.constant 1568 : index
    %c0_254 = arith.constant 0 : index
    %445 = vector.load %arg1[%c1568, %c0_254] : memref<1904x128xf32, #tpu.memory_space<vmem>>, vector<128x128xf32>
    %c1696_255 = arith.constant 1696 : index
    %c0_256 = arith.constant 0 : index
    %446 = vector.load %arg1[%c1696_255, %c0_256] : memref<1904x128xf32, #tpu.memory_space<vmem>>, vector<1x128xf32>
    %cst_257 = arith.constant dense<0.000000e+00> : vector<8x128xf32>
    %447 = tpu.matmul %444, %445, %cst_257 {dimension_numbers = #tpu.dot_dimension_numbers<[1], [0], [0], [1], [0, 0, 1, 1], [], []>} : vector<8x128xf32>, vector<128x128xf32>, vector<8x128xf32> -> vector<8x128xf32>
    %448 = vector.broadcast %446 : vector<1x128xf32> to vector<8x128xf32>
    %449 = arith.addf %447, %448 : vector<8x128xf32>
    %cst_258 = arith.constant 0.000000e+00 : f32
    %450 = vector.broadcast %cst_258 : f32 to vector<8x128xf32>
    %451 = arith.maximumf %449, %450 : vector<8x128xf32>
    %c3200 = arith.constant 3200 : index
    %c0_259 = arith.constant 0 : index
    %452 = vector.load %arg2[%c3200, %c0_259] : memref<3568x64xf32, #tpu.memory_space<vmem>>, vector<128x60xf32>
    %c3328 = arith.constant 3328 : index
    %c0_260 = arith.constant 0 : index
    %453 = vector.load %arg2[%c3328, %c0_260] : memref<3568x64xf32, #tpu.memory_space<vmem>>, vector<1x60xf32>
    %cst_261 = arith.constant dense<0.000000e+00> : vector<8x60xf32>
    %454 = tpu.matmul %451, %452, %cst_261 {dimension_numbers = #tpu.dot_dimension_numbers<[1], [0], [0], [1], [0, 0, 1, 1], [], []>} : vector<8x128xf32>, vector<128x60xf32>, vector<8x60xf32> -> vector<8x60xf32>
    %455 = vector.broadcast %453 : vector<1x60xf32> to vector<8x60xf32>
    %456 = arith.addf %454, %455 : vector<8x60xf32>
    %457 = arith.addf %437, %456 : vector<8x60xf32>
    %c1704 = arith.constant 1704 : index
    %c0_262 = arith.constant 0 : index
    %458 = vector.load %arg1[%c1704, %c0_262] : memref<1904x128xf32, #tpu.memory_space<vmem>>, vector<60x128xf32>
    %c1764 = arith.constant 1764 : index
    %c0_263 = arith.constant 0 : index
    %459 = vector.load %arg1[%c1764, %c0_263] : memref<1904x128xf32, #tpu.memory_space<vmem>>, vector<1x128xf32>
    %cst_264 = arith.constant dense<0.000000e+00> : vector<8x128xf32>
    %460 = tpu.matmul %457, %458, %cst_264 {dimension_numbers = #tpu.dot_dimension_numbers<[1], [0], [0], [1], [0, 0, 1, 1], [], []>} : vector<8x60xf32>, vector<60x128xf32>, vector<8x128xf32> -> vector<8x128xf32>
    %461 = vector.broadcast %459 : vector<1x128xf32> to vector<8x128xf32>
    %462 = arith.addf %460, %461 : vector<8x128xf32>
    %cst_265 = arith.constant 0.000000e+00 : f32
    %463 = vector.broadcast %cst_265 : f32 to vector<8x128xf32>
    %464 = arith.maximumf %462, %463 : vector<8x128xf32>
    %c1768 = arith.constant 1768 : index
    %c0_266 = arith.constant 0 : index
    %465 = vector.load %arg1[%c1768, %c0_266] : memref<1904x128xf32, #tpu.memory_space<vmem>>, vector<128x128xf32>
    %c1896 = arith.constant 1896 : index
    %c0_267 = arith.constant 0 : index
    %466 = vector.load %arg1[%c1896, %c0_267] : memref<1904x128xf32, #tpu.memory_space<vmem>>, vector<1x128xf32>
    %cst_268 = arith.constant dense<0.000000e+00> : vector<8x128xf32>
    %467 = tpu.matmul %464, %465, %cst_268 {dimension_numbers = #tpu.dot_dimension_numbers<[1], [0], [0], [1], [0, 0, 1, 1], [], []>} : vector<8x128xf32>, vector<128x128xf32>, vector<8x128xf32> -> vector<8x128xf32>
    %468 = vector.broadcast %466 : vector<1x128xf32> to vector<8x128xf32>
    %469 = arith.addf %467, %468 : vector<8x128xf32>
    %cst_269 = arith.constant 0.000000e+00 : f32
    %470 = vector.broadcast %cst_269 : f32 to vector<8x128xf32>
    %471 = arith.maximumf %469, %470 : vector<8x128xf32>
    %c3336 = arith.constant 3336 : index
    %c0_270 = arith.constant 0 : index
    %472 = vector.load %arg2[%c3336, %c0_270] : memref<3568x64xf32, #tpu.memory_space<vmem>>, vector<128x60xf32>
    %c3464 = arith.constant 3464 : index
    %c0_271 = arith.constant 0 : index
    %473 = vector.load %arg2[%c3464, %c0_271] : memref<3568x64xf32, #tpu.memory_space<vmem>>, vector<1x60xf32>
    %cst_272 = arith.constant dense<0.000000e+00> : vector<8x60xf32>
    %474 = tpu.matmul %471, %472, %cst_272 {dimension_numbers = #tpu.dot_dimension_numbers<[1], [0], [0], [1], [0, 0, 1, 1], [], []>} : vector<8x128xf32>, vector<128x60xf32>, vector<8x60xf32> -> vector<8x60xf32>
    %475 = vector.broadcast %473 : vector<1x60xf32> to vector<8x60xf32>
    %476 = arith.addf %474, %475 : vector<8x60xf32>
    %477 = arith.addf %457, %476 : vector<8x60xf32>
    %c160_273 = arith.constant 160 : index
    %c0_274 = arith.constant 0 : index
    %478 = vector.load %arg2[%c160_273, %c0_274] : memref<3568x64xf32, #tpu.memory_space<vmem>>, vector<60x15xf32>
    %cst_275 = arith.constant dense<0.000000e+00> : vector<8x15xf32>
    %479 = tpu.matmul %397, %478, %cst_275 {dimension_numbers = #tpu.dot_dimension_numbers<[1], [0], [0], [1], [0, 0, 1, 1], [], []>} : vector<8x60xf32>, vector<60x15xf32>, vector<8x15xf32> -> vector<8x15xf32>
    %c224_276 = arith.constant 224 : index
    %c0_277 = arith.constant 0 : index
    %480 = vector.load %arg2[%c224_276, %c0_277] : memref<3568x64xf32, #tpu.memory_space<vmem>>, vector<60x15xf32>
    %cst_278 = arith.constant dense<0.000000e+00> : vector<8x15xf32>
    %481 = tpu.matmul %477, %480, %cst_278 {dimension_numbers = #tpu.dot_dimension_numbers<[1], [0], [0], [1], [0, 0, 1, 1], [], []>} : vector<8x60xf32>, vector<60x15xf32>, vector<8x15xf32> -> vector<8x15xf32>
    %482 = arith.addf %479, %481 : vector<8x15xf32>
    %483 = arith.addf %253, %366 : vector<8x15xf32>
    %484 = arith.addf %483, %482 : vector<8x15xf32>
    %c3472 = arith.constant 3472 : index
    %c0_279 = arith.constant 0 : index
    %485 = vector.load %arg2[%c3472, %c0_279] : memref<3568x64xf32, #tpu.memory_space<vmem>>, vector<15x32xf32>
    %c3487 = arith.constant 3487 : index
    %c0_280 = arith.constant 0 : index
    %486 = vector.load %arg2[%c3487, %c0_280] : memref<3568x64xf32, #tpu.memory_space<vmem>>, vector<1x32xf32>
    %cst_281 = arith.constant dense<0.000000e+00> : vector<8x32xf32>
    %487 = tpu.matmul %484, %485, %cst_281 {dimension_numbers = #tpu.dot_dimension_numbers<[1], [0], [0], [1], [0, 0, 1, 1], [], []>} : vector<8x15xf32>, vector<15x32xf32>, vector<8x32xf32> -> vector<8x32xf32>
    %488 = vector.broadcast %486 : vector<1x32xf32> to vector<8x32xf32>
    %489 = arith.addf %487, %488 : vector<8x32xf32>
    %cst_282 = arith.constant 0.000000e+00 : f32
    %490 = vector.broadcast %cst_282 : f32 to vector<8x32xf32>
    %491 = arith.maximumf %489, %490 : vector<8x32xf32>
    %c3488 = arith.constant 3488 : index
    %c0_283 = arith.constant 0 : index
    %492 = vector.load %arg2[%c3488, %c0_283] : memref<3568x64xf32, #tpu.memory_space<vmem>>, vector<32x32xf32>
    %c3520 = arith.constant 3520 : index
    %c0_284 = arith.constant 0 : index
    %493 = vector.load %arg2[%c3520, %c0_284] : memref<3568x64xf32, #tpu.memory_space<vmem>>, vector<1x32xf32>
    %cst_285 = arith.constant dense<0.000000e+00> : vector<8x32xf32>
    %494 = tpu.matmul %491, %492, %cst_285 {dimension_numbers = #tpu.dot_dimension_numbers<[1], [0], [0], [1], [0, 0, 1, 1], [], []>} : vector<8x32xf32>, vector<32x32xf32>, vector<8x32xf32> -> vector<8x32xf32>
    %495 = vector.broadcast %493 : vector<1x32xf32> to vector<8x32xf32>
    %496 = arith.addf %494, %495 : vector<8x32xf32>
    %cst_286 = arith.constant 0.000000e+00 : f32
    %497 = vector.broadcast %cst_286 : f32 to vector<8x32xf32>
    %498 = arith.maximumf %496, %497 : vector<8x32xf32>
    %c3528 = arith.constant 3528 : index
    %c0_287 = arith.constant 0 : index
    %499 = vector.load %arg2[%c3528, %c0_287] : memref<3568x64xf32, #tpu.memory_space<vmem>>, vector<32x15xf32>
    %c3560 = arith.constant 3560 : index
    %c0_288 = arith.constant 0 : index
    %500 = vector.load %arg2[%c3560, %c0_288] : memref<3568x64xf32, #tpu.memory_space<vmem>>, vector<1x15xf32>
    %cst_289 = arith.constant dense<0.000000e+00> : vector<8x15xf32>
    %501 = tpu.matmul %498, %499, %cst_289 {dimension_numbers = #tpu.dot_dimension_numbers<[1], [0], [0], [1], [0, 0, 1, 1], [], []>} : vector<8x32xf32>, vector<32x15xf32>, vector<8x15xf32> -> vector<8x15xf32>
    %502 = vector.broadcast %500 : vector<1x15xf32> to vector<8x15xf32>
    %503 = arith.addf %501, %502 : vector<8x15xf32>
    %504 = arith.addf %484, %503 : vector<8x15xf32>
    %505 = vector.extract_strided_slice %504 {offsets = [0, 0], sizes = [8, 10], strides = [1, 1]} : vector<8x15xf32> to vector<8x10xf32>
    %c0_290 = arith.constant 0 : index
    %c0_291 = arith.constant 0 : index
    %506 = vector.load %arg3[%c0_290, %c0_291] : memref<8x10xf32, #tpu.memory_space<vmem>>, vector<8x10xf32>
    tpu.vector_store %arg3[%c0_290, %c0_291], %505 {strides = array<i32>} : memref<8x10xf32, #tpu.memory_space<vmem>>, vector<8x10xf32>,
    %507 = vector.extract_strided_slice %504 {offsets = [0, 10], sizes = [8, 5], strides = [1, 1]} : vector<8x15xf32> to vector<8x5xf32>
    %c0_292 = arith.constant 0 : index
    %c0_293 = arith.constant 0 : index
    %508 = vector.load %arg4[%c0_292, %c0_293] : memref<8x5xf32, #tpu.memory_space<vmem>>, vector<8x5xf32>
    tpu.vector_store %arg4[%c0_292, %c0_293], %507 {strides = array<i32>} : memref<8x5xf32, #tpu.memory_space<vmem>>, vector<8x5xf32>,
    return
  }
}

</mosaic_0001>

<llo_original>
// kernel: _lambda_.1
$region0: #{_lambda_.1}
  #allocation0 [shape = 'u32[]', space=smem, size = 0x4, offset = 0x4, fixed_abs, tag = 'smem constant byte address 0x4 - core index']
  #allocation1 [shape = 'u32[72,128]{1,0:T(1,128)}', space=vmem, size = 0x9000, scoped, tag = 'internal scratch']
  %s0 = inlined_call_operand.vmem [shape: f32[8,10], index: 0, kind: input, shape index: {}]
  %s1 = inlined_call_operand.vmem [shape: f32[1904,128], index: 1, kind: input, shape index: {}]
  %s2 = inlined_call_operand.vmem [shape: f32[3568,64], index: 2, kind: input, shape index: {}]
  %s3 = inlined_call_operand.hbm [shape: f32[8,10], index: 3, kind: output, shape index: {0}]
  %s4 = inlined_call_operand.hbm [shape: f32[8,5], index: 4, kind: output, shape index: {1}]
  %5 = xla_tuple %s3, %s4
  %s6 = sld [smem:[#allocation0]]
  $region30: #{_lambda_.1} parent=0
    _
  %s8 = ssub.s32 1, %s6
  %s9 = scalar_select 0, %s8, %s6
  $region1: #{_lambda_.1} parent=0
    #allocation2 [shape = 'u8[4096]{0}', space=vmem, size = 0x1000, scoped, tag = 'output window, operand 0, single buffered']
    #allocation3 [shape = 's32[1]{0}', space=sflag, size = 0x4, scoped, tag = 'scoped memory for _lambda_.1']
    #allocation4 [shape = 'u8[4096]{0}', space=vmem, size = 0x1000, scoped, tag = 'output window, operand 1, single buffered']
    #allocation5 [shape = 's32[1]{0}', space=sflag, size = 0x4, scoped, tag = 'scoped memory for _lambda_.1']
    %10 = vsyncpa [#allocation3], 0
    %11 = vsyncpa [#allocation5], 0
    // Predicated region
    $region2: #{_lambda_.1} parent=1 // pred_check
      _
    $region3: #{_lambda_.1} parent=1 // pred_check_branch
      %13 = sbr.rel (0) target = $region5
    $region4: #{_lambda_.1} parent=1 // pred_region
      _
    $region5: #{_lambda_.1} parent=1 // pred_fallthru
      _
    // Predicated region
    $region6: #{_lambda_.1} parent=1 // pred_check
      _
    $region7: #{_lambda_.1} parent=1 // pred_check_branch
      %15 = sbr.rel (0) target = $region9
    $region8: #{_lambda_.1} parent=1 // pred_region
      _
    $region9: #{_lambda_.1} parent=1 // pred_fallthru
      _
    // Predicated region
    $region10: #{_lambda_.1} parent=1 // pred_check
      _
    $region11: #{_lambda_.1} parent=1 // pred_check_branch
      %17 = sbr.rel (0) target = $region13
    $region12: #{_lambda_.1} parent=1 // pred_region
      _
    $region13: #{_lambda_.1} parent=1 // pred_fallthru
      _
    %v18 = vld [vmem:[%s0] sm:$0xff]
    %vm19 = vcmask 80896
    %v20 = vsel %vm19, %v18, 0.0
    %v21 = vld [vmem:[%s2] sm:$0xff]
    %v22 = vld [vmem:[%s2 + $0x8] sm:$0x7f]
    %vm23 = vcmask 121856
    %v25 = vsel %vm23, %v20, 0
    %vm27 = vcmask 1046528
    %v29 = vsel %vm27, %v22, 0
    %31 = vmatpush.msra.mxu0 0.0
    %32 = vmatpush.msra.mxu0 0.0
    %33 = vmatpush.msra.mxu0 0.0
    %34 = vmatpush.msra.mxu0 0.0
    %35 = vmatpush.msra.mxu0 0.0
    %36 = vmatpush.msra.mxu0 0.0
    %37 = vmatpush.msra.mxu0 0.0
    %38 = vmatpush.msra.mxu0 0.0
    %39 = vmatpush.msra.mxu0 0.0
    %40 = vmatpush.msra.mxu0 0.0
    %41 = vmatpush.msra.mxu0 0.0
    %42 = vmatpush.msra.mxu0 0.0
    %43 = vmatpush.msra.mxu0 0.0
    %44 = vmatpush.msra.mxu0 0.0
    %45 = vmatpush.msra.mxu0 %v29
    %46 = vmatpush.msra.mxu0 %v21
    %47 = vmatmul.f32.gmra.mxu0 %v25
    %v48 = vpop.f32.mrf.mxu0
    %v49 = vadd.f32 0.0, %v48
    %50 = vdwg.mxu0
    %v51 = vld [vmem:[%s2 + $0x120] sm:$0xff]
    %v52 = vld [vmem:[%s2 + $0x128] sm:$0x7f]
    %v53 = vld [vmem:[%s2 + $0x12f] sm:$0x1]
    %v54 = vperm.slane %v53, 0
    %v56 = vsel %vm27, %v52, 0
    %58 = vmatpush.msra.mxu0 0.0
    %59 = vmatpush.msra.mxu0 0.0
    %60 = vmatpush.msra.mxu0 0.0
    %61 = vmatpush.msra.mxu0 0.0
    %62 = vmatpush.msra.mxu0 0.0
    %63 = vmatpush.msra.mxu0 0.0
    %64 = vmatpush.msra.mxu0 0.0
    %65 = vmatpush.msra.mxu0 0.0
    %66 = vmatpush.msra.mxu0 0.0
    %67 = vmatpush.msra.mxu0 0.0
    %68 = vmatpush.msra.mxu0 0.0
    %69 = vmatpush.msra.mxu0 0.0
    %70 = vmatpush.msra.mxu0 0.0
    %71 = vmatpush.msra.mxu0 0.0
    %72 = vmatpush.msra.mxu0 %v56
    %73 = vmatpush.msra.mxu0 %v51
    %74 = vmatmul.f32.gmra.mxu0 %v25
    %v75 = vpop.f32.mrf.mxu0
    %v76 = vadd.f32 %v54, %v75
    %77 = vdwg.mxu0
    %v78 = vmax.f32 %v76, 0.0
    %v79 = vld [vmem:[%s2 + $0x130] sm:$0xff]
    %v80 = vld [vmem:[%s2 + $0x138] sm:$0xff]
    %v81 = vld [vmem:[%s2 + $0x140] sm:$0xff]
    %v82 = vld [vmem:[%s2 + $0x148] sm:$0xff]
    %v83 = vld [vmem:[%s2 + $0x150] sm:$0xff]
    %v84 = vld [vmem:[%s2 + $0x158] sm:$0xff]
    %v85 = vld [vmem:[%s2 + $0x160] sm:$0xff]
    %v86 = vld [vmem:[%s2 + $0x168] sm:$0xff]
    %v87 = vld [vmem:[%s2 + $0x170] sm:$0x1]
    %v88 = vperm.slane %v87, 0
    %vm89 = vcmask 523264
    %v91 = vsel %vm89, %v78, 0
    %93 = vmatpush.msra.mxu0 0.0
    %94 = vmatpush.msra.mxu0 0.0
    %95 = vmatpush.msra.mxu0 0.0
    %96 = vmatpush.msra.mxu0 0.0
    %97 = vmatpush.msra.mxu0 0.0
    %98 = vmatpush.msra.mxu0 0.0
    %99 = vmatpush.msra.mxu0 0.0
    %100 = vmatpush.msra.mxu0 0.0
    %101 = vmatpush.msra.mxu0 %v86
    %102 = vmatpush.msra.mxu0 %v85
    %103 = vmatpush.msra.mxu0 %v84
    %104 = vmatpush.msra.mxu0 %v83
    %105 = vmatpush.msra.mxu0 %v82
    %106 = vmatpush.msra.mxu0 %v81
    %107 = vmatpush.msra.mxu0 %v80
    %108 = vmatpush.msra.mxu0 %v79
    %109 = vmatmul.f32.gmra.mxu0 %v91
    %v110 = vpop.f32.mrf.mxu0
    %v111 = vadd.f32 %v88, %v110
    %112 = vdwg.mxu0
    %v113 = vmax.f32 %v111, 0.0
    %v114 = vld [vmem:[%s2 + $0x178] sm:$0xff]
    %v115 = vld [vmem:[%s2 + $0x180] sm:$0xff]
    %v116 = vld [vmem:[%s2 + $0x188] sm:$0xff]
    %v117 = vld [vmem:[%s2 + $0x190] sm:$0xff]
    %v118 = vld [vmem:[%s2 + $0x198] sm:$0xff]
    %v119 = vld [vmem:[%s2 + $0x1a0] sm:$0xff]
    %v120 = vld [vmem:[%s2 + $0x1a8] sm:$0xff]
    %v121 = vld [vmem:[%s2 + $0x1b0] sm:$0xff]
    %v122 = vld [vmem:[%s2 + $0x1b8] sm:$0x1]
    %v123 = vperm.slane %v122, 0
    %v125 = vsel %vm89, %v113, 0
    %127 = vmatpush.msra.mxu0 0.0
    %128 = vmatpush.msra.mxu0 0.0
    %129 = vmatpush.msra.mxu0 0.0
    %130 = vmatpush.msra.mxu0 0.0
    %131 = vmatpush.msra.mxu0 0.0
    %132 = vmatpush.msra.mxu0 0.0
    %133 = vmatpush.msra.mxu0 0.0
    %134 = vmatpush.msra.mxu0 0.0
    %135 = vmatpush.msra.mxu0 %v121
    %136 = vmatpush.msra.mxu0 %v120
    %137 = vmatpush.msra.mxu0 %v119
    %138 = vmatpush.msra.mxu0 %v118
    %139 = vmatpush.msra.mxu0 %v117
    %140 = vmatpush.msra.mxu0 %v116
    %141 = vmatpush.msra.mxu0 %v115
    %142 = vmatpush.msra.mxu0 %v114
    %143 = vmatmul.f32.gmra.mxu0 %v125
    %v144 = vpop.f32.mrf.mxu0
    %v145 = vadd.f32 %v123, %v144
    %146 = vdwg.mxu0
    %vm147 = vcmask 244736
    %v148 = vsel %vm147, %v145, -inf
    %149 = vmax.xlane.f32.xlu0 %v148
    %v150 = vpop.xlane.xlu0 %149
    %v151 = vsub.f32 %v145, %v150
    %v152 = vmul.f32 %v151, 1.442695
    %v153 = vpow.pop %v152
    %v154 = vld [vmem:[%s2 + $0x20] sm:$0xff]
    %v155 = vld [vmem:[%s2 + $0x28] sm:$0xff]
    %v156 = vld [vmem:[%s2 + $0x30] sm:$0xff]
    %v157 = vld [vmem:[%s2 + $0x38] sm:$0x3f]
    %v159 = vsel %vm147, %v153, 0
    %vm161 = vcmask 1045504
    %v163 = vsel %vm161, %v157, 0
    %165 = vmatpush.msra.mxu0 0.0
    %166 = vmatpush.msra.mxu0 0.0
    %167 = vmatpush.msra.mxu0 0.0
    %168 = vmatpush.msra.mxu0 0.0
    %169 = vmatpush.msra.mxu0 0.0
    %170 = vmatpush.msra.mxu0 0.0
    %171 = vmatpush.msra.mxu0 0.0
    %172 = vmatpush.msra.mxu0 0.0
    %173 = vmatpush.msra.mxu0 0.0
    %174 = vmatpush.msra.mxu0 0.0
    %175 = vmatpush.msra.mxu0 0.0
    %176 = vmatpush.msra.mxu0 0.0
    %177 = vmatpush.msra.mxu0 %v163
    %178 = vmatpush.msra.mxu0 %v156
    %179 = vmatpush.msra.mxu0 %v155
    %180 = vmatpush.msra.mxu0 %v154
    %181 = vmatmul.f32.gmra.mxu0 %v159
    %v182 = vpop.f32.mrf.mxu0
    %v183 = vadd.f32 0.0, %v182
    %184 = vdwg.mxu0
    %v185 = vrcp.pop %v183
    %v186 = vmul.f32 %v153, %v185
    %v187 = vmul.f32 %v49, %v186
    %v188 = vld [vmem:[%s2 + $0x1c0] sm:$0xff]
    %v189 = vld [vmem:[%s2 + $0x1c8] sm:$0xff]
    %v190 = vld [vmem:[%s2 + $0x1d0] sm:$0xff]
    %v191 = vld [vmem:[%s2 + $0x1d8] sm:$0x3f]
    %v192 = vld [vmem:[%s2 + $0x1de] sm:$0x1]
    %v193 = vperm.slane %v192, 0
    %v195 = vsel %vm147, %v187, 0
    %v198 = vsel %vm161, %v191, 0
    %200 = vmatpush.msra.mxu0 0.0
    %201 = vmatpush.msra.mxu0 0.0
    %202 = vmatpush.msra.mxu0 0.0
    %203 = vmatpush.msra.mxu0 0.0
    %204 = vmatpush.msra.mxu0 0.0
    %205 = vmatpush.msra.mxu0 0.0
    %206 = vmatpush.msra.mxu0 0.0
    %207 = vmatpush.msra.mxu0 0.0
    %208 = vmatpush.msra.mxu0 0.0
    %209 = vmatpush.msra.mxu0 0.0
    %210 = vmatpush.msra.mxu0 0.0
    %211 = vmatpush.msra.mxu0 0.0
    %212 = vmatpush.msra.mxu0 %v198
    %213 = vmatpush.msra.mxu0 %v190
    %214 = vmatpush.msra.mxu0 %v189
    %215 = vmatpush.msra.mxu0 %v188
    %216 = vmatmul.f32.gmra.mxu0 %v195
    %v217 = vpop.f32.mrf.mxu0
    %v218 = vadd.f32 %v193, %v217
    %219 = vdwg.mxu0
    %v220 = vmax.f32 %v218, 0.0
    %v221 = vld [vmem:[%s2 + $0x1e0] sm:$0xff]
    %v222 = vld [vmem:[%s2 + $0x1e8] sm:$0xff]
    %v223 = vld [vmem:[%s2 + $0x1f0] sm:$0xff]
    %v224 = vld [vmem:[%s2 + $0x1f8] sm:$0xff]
    %v225 = vld [vmem:[%s2 + $0x200] sm:$0xff]
    %v226 = vld [vmem:[%s2 + $0x208] sm:$0xff]
    %v227 = vld [vmem:[%s2 + $0x210] sm:$0xff]
    %v228 = vld [vmem:[%s2 + $0x218] sm:$0xff]
    %v229 = vld [vmem:[%s2 + $0x220] sm:$0x1]
    %v230 = vperm.slane %v229, 0
    %v232 = vsel %vm89, %v220, 0
    %234 = vmatpush.msra.mxu0 0.0
    %235 = vmatpush.msra.mxu0 0.0
    %236 = vmatpush.msra.mxu0 0.0
    %237 = vmatpush.msra.mxu0 0.0
    %238 = vmatpush.msra.mxu0 0.0
    %239 = vmatpush.msra.mxu0 0.0
    %240 = vmatpush.msra.mxu0 0.0
    %241 = vmatpush.msra.mxu0 0.0
    %242 = vmatpush.msra.mxu0 %v228
    %243 = vmatpush.msra.mxu0 %v227
    %244 = vmatpush.msra.mxu0 %v226
    %245 = vmatpush.msra.mxu0 %v225
    %246 = vmatpush.msra.mxu0 %v224
    %247 = vmatpush.msra.mxu0 %v223
    %248 = vmatpush.msra.mxu0 %v222
    %249 = vmatpush.msra.mxu0 %v221
    %250 = vmatmul.f32.gmra.mxu0 %v232
    %v251 = vpop.f32.mrf.mxu0
    %v252 = vadd.f32 %v230, %v251
    %253 = vdwg.mxu0
    %v254 = vmax.f32 %v252, 0.0
    %v255 = vld [vmem:[%s2 + $0x228] sm:$0xff]
    %v256 = vld [vmem:[%s2 + $0x230] sm:$0xff]
    %v257 = vld [vmem:[%s2 + $0x238] sm:$0xff]
    %v258 = vld [vmem:[%s2 + $0x240] sm:$0xff]
    %v259 = vld [vmem:[%s2 + $0x248] sm:$0xff]
    %v260 = vld [vmem:[%s2 + $0x250] sm:$0xff]
    %v261 = vld [vmem:[%s2 + $0x258] sm:$0xff]
    %v262 = vld [vmem:[%s2 + $0x260] sm:$0xff]
    %v263 = vld [vmem:[%s2 + $0x268] sm:$0x1]
    %v264 = vperm.slane %v263, 0
    %v266 = vsel %vm89, %v254, 0
    %268 = vmatpush.msra.mxu0 0.0
    %269 = vmatpush.msra.mxu0 0.0
    %270 = vmatpush.msra.mxu0 0.0
    %271 = vmatpush.msra.mxu0 0.0
    %272 = vmatpush.msra.mxu0 0.0
    %273 = vmatpush.msra.mxu0 0.0
    %274 = vmatpush.msra.mxu0 0.0
    %275 = vmatpush.msra.mxu0 0.0
    %276 = vmatpush.msra.mxu0 %v262
    %277 = vmatpush.msra.mxu0 %v261
    %278 = vmatpush.msra.mxu0 %v260
    %279 = vmatpush.msra.mxu0 %v259
    %280 = vmatpush.msra.mxu0 %v258
    %281 = vmatpush.msra.mxu0 %v257
    %282 = vmatpush.msra.mxu0 %v256
    %283 = vmatpush.msra.mxu0 %v255
    %284 = vmatmul.f32.gmra.mxu0 %v266
    %v285 = vpop.f32.mrf.mxu0
    %v286 = vadd.f32 %v264, %v285
    %287 = vdwg.mxu0
    %v288 = vadd.f32 %v187, %v286
    %v289 = vld [vmem:[%s2 + $0x270] sm:$0xff]
    %v290 = vld [vmem:[%s2 + $0x278] sm:$0xff]
    %v291 = vld [vmem:[%s2 + $0x280] sm:$0xff]
    %v292 = vld [vmem:[%s2 + $0x288] sm:$0x3f]
    %v293 = vld [vmem:[%s2 + $0x28e] sm:$0x1]
    %v294 = vperm.slane %v293, 0
    %v296 = vsel %vm147, %v288, 0
    %v299 = vsel %vm161, %v292, 0
    %301 = vmatpush.msra.mxu0 0.0
    %302 = vmatpush.msra.mxu0 0.0
    %303 = vmatpush.msra.mxu0 0.0
    %304 = vmatpush.msra.mxu0 0.0
    %305 = vmatpush.msra.mxu0 0.0
    %306 = vmatpush.msra.mxu0 0.0
    %307 = vmatpush.msra.mxu0 0.0
    %308 = vmatpush.msra.mxu0 0.0
    %309 = vmatpush.msra.mxu0 0.0
    %310 = vmatpush.msra.mxu0 0.0
    %311 = vmatpush.msra.mxu0 0.0
    %312 = vmatpush.msra.mxu0 0.0
    %313 = vmatpush.msra.mxu0 %v299
    %314 = vmatpush.msra.mxu0 %v291
    %315 = vmatpush.msra.mxu0 %v290
    %316 = vmatpush.msra.mxu0 %v289
    %317 = vmatmul.f32.gmra.mxu0 %v296
    %v318 = vpop.f32.mrf.mxu0
    %v319 = vadd.f32 %v294, %v318
    %320 = vdwg.mxu0
    %v321 = vmax.f32 %v319, 0.0
    %v322 = vld [vmem:[%s2 + $0x290] sm:$0xff]
    %v323 = vld [vmem:[%s2 + $0x298] sm:$0xff]
    %v324 = vld [vmem:[%s2 + $0x2a0] sm:$0xff]
    %v325 = vld [vmem:[%s2 + $0x2a8] sm:$0xff]
    %v326 = vld [vmem:[%s2 + $0x2b0] sm:$0xff]
    %v327 = vld [vmem:[%s2 + $0x2b8] sm:$0xff]
    %v328 = vld [vmem:[%s2 + $0x2c0] sm:$0xff]
    %v329 = vld [vmem:[%s2 + $0x2c8] sm:$0xff]
    %v330 = vld [vmem:[%s2 + $0x2d0] sm:$0x1]
    %v331 = vperm.slane %v330, 0
    %v333 = vsel %vm89, %v321, 0
    %335 = vmatpush.msra.mxu0 0.0
    %336 = vmatpush.msra.mxu0 0.0
    %337 = vmatpush.msra.mxu0 0.0
    %338 = vmatpush.msra.mxu0 0.0
    %339 = vmatpush.msra.mxu0 0.0
    %340 = vmatpush.msra.mxu0 0.0
    %341 = vmatpush.msra.mxu0 0.0
    %342 = vmatpush.msra.mxu0 0.0
    %343 = vmatpush.msra.mxu0 %v329
    %344 = vmatpush.msra.mxu0 %v328
    %345 = vmatpush.msra.mxu0 %v327
    %346 = vmatpush.msra.mxu0 %v326
    %347 = vmatpush.msra.mxu0 %v325
    %348 = vmatpush.msra.mxu0 %v324
    %349 = vmatpush.msra.mxu0 %v323
    %350 = vmatpush.msra.mxu0 %v322
    %351 = vmatmul.f32.gmra.mxu0 %v333
    %v352 = vpop.f32.mrf.mxu0
    %v353 = vadd.f32 %v331, %v352
    %354 = vdwg.mxu0
    %v355 = vmax.f32 %v353, 0.0
    %v356 = vld [vmem:[%s2 + $0x2d8] sm:$0xff]
    %v357 = vld [vmem:[%s2 + $0x2e0] sm:$0xff]
    %v358 = vld [vmem:[%s2 + $0x2e8] sm:$0xff]
    %v359 = vld [vmem:[%s2 + $0x2f0] sm:$0xff]
    %v360 = vld [vmem:[%s2 + $0x2f8] sm:$0xff]
    %v361 = vld [vmem:[%s2 + $0x300] sm:$0xff]
    %v362 = vld [vmem:[%s2 + $0x308] sm:$0xff]
    %v363 = vld [vmem:[%s2 + $0x310] sm:$0xff]
    %v364 = vld [vmem:[%s2 + $0x318] sm:$0x1]
    %v365 = vperm.slane %v364, 0
    %v367 = vsel %vm89, %v355, 0
    %369 = vmatpush.msra.mxu0 0.0
    %370 = vmatpush.msra.mxu0 0.0
    %371 = vmatpush.msra.mxu0 0.0
    %372 = vmatpush.msra.mxu0 0.0
    %373 = vmatpush.msra.mxu0 0.0
    %374 = vmatpush.msra.mxu0 0.0
    %375 = vmatpush.msra.mxu0 0.0
    %376 = vmatpush.msra.mxu0 0.0
    %377 = vmatpush.msra.mxu0 %v363
    %378 = vmatpush.msra.mxu0 %v362
    %379 = vmatpush.msra.mxu0 %v361
    %380 = vmatpush.msra.mxu0 %v360
    %381 = vmatpush.msra.mxu0 %v359
    %382 = vmatpush.msra.mxu0 %v358
    %383 = vmatpush.msra.mxu0 %v357
    %384 = vmatpush.msra.mxu0 %v356
    %385 = vmatmul.f32.gmra.mxu0 %v367
    %v386 = vpop.f32.mrf.mxu0
    %v387 = vadd.f32 %v365, %v386
    %388 = vdwg.mxu0
    %v389 = vadd.f32 %v288, %v387
    %v390 = vld [vmem:[%s2 + $0x320] sm:$0xff]
    %v391 = vld [vmem:[%s2 + $0x328] sm:$0xff]
    %v392 = vld [vmem:[%s2 + $0x330] sm:$0xff]
    %v393 = vld [vmem:[%s2 + $0x338] sm:$0x3f]
    %v394 = vld [vmem:[%s2 + $0x33e] sm:$0x1]
    %v395 = vperm.slane %v394, 0
    %v397 = vsel %vm147, %v389, 0
    %v400 = vsel %vm161, %v393, 0
    %402 = vmatpush.msra.mxu0 0.0
    %403 = vmatpush.msra.mxu0 0.0
    %404 = vmatpush.msra.mxu0 0.0
    %405 = vmatpush.msra.mxu0 0.0
    %406 = vmatpush.msra.mxu0 0.0
    %407 = vmatpush.msra.mxu0 0.0
    %408 = vmatpush.msra.mxu0 0.0
    %409 = vmatpush.msra.mxu0 0.0
    %410 = vmatpush.msra.mxu0 0.0
    %411 = vmatpush.msra.mxu0 0.0
    %412 = vmatpush.msra.mxu0 0.0
    %413 = vmatpush.msra.mxu0 0.0
    %414 = vmatpush.msra.mxu0 %v400
    %415 = vmatpush.msra.mxu0 %v392
    %416 = vmatpush.msra.mxu0 %v391
    %417 = vmatpush.msra.mxu0 %v390
    %418 = vmatmul.f32.gmra.mxu0 %v397
    %v419 = vpop.f32.mrf.mxu0
    %v420 = vadd.f32 %v395, %v419
    %421 = vdwg.mxu0
    %v422 = vmax.f32 %v420, 0.0
    %v423 = vld [vmem:[%s2 + $0x340] sm:$0xff]
    %v424 = vld [vmem:[%s2 + $0x348] sm:$0xff]
    %v425 = vld [vmem:[%s2 + $0x350] sm:$0xff]
    %v426 = vld [vmem:[%s2 + $0x358] sm:$0xff]
    %v427 = vld [vmem:[%s2 + $0x360] sm:$0xff]
    %v428 = vld [vmem:[%s2 + $0x368] sm:$0xff]
    %v429 = vld [vmem:[%s2 + $0x370] sm:$0xff]
    %v430 = vld [vmem:[%s2 + $0x378] sm:$0xff]
    %v431 = vld [vmem:[%s2 + $0x380] sm:$0x1]
    %v432 = vperm.slane %v431, 0
    %v434 = vsel %vm89, %v422, 0
    %436 = vmatpush.msra.mxu0 0.0
    %437 = vmatpush.msra.mxu0 0.0
    %438 = vmatpush.msra.mxu0 0.0
    %439 = vmatpush.msra.mxu0 0.0
    %440 = vmatpush.msra.mxu0 0.0
    %441 = vmatpush.msra.mxu0 0.0
    %442 = vmatpush.msra.mxu0 0.0
    %443 = vmatpush.msra.mxu0 0.0
    %444 = vmatpush.msra.mxu0 %v430
    %445 = vmatpush.msra.mxu0 %v429
    %446 = vmatpush.msra.mxu0 %v428
    %447 = vmatpush.msra.mxu0 %v427
    %448 = vmatpush.msra.mxu0 %v426
    %449 = vmatpush.msra.mxu0 %v425
    %450 = vmatpush.msra.mxu0 %v424
    %451 = vmatpush.msra.mxu0 %v423
    %452 = vmatmul.f32.gmra.mxu0 %v434
    %v453 = vpop.f32.mrf.mxu0
    %v454 = vadd.f32 %v432, %v453
    %455 = vdwg.mxu0
    %v456 = vmax.f32 %v454, 0.0
    %v457 = vld [vmem:[%s2 + $0x388] sm:$0xff]
    %v458 = vld [vmem:[%s2 + $0x390] sm:$0xff]
    %v459 = vld [vmem:[%s2 + $0x398] sm:$0xff]
    %v460 = vld [vmem:[%s2 + $0x3a0] sm:$0xff]
    %v461 = vld [vmem:[%s2 + $0x3a8] sm:$0xff]
    %v462 = vld [vmem:[%s2 + $0x3b0] sm:$0xff]
    %v463 = vld [vmem:[%s2 + $0x3b8] sm:$0xff]
    %v464 = vld [vmem:[%s2 + $0x3c0] sm:$0xff]
    %v465 = vld [vmem:[%s2 + $0x3c8] sm:$0x1]
    %v466 = vperm.slane %v465, 0
    %v468 = vsel %vm89, %v456, 0
    %470 = vmatpush.msra.mxu0 0.0
    %471 = vmatpush.msra.mxu0 0.0
    %472 = vmatpush.msra.mxu0 0.0
    %473 = vmatpush.msra.mxu0 0.0
    %474 = vmatpush.msra.mxu0 0.0
    %475 = vmatpush.msra.mxu0 0.0
    %476 = vmatpush.msra.mxu0 0.0
    %477 = vmatpush.msra.mxu0 0.0
    %478 = vmatpush.msra.mxu0 %v464
    %479 = vmatpush.msra.mxu0 %v463
    %480 = vmatpush.msra.mxu0 %v462
    %481 = vmatpush.msra.mxu0 %v461
    %482 = vmatpush.msra.mxu0 %v460
    %483 = vmatpush.msra.mxu0 %v459
    %484 = vmatpush.msra.mxu0 %v458
    %485 = vmatpush.msra.mxu0 %v457
    %486 = vmatmul.f32.gmra.mxu0 %v468
    %v487 = vpop.f32.mrf.mxu0
    %v488 = vadd.f32 %v466, %v487
    %489 = vdwg.mxu0
    %v490 = vadd.f32 %v389, %v488
    %v491 = vld [vmem:[%s2 + $0x3d0] sm:$0xff]
    %v492 = vld [vmem:[%s2 + $0x3d8] sm:$0xff]
    %v493 = vld [vmem:[%s2 + $0x3e0] sm:$0xff]
    %v494 = vld [vmem:[%s2 + $0x3e8] sm:$0x3f]
    %v495 = vld [vmem:[%s2 + $0x3ee] sm:$0x1]
    %v496 = vperm.slane %v495, 0
    %v498 = vsel %vm147, %v490, 0
    %v501 = vsel %vm161, %v494, 0
    %503 = vmatpush.msra.mxu0 0.0
    %504 = vmatpush.msra.mxu0 0.0
    %505 = vmatpush.msra.mxu0 0.0
    %506 = vmatpush.msra.mxu0 0.0
    %507 = vmatpush.msra.mxu0 0.0
    %508 = vmatpush.msra.mxu0 0.0
    %509 = vmatpush.msra.mxu0 0.0
    %510 = vmatpush.msra.mxu0 0.0
    %511 = vmatpush.msra.mxu0 0.0
    %512 = vmatpush.msra.mxu0 0.0
    %513 = vmatpush.msra.mxu0 0.0
    %514 = vmatpush.msra.mxu0 0.0
    %515 = vmatpush.msra.mxu0 %v501
    %516 = vmatpush.msra.mxu0 %v493
    %517 = vmatpush.msra.mxu0 %v492
    %518 = vmatpush.msra.mxu0 %v491
    %519 = vmatmul.f32.gmra.mxu0 %v498
    %v520 = vpop.f32.mrf.mxu0
    %v521 = vadd.f32 %v496, %v520
    %522 = vdwg.mxu0
    %v523 = vmax.f32 %v521, 0.0
    %v524 = vld [vmem:[%s2 + $0x3f0] sm:$0xff]
    %v525 = vld [vmem:[%s2 + $0x3f8] sm:$0xff]
    %v526 = vld [vmem:[%s2 + $0x400] sm:$0xff]
    %v527 = vld [vmem:[%s2 + $0x408] sm:$0xff]
    %v528 = vld [vmem:[%s2 + $0x410] sm:$0xff]
    %v529 = vld [vmem:[%s2 + $0x418] sm:$0xff]
    %v530 = vld [vmem:[%s2 + $0x420] sm:$0xff]
    %v531 = vld [vmem:[%s2 + $0x428] sm:$0xff]
    %v532 = vld [vmem:[%s2 + $0x430] sm:$0x1]
    %v533 = vperm.slane %v532, 0
    %v535 = vsel %vm89, %v523, 0
    %537 = vmatpush.msra.mxu0 0.0
    %538 = vmatpush.msra.mxu0 0.0
    %539 = vmatpush.msra.mxu0 0.0
    %540 = vmatpush.msra.mxu0 0.0
    %541 = vmatpush.msra.mxu0 0.0
    %542 = vmatpush.msra.mxu0 0.0
    %543 = vmatpush.msra.mxu0 0.0
    %544 = vmatpush.msra.mxu0 0.0
    %545 = vmatpush.msra.mxu0 %v531
    %546 = vmatpush.msra.mxu0 %v530
    %547 = vmatpush.msra.mxu0 %v529
    %548 = vmatpush.msra.mxu0 %v528
    %549 = vmatpush.msra.mxu0 %v527
    %550 = vmatpush.msra.mxu0 %v526
    %551 = vmatpush.msra.mxu0 %v525
    %552 = vmatpush.msra.mxu0 %v524
    %553 = vmatmul.f32.gmra.mxu0 %v535
    %v554 = vpop.f32.mrf.mxu0
    %v555 = vadd.f32 %v533, %v554
    %556 = vdwg.mxu0
    %v557 = vmax.f32 %v555, 0.0
    %v558 = vld [vmem:[%s2 + $0x438] sm:$0xff]
    %v559 = vld [vmem:[%s2 + $0x440] sm:$0xff]
    %v560 = vld [vmem:[%s2 + $0x448] sm:$0xff]
    %v561 = vld [vmem:[%s2 + $0x450] sm:$0xff]
    %v562 = vld [vmem:[%s2 + $0x458] sm:$0xff]
    %v563 = vld [vmem:[%s2 + $0x460] sm:$0xff]
    %v564 = vld [vmem:[%s2 + $0x468] sm:$0xff]
    %v565 = vld [vmem:[%s2 + $0x470] sm:$0xff]
    %v566 = vld [vmem:[%s2 + $0x478] sm:$0x1]
    %v567 = vperm.slane %v566, 0
    %v569 = vsel %vm89, %v557, 0
    %571 = vmatpush.msra.mxu0 0.0
    %572 = vmatpush.msra.mxu0 0.0
    %573 = vmatpush.msra.mxu0 0.0
    %574 = vmatpush.msra.mxu0 0.0
    %575 = vmatpush.msra.mxu0 0.0
    %576 = vmatpush.msra.mxu0 0.0
    %577 = vmatpush.msra.mxu0 0.0
    %578 = vmatpush.msra.mxu0 0.0
    %579 = vmatpush.msra.mxu0 %v565
    %580 = vmatpush.msra.mxu0 %v564
    %581 = vmatpush.msra.mxu0 %v563
    %582 = vmatpush.msra.mxu0 %v562
    %583 = vmatpush.msra.mxu0 %v561
    %584 = vmatpush.msra.mxu0 %v560
    %585 = vmatpush.msra.mxu0 %v559
    %586 = vmatpush.msra.mxu0 %v558
    %587 = vmatmul.f32.gmra.mxu0 %v569
    %v588 = vpop.f32.mrf.mxu0
    %v589 = vadd.f32 %v567, %v588
    %590 = vdwg.mxu0
    %v591 = vadd.f32 %v490, %v589
    %v592 = vld [vmem:[%s2 + $0x80] sm:$0xff]
    %v593 = vld [vmem:[%s2 + $0x88] sm:$0xff]
    %v594 = vld [vmem:[%s2 + $0x90] sm:$0xff]
    %v595 = vld [vmem:[%s2 + $0x98] sm:$0x3f]
    %v597 = vsel %vm147, %v591, 0
    %v600 = vsel %vm161, %v595, 0
    %602 = vmatpush.msra.mxu0 0.0
    %603 = vmatpush.msra.mxu0 0.0
    %604 = vmatpush.msra.mxu0 0.0
    %605 = vmatpush.msra.mxu0 0.0
    %606 = vmatpush.msra.mxu0 0.0
    %607 = vmatpush.msra.mxu0 0.0
    %608 = vmatpush.msra.mxu0 0.0
    %609 = vmatpush.msra.mxu0 0.0
    %610 = vmatpush.msra.mxu0 0.0
    %611 = vmatpush.msra.mxu0 0.0
    %612 = vmatpush.msra.mxu0 0.0
    %613 = vmatpush.msra.mxu0 0.0
    %614 = vmatpush.msra.mxu0 %v600
    %615 = vmatpush.msra.mxu0 %v594
    %616 = vmatpush.msra.mxu0 %v593
    %617 = vmatpush.msra.mxu0 %v592
    %618 = vmatmul.f32.gmra.mxu0 %v597
    %v619 = vpop.f32.mrf.mxu0
    %v620 = vadd.f32 0.0, %v619
    %621 = vdwg.mxu0
    %v622 = vld [vmem:[%s2 + $0x10] sm:$0xff]
    %v623 = vld [vmem:[%s2 + $0x18] sm:$0x7f]
    %v625 = vsel %vm23, %v620, 0
    %v628 = vsel %vm27, %v623, 0
    %630 = vmatpush.msra.mxu0 0.0
    %631 = vmatpush.msra.mxu0 0.0
    %632 = vmatpush.msra.mxu0 0.0
    %633 = vmatpush.msra.mxu0 0.0
    %634 = vmatpush.msra.mxu0 0.0
    %635 = vmatpush.msra.mxu0 0.0
    %636 = vmatpush.msra.mxu0 0.0
    %637 = vmatpush.msra.mxu0 0.0
    %638 = vmatpush.msra.mxu0 0.0
    %639 = vmatpush.msra.mxu0 0.0
    %640 = vmatpush.msra.mxu0 0.0
    %641 = vmatpush.msra.mxu0 0.0
    %642 = vmatpush.msra.mxu0 0.0
    %643 = vmatpush.msra.mxu0 0.0
    %644 = vmatpush.msra.mxu0 %v628
    %645 = vmatpush.msra.mxu0 %v622
    %646 = vmatmul.f32.gmra.mxu0 %v625
    %v647 = vpop.f32.mrf.mxu0
    %v648 = vadd.f32 0.0, %v647
    %649 = vdwg.mxu0
    %v650 = vld [vmem:[%s1] sm:$0xff]
    %v651 = vld [vmem:[%s1 + $0x8] sm:$0x7f]
    %v652 = vld [vmem:[%s1 + $0xf] sm:$0x1]
    %v653 = vperm.slane %v652, 0
    %v655 = vsel %vm27, %v651, 0
    %657 = vmatpush.msra.mxu0 0.0
    %658 = vmatpush.msra.mxu0 0.0
    %659 = vmatpush.msra.mxu0 0.0
    %660 = vmatpush.msra.mxu0 0.0
    %661 = vmatpush.msra.mxu0 0.0
    %662 = vmatpush.msra.mxu0 0.0
    %663 = vmatpush.msra.mxu0 0.0
    %664 = vmatpush.msra.mxu0 0.0
    %665 = vmatpush.msra.mxu0 0.0
    %666 = vmatpush.msra.mxu0 0.0
    %667 = vmatpush.msra.mxu0 0.0
    %668 = vmatpush.msra.mxu0 0.0
    %669 = vmatpush.msra.mxu0 0.0
    %670 = vmatpush.msra.mxu0 0.0
    %671 = vmatpush.msra.mxu0 %v655
    %672 = vmatpush.msra.mxu0 %v650
    %673 = vmatmul.f32.gmra.mxu0 %v625
    %v674 = vpop.f32.mrf.mxu0
    %v675 = vadd.f32 %v653, %v674
    %676 = vdwg.mxu0
    %v677 = vmax.f32 %v675, 0.0
    %v678 = vld [vmem:[%s1 + $0x10] sm:$0xff]
    %v679 = vld [vmem:[%s1 + $0x18] sm:$0xff]
    %v680 = vld [vmem:[%s1 + $0x20] sm:$0xff]
    %v681 = vld [vmem:[%s1 + $0x28] sm:$0xff]
    %v682 = vld [vmem:[%s1 + $0x30] sm:$0xff]
    %v683 = vld [vmem:[%s1 + $0x38] sm:$0xff]
    %v684 = vld [vmem:[%s1 + $0x40] sm:$0xff]
    %v685 = vld [vmem:[%s1 + $0x48] sm:$0xff]
    %v686 = vld [vmem:[%s1 + $0x50] sm:$0xff]
    %v687 = vld [vmem:[%s1 + $0x58] sm:$0xff]
    %v688 = vld [vmem:[%s1 + $0x60] sm:$0xff]
    %v689 = vld [vmem:[%s1 + $0x68] sm:$0xff]
    %v690 = vld [vmem:[%s1 + $0x70] sm:$0xff]
    %v691 = vld [vmem:[%s1 + $0x78] sm:$0xff]
    %v692 = vld [vmem:[%s1 + $0x80] sm:$0xff]
    %v693 = vld [vmem:[%s1 + $0x88] sm:$0xff]
    %v694 = vld [vmem:[%s1 + $0x90] sm:$0x1]
    %v695 = vperm.slane %v694, 0
    %696 = vmatpush.msra.mxu0 %v693
    %697 = vmatpush.msra.mxu0 %v692
    %698 = vmatpush.msra.mxu0 %v691
    %699 = vmatpush.msra.mxu0 %v690
    %700 = vmatpush.msra.mxu0 %v689
    %701 = vmatpush.msra.mxu0 %v688
    %702 = vmatpush.msra.mxu0 %v687
    %703 = vmatpush.msra.mxu0 %v686
    %704 = vmatpush.msra.mxu0 %v685
    %705 = vmatpush.msra.mxu0 %v684
    %706 = vmatpush.msra.mxu0 %v683
    %707 = vmatpush.msra.mxu0 %v682
    %708 = vmatpush.msra.mxu0 %v681
    %709 = vmatpush.msra.mxu0 %v680
    %710 = vmatpush.msra.mxu0 %v679
    %711 = vmatpush.msra.mxu0 %v678
    %712 = vmatmul.f32.gmra.mxu0 %v677
    %v713 = vpop.f32.mrf.mxu0
    %v714 = vadd.f32 %v695, %v713
    %715 = vdwg.mxu0
    %v716 = vmax.f32 %v714, 0.0
    %v717 = vld [vmem:[%s2 + $0x480] sm:$0xff]
    %v718 = vld [vmem:[%s2 + $0x488] sm:$0xff]
    %v719 = vld [vmem:[%s2 + $0x490] sm:$0xff]
    %v720 = vld [vmem:[%s2 + $0x498] sm:$0xff]
    %v721 = vld [vmem:[%s2 + $0x4a0] sm:$0xff]
    %v722 = vld [vmem:[%s2 + $0x4a8] sm:$0xff]
    %v723 = vld [vmem:[%s2 + $0x4b0] sm:$0xff]
    %v724 = vld [vmem:[%s2 + $0x4b8] sm:$0xff]
    %v725 = vld [vmem:[%s2 + $0x4c0] sm:$0xff]
    %v726 = vld [vmem:[%s2 + $0x4c8] sm:$0xff]
    %v727 = vld [vmem:[%s2 + $0x4d0] sm:$0xff]
    %v728 = vld [vmem:[%s2 + $0x4d8] sm:$0xff]
    %v729 = vld [vmem:[%s2 + $0x4e0] sm:$0xff]
    %v730 = vld [vmem:[%s2 + $0x4e8] sm:$0xff]
    %v731 = vld [vmem:[%s2 + $0x4f0] sm:$0xff]
    %v732 = vld [vmem:[%s2 + $0x4f8] sm:$0xff]
    %v733 = vld [vmem:[%s2 + $0x500] sm:$0x1]
    %v734 = vperm.slane %v733, 0
    %735 = vmatpush.msra.mxu0 %v732
    %736 = vmatpush.msra.mxu0 %v731
    %737 = vmatpush.msra.mxu0 %v730
    %738 = vmatpush.msra.mxu0 %v729
    %739 = vmatpush.msra.mxu0 %v728
    %740 = vmatpush.msra.mxu0 %v727
    %741 = vmatpush.msra.mxu0 %v726
    %742 = vmatpush.msra.mxu0 %v725
    %743 = vmatpush.msra.mxu0 %v724
    %744 = vmatpush.msra.mxu0 %v723
    %745 = vmatpush.msra.mxu0 %v722
    %746 = vmatpush.msra.mxu0 %v721
    %747 = vmatpush.msra.mxu0 %v720
    %748 = vmatpush.msra.mxu0 %v719
    %749 = vmatpush.msra.mxu0 %v718
    %750 = vmatpush.msra.mxu0 %v717
    %751 = vmatmul.f32.gmra.mxu0 %v716
    %v752 = vpop.f32.mrf.mxu0
    %v753 = vadd.f32 %v734, %v752
    %754 = vdwg.mxu0
    %vm755 = vcmask 490496
    %v756 = vsel %vm755, %v753, -inf
    %757 = vmax.xlane.f32.xlu0 %v756
    %v758 = vpop.xlane.xlu0 %757
    %v759 = vsub.f32 %v753, %v758
    %v760 = vmul.f32 %v759, 1.442695
    %v761 = vpow.pop %v760
    %v762 = vld [vmem:[%s2 + $0x40] sm:$0xff]
    %v763 = vld [vmem:[%s2 + $0x48] sm:$0xff]
    %v764 = vld [vmem:[%s2 + $0x50] sm:$0xff]
    %v765 = vld [vmem:[%s2 + $0x58] sm:$0xff]
    %v766 = vld [vmem:[%s2 + $0x60] sm:$0xff]
    %v767 = vld [vmem:[%s2 + $0x68] sm:$0xff]
    %v768 = vld [vmem:[%s2 + $0x70] sm:$0xff]
    %v769 = vld [vmem:[%s2 + $0x78] sm:$0xf]
    %v771 = vsel %vm755, %v761, 0
    %vm773 = vcmask 1043456
    %v775 = vsel %vm773, %v769, 0
    %777 = vmatpush.msra.mxu0 0.0
    %778 = vmatpush.msra.mxu0 0.0
    %779 = vmatpush.msra.mxu0 0.0
    %780 = vmatpush.msra.mxu0 0.0
    %781 = vmatpush.msra.mxu0 0.0
    %782 = vmatpush.msra.mxu0 0.0
    %783 = vmatpush.msra.mxu0 0.0
    %784 = vmatpush.msra.mxu0 0.0
    %785 = vmatpush.msra.mxu0 %v775
    %786 = vmatpush.msra.mxu0 %v768
    %787 = vmatpush.msra.mxu0 %v767
    %788 = vmatpush.msra.mxu0 %v766
    %789 = vmatpush.msra.mxu0 %v765
    %790 = vmatpush.msra.mxu0 %v764
    %791 = vmatpush.msra.mxu0 %v763
    %792 = vmatpush.msra.mxu0 %v762
    %793 = vmatmul.f32.gmra.mxu0 %v771
    %v794 = vpop.f32.mrf.mxu0
    %v795 = vadd.f32 0.0, %v794
    %796 = vdwg.mxu0
    %v797 = vrcp.pop %v795
    %v798 = vmul.f32 %v761, %v797
    %v799 = vmul.f32 %v648, %v798
    %v800 = vld [vmem:[%s1 + $0x98] sm:$0xff]
    %v801 = vld [vmem:[%s1 + $0xa0] sm:$0xff]
    %v802 = vld [vmem:[%s1 + $0xa8] sm:$0xff]
    %v803 = vld [vmem:[%s1 + $0xb0] sm:$0xff]
    %v804 = vld [vmem:[%s1 + $0xb8] sm:$0xff]
    %v805 = vld [vmem:[%s1 + $0xc0] sm:$0xff]
    %v806 = vld [vmem:[%s1 + $0xc8] sm:$0xff]
    %v807 = vld [vmem:[%s1 + $0xd0] sm:$0xf]
    %v808 = vld [vmem:[%s1 + $0xd4] sm:$0x1]
    %v809 = vperm.slane %v808, 0
    %v811 = vsel %vm755, %v799, 0
    %v814 = vsel %vm773, %v807, 0
    %816 = vmatpush.msra.mxu0 0.0
    %817 = vmatpush.msra.mxu0 0.0
    %818 = vmatpush.msra.mxu0 0.0
    %819 = vmatpush.msra.mxu0 0.0
    %820 = vmatpush.msra.mxu0 0.0
    %821 = vmatpush.msra.mxu0 0.0
    %822 = vmatpush.msra.mxu0 0.0
    %823 = vmatpush.msra.mxu0 0.0
    %824 = vmatpush.msra.mxu0 %v814
    %825 = vmatpush.msra.mxu0 %v806
    %826 = vmatpush.msra.mxu0 %v805
    %827 = vmatpush.msra.mxu0 %v804
    %828 = vmatpush.msra.mxu0 %v803
    %829 = vmatpush.msra.mxu0 %v802
    %830 = vmatpush.msra.mxu0 %v801
    %831 = vmatpush.msra.mxu0 %v800
    %832 = vmatmul.f32.gmra.mxu0 %v811
    %v833 = vpop.f32.mrf.mxu0
    %v834 = vadd.f32 %v809, %v833
    %835 = vdwg.mxu0
    %v836 = vmax.f32 %v834, 0.0
    %v837 = vld [vmem:[%s1 + $0xd8] sm:$0xff]
    %v838 = vld [vmem:[%s1 + $0xe0] sm:$0xff]
    %v839 = vld [vmem:[%s1 + $0xe8] sm:$0xff]
    %v840 = vld [vmem:[%s1 + $0xf0] sm:$0xff]
    %v841 = vld [vmem:[%s1 + $0xf8] sm:$0xff]
    %v842 = vld [vmem:[%s1 + $0x100] sm:$0xff]
    %v843 = vld [vmem:[%s1 + $0x108] sm:$0xff]
    %v844 = vld [vmem:[%s1 + $0x110] sm:$0xff]
    %v845 = vld [vmem:[%s1 + $0x118] sm:$0xff]
    %v846 = vld [vmem:[%s1 + $0x120] sm:$0xff]
    %v847 = vld [vmem:[%s1 + $0x128] sm:$0xff]
    %v848 = vld [vmem:[%s1 + $0x130] sm:$0xff]
    %v849 = vld [vmem:[%s1 + $0x138] sm:$0xff]
    %v850 = vld [vmem:[%s1 + $0x140] sm:$0xff]
    %v851 = vld [vmem:[%s1 + $0x148] sm:$0xff]
    %v852 = vld [vmem:[%s1 + $0x150] sm:$0xff]
    %v853 = vld [vmem:[%s1 + $0x158] sm:$0x1]
    %v854 = vperm.slane %v853, 0
    %855 = vmatpush.msra.mxu0 %v852
    %856 = vmatpush.msra.mxu0 %v851
    %857 = vmatpush.msra.mxu0 %v850
    %858 = vmatpush.msra.mxu0 %v849
    %859 = vmatpush.msra.mxu0 %v848
    %860 = vmatpush.msra.mxu0 %v847
    %861 = vmatpush.msra.mxu0 %v846
    %862 = vmatpush.msra.mxu0 %v845
    %863 = vmatpush.msra.mxu0 %v844
    %864 = vmatpush.msra.mxu0 %v843
    %865 = vmatpush.msra.mxu0 %v842
    %866 = vmatpush.msra.mxu0 %v841
    %867 = vmatpush.msra.mxu0 %v840
    %868 = vmatpush.msra.mxu0 %v839
    %869 = vmatpush.msra.mxu0 %v838
    %870 = vmatpush.msra.mxu0 %v837
    %871 = vmatmul.f32.gmra.mxu0 %v836
    %v872 = vpop.f32.mrf.mxu0
    %v873 = vadd.f32 %v854, %v872
    %874 = vdwg.mxu0
    %v875 = vmax.f32 %v873, 0.0
    %v876 = vld [vmem:[%s2 + $0x508] sm:$0xff]
    %v877 = vld [vmem:[%s2 + $0x510] sm:$0xff]
    %v878 = vld [vmem:[%s2 + $0x518] sm:$0xff]
    %v879 = vld [vmem:[%s2 + $0x520] sm:$0xff]
    %v880 = vld [vmem:[%s2 + $0x528] sm:$0xff]
    %v881 = vld [vmem:[%s2 + $0x530] sm:$0xff]
    %v882 = vld [vmem:[%s2 + $0x538] sm:$0xff]
    %v883 = vld [vmem:[%s2 + $0x540] sm:$0xff]
    %v884 = vld [vmem:[%s2 + $0x548] sm:$0xff]
    %v885 = vld [vmem:[%s2 + $0x550] sm:$0xff]
    %v886 = vld [vmem:[%s2 + $0x558] sm:$0xff]
    %v887 = vld [vmem:[%s2 + $0x560] sm:$0xff]
    %v888 = vld [vmem:[%s2 + $0x568] sm:$0xff]
    %v889 = vld [vmem:[%s2 + $0x570] sm:$0xff]
    %v890 = vld [vmem:[%s2 + $0x578] sm:$0xff]
    %v891 = vld [vmem:[%s2 + $0x580] sm:$0xff]
    %v892 = vld [vmem:[%s2 + $0x588] sm:$0x1]
    %v893 = vperm.slane %v892, 0
    %894 = vmatpush.msra.mxu0 %v891
    %895 = vmatpush.msra.mxu0 %v890
    %896 = vmatpush.msra.mxu0 %v889
    %897 = vmatpush.msra.mxu0 %v888
    %898 = vmatpush.msra.mxu0 %v887
    %899 = vmatpush.msra.mxu0 %v886
    %900 = vmatpush.msra.mxu0 %v885
    %901 = vmatpush.msra.mxu0 %v884
    %902 = vmatpush.msra.mxu0 %v883
    %903 = vmatpush.msra.mxu0 %v882
    %904 = vmatpush.msra.mxu0 %v881
    %905 = vmatpush.msra.mxu0 %v880
    %906 = vmatpush.msra.mxu0 %v879
    %907 = vmatpush.msra.mxu0 %v878
    %908 = vmatpush.msra.mxu0 %v877
    %909 = vmatpush.msra.mxu0 %v876
    %910 = vmatmul.f32.gmra.mxu0 %v875
    %v911 = vpop.f32.mrf.mxu0
    %v912 = vadd.f32 %v893, %v911
    %913 = vdwg.mxu0
    %v914 = vadd.f32 %v799, %v912
    %v915 = vld [vmem:[%s1 + $0x160] sm:$0xff]
    %v916 = vld [vmem:[%s1 + $0x168] sm:$0xff]
    %v917 = vld [vmem:[%s1 + $0x170] sm:$0xff]
    %v918 = vld [vmem:[%s1 + $0x178] sm:$0xff]
    %v919 = vld [vmem:[%s1 + $0x180] sm:$0xff]
    %v920 = vld [vmem:[%s1 + $0x188] sm:$0xff]
    %v921 = vld [vmem:[%s1 + $0x190] sm:$0xff]
    %v922 = vld [vmem:[%s1 + $0x198] sm:$0xf]
    %v923 = vld [vmem:[%s1 + $0x19c] sm:$0x1]
    %v924 = vperm.slane %v923, 0
    %v926 = vsel %vm755, %v914, 0
    %v929 = vsel %vm773, %v922, 0
    %931 = vmatpush.msra.mxu0 0.0
    %932 = vmatpush.msra.mxu0 0.0
    %933 = vmatpush.msra.mxu0 0.0
    %934 = vmatpush.msra.mxu0 0.0
    %935 = vmatpush.msra.mxu0 0.0
    %936 = vmatpush.msra.mxu0 0.0
    %937 = vmatpush.msra.mxu0 0.0
    %938 = vmatpush.msra.mxu0 0.0
    %939 = vmatpush.msra.mxu0 %v929
    %940 = vmatpush.msra.mxu0 %v921
    %941 = vmatpush.msra.mxu0 %v920
    %942 = vmatpush.msra.mxu0 %v919
    %943 = vmatpush.msra.mxu0 %v918
    %944 = vmatpush.msra.mxu0 %v917
    %945 = vmatpush.msra.mxu0 %v916
    %946 = vmatpush.msra.mxu0 %v915
    %947 = vmatmul.f32.gmra.mxu0 %v926
    %v948 = vpop.f32.mrf.mxu0
    %v949 = vadd.f32 %v924, %v948
    %950 = vdwg.mxu0
    %v951 = vmax.f32 %v949, 0.0
    %v952 = vld [vmem:[%s1 + $0x1a0] sm:$0xff]
    %v953 = vld [vmem:[%s1 + $0x1a8] sm:$0xff]
    %v954 = vld [vmem:[%s1 + $0x1b0] sm:$0xff]
    %v955 = vld [vmem:[%s1 + $0x1b8] sm:$0xff]
    %v956 = vld [vmem:[%s1 + $0x1c0] sm:$0xff]
    %v957 = vld [vmem:[%s1 + $0x1c8] sm:$0xff]
    %v958 = vld [vmem:[%s1 + $0x1d0] sm:$0xff]
    %v959 = vld [vmem:[%s1 + $0x1d8] sm:$0xff]
    %v960 = vld [vmem:[%s1 + $0x1e0] sm:$0xff]
    %v961 = vld [vmem:[%s1 + $0x1e8] sm:$0xff]
    %v962 = vld [vmem:[%s1 + $0x1f0] sm:$0xff]
    %v963 = vld [vmem:[%s1 + $0x1f8] sm:$0xff]
    %v964 = vld [vmem:[%s1 + $0x200] sm:$0xff]
    %v965 = vld [vmem:[%s1 + $0x208] sm:$0xff]
    %v966 = vld [vmem:[%s1 + $0x210] sm:$0xff]
    %v967 = vld [vmem:[%s1 + $0x218] sm:$0xff]
    %v968 = vld [vmem:[%s1 + $0x220] sm:$0x1]
    %v969 = vperm.slane %v968, 0
    %970 = vmatpush.msra.mxu0 %v967
    %971 = vmatpush.msra.mxu0 %v966
    %972 = vmatpush.msra.mxu0 %v965
    %973 = vmatpush.msra.mxu0 %v964
    %974 = vmatpush.msra.mxu0 %v963
    %975 = vmatpush.msra.mxu0 %v962
    %976 = vmatpush.msra.mxu0 %v961
    %977 = vmatpush.msra.mxu0 %v960
    %978 = vmatpush.msra.mxu0 %v959
    %979 = vmatpush.msra.mxu0 %v958
    %980 = vmatpush.msra.mxu0 %v957
    %981 = vmatpush.msra.mxu0 %v956
    %982 = vmatpush.msra.mxu0 %v955
    %983 = vmatpush.msra.mxu0 %v954
    %984 = vmatpush.msra.mxu0 %v953
    %985 = vmatpush.msra.mxu0 %v952
    %986 = vmatmul.f32.gmra.mxu0 %v951
    %v987 = vpop.f32.mrf.mxu0
    %v988 = vadd.f32 %v969, %v987
    %989 = vdwg.mxu0
    %v990 = vmax.f32 %v988, 0.0
    %v991 = vld [vmem:[%s2 + $0x590] sm:$0xff]
    %v992 = vld [vmem:[%s2 + $0x598] sm:$0xff]
    %v993 = vld [vmem:[%s2 + $0x5a0] sm:$0xff]
    %v994 = vld [vmem:[%s2 + $0x5a8] sm:$0xff]
    %v995 = vld [vmem:[%s2 + $0x5b0] sm:$0xff]
    %v996 = vld [vmem:[%s2 + $0x5b8] sm:$0xff]
    %v997 = vld [vmem:[%s2 + $0x5c0] sm:$0xff]
    %v998 = vld [vmem:[%s2 + $0x5c8] sm:$0xff]
    %v999 = vld [vmem:[%s2 + $0x5d0] sm:$0xff]
    %v1000 = vld [vmem:[%s2 + $0x5d8] sm:$0xff]
    %v1001 = vld [vmem:[%s2 + $0x5e0] sm:$0xff]
    %v1002 = vld [vmem:[%s2 + $0x5e8] sm:$0xff]
    %v1003 = vld [vmem:[%s2 + $0x5f0] sm:$0xff]
    %v1004 = vld [vmem:[%s2 + $0x5f8] sm:$0xff]
    %v1005 = vld [vmem:[%s2 + $0x600] sm:$0xff]
    %v1006 = vld [vmem:[%s2 + $0x608] sm:$0xff]
    %v1007 = vld [vmem:[%s2 + $0x610] sm:$0x1]
    %v1008 = vperm.slane %v1007, 0
    %1009 = vmatpush.msra.mxu0 %v1006
    %1010 = vmatpush.msra.mxu0 %v1005
    %1011 = vmatpush.msra.mxu0 %v1004
    %1012 = vmatpush.msra.mxu0 %v1003
    %1013 = vmatpush.msra.mxu0 %v1002
    %1014 = vmatpush.msra.mxu0 %v1001
    %1015 = vmatpush.msra.mxu0 %v1000
    %1016 = vmatpush.msra.mxu0 %v999
    %1017 = vmatpush.msra.mxu0 %v998
    %1018 = vmatpush.msra.mxu0 %v997
    %1019 = vmatpush.msra.mxu0 %v996
    %1020 = vmatpush.msra.mxu0 %v995
    %1021 = vmatpush.msra.mxu0 %v994
    %1022 = vmatpush.msra.mxu0 %v993
    %1023 = vmatpush.msra.mxu0 %v992
    %1024 = vmatpush.msra.mxu0 %v991
    %1025 = vmatmul.f32.gmra.mxu0 %v990
    %v1026 = vpop.f32.mrf.mxu0
    %v1027 = vadd.f32 %v1008, %v1026
    %1028 = vdwg.mxu0
    %v1029 = vadd.f32 %v914, %v1027
    %v1030 = vld [vmem:[%s1 + $0x228] sm:$0xff]
    %v1031 = vld [vmem:[%s1 + $0x230] sm:$0xff]
    %v1032 = vld [vmem:[%s1 + $0x238] sm:$0xff]
    %v1033 = vld [vmem:[%s1 + $0x240] sm:$0xff]
    %v1034 = vld [vmem:[%s1 + $0x248] sm:$0xff]
    %v1035 = vld [vmem:[%s1 + $0x250] sm:$0xff]
    %v1036 = vld [vmem:[%s1 + $0x258] sm:$0xff]
    %v1037 = vld [vmem:[%s1 + $0x260] sm:$0xf]
    %v1038 = vld [vmem:[%s1 + $0x264] sm:$0x1]
    %v1039 = vperm.slane %v1038, 0
    %v1041 = vsel %vm755, %v1029, 0
    %v1044 = vsel %vm773, %v1037, 0
    %1046 = vmatpush.msra.mxu0 0.0
    %1047 = vmatpush.msra.mxu0 0.0
    %1048 = vmatpush.msra.mxu0 0.0
    %1049 = vmatpush.msra.mxu0 0.0
    %1050 = vmatpush.msra.mxu0 0.0
    %1051 = vmatpush.msra.mxu0 0.0
    %1052 = vmatpush.msra.mxu0 0.0
    %1053 = vmatpush.msra.mxu0 0.0
    %1054 = vmatpush.msra.mxu0 %v1044
    %1055 = vmatpush.msra.mxu0 %v1036
    %1056 = vmatpush.msra.mxu0 %v1035
    %1057 = vmatpush.msra.mxu0 %v1034
    %1058 = vmatpush.msra.mxu0 %v1033
    %1059 = vmatpush.msra.mxu0 %v1032
    %1060 = vmatpush.msra.mxu0 %v1031
    %1061 = vmatpush.msra.mxu0 %v1030
    %1062 = vmatmul.f32.gmra.mxu0 %v1041
    %v1063 = vpop.f32.mrf.mxu0
    %v1064 = vadd.f32 %v1039, %v1063
    %1065 = vdwg.mxu0
    %v1066 = vmax.f32 %v1064, 0.0
    %v1067 = vld [vmem:[%s1 + $0x268] sm:$0xff]
    %v1068 = vld [vmem:[%s1 + $0x270] sm:$0xff]
    %v1069 = vld [vmem:[%s1 + $0x278] sm:$0xff]
    %v1070 = vld [vmem:[%s1 + $0x280] sm:$0xff]
    %v1071 = vld [vmem:[%s1 + $0x288] sm:$0xff]
    %v1072 = vld [vmem:[%s1 + $0x290] sm:$0xff]
    %v1073 = vld [vmem:[%s1 + $0x298] sm:$0xff]
    %v1074 = vld [vmem:[%s1 + $0x2a0] sm:$0xff]
    %v1075 = vld [vmem:[%s1 + $0x2a8] sm:$0xff]
    %v1076 = vld [vmem:[%s1 + $0x2b0] sm:$0xff]
    %v1077 = vld [vmem:[%s1 + $0x2b8] sm:$0xff]
    %v1078 = vld [vmem:[%s1 + $0x2c0] sm:$0xff]
    %v1079 = vld [vmem:[%s1 + $0x2c8] sm:$0xff]
    %v1080 = vld [vmem:[%s1 + $0x2d0] sm:$0xff]
    %v1081 = vld [vmem:[%s1 + $0x2d8] sm:$0xff]
    %v1082 = vld [vmem:[%s1 + $0x2e0] sm:$0xff]
    %v1083 = vld [vmem:[%s1 + $0x2e8] sm:$0x1]
    %v1084 = vperm.slane %v1083, 0
    %1085 = vmatpush.msra.mxu0 %v1082
    %1086 = vmatpush.msra.mxu0 %v1081
    %1087 = vmatpush.msra.mxu0 %v1080
    %1088 = vmatpush.msra.mxu0 %v1079
    %1089 = vmatpush.msra.mxu0 %v1078
    %1090 = vmatpush.msra.mxu0 %v1077
    %1091 = vmatpush.msra.mxu0 %v1076
    %1092 = vmatpush.msra.mxu0 %v1075
    %1093 = vmatpush.msra.mxu0 %v1074
    %1094 = vmatpush.msra.mxu0 %v1073
    %1095 = vmatpush.msra.mxu0 %v1072
    %1096 = vmatpush.msra.mxu0 %v1071
    %1097 = vmatpush.msra.mxu0 %v1070
    %1098 = vmatpush.msra.mxu0 %v1069
    %1099 = vmatpush.msra.mxu0 %v1068
    %1100 = vmatpush.msra.mxu0 %v1067
    %1101 = vmatmul.f32.gmra.mxu0 %v1066
    %v1102 = vpop.f32.mrf.mxu0
    %v1103 = vadd.f32 %v1084, %v1102
    %1104 = vdwg.mxu0
    %v1105 = vmax.f32 %v1103, 0.0
    %v1106 = vld [vmem:[%s2 + $0x618] sm:$0xff]
    %v1107 = vld [vmem:[%s2 + $0x620] sm:$0xff]
    %v1108 = vld [vmem:[%s2 + $0x628] sm:$0xff]
    %v1109 = vld [vmem:[%s2 + $0x630] sm:$0xff]
    %v1110 = vld [vmem:[%s2 + $0x638] sm:$0xff]
    %v1111 = vld [vmem:[%s2 + $0x640] sm:$0xff]
    %v1112 = vld [vmem:[%s2 + $0x648] sm:$0xff]
    %v1113 = vld [vmem:[%s2 + $0x650] sm:$0xff]
    %v1114 = vld [vmem:[%s2 + $0x658] sm:$0xff]
    %v1115 = vld [vmem:[%s2 + $0x660] sm:$0xff]
    %v1116 = vld [vmem:[%s2 + $0x668] sm:$0xff]
    %v1117 = vld [vmem:[%s2 + $0x670] sm:$0xff]
    %v1118 = vld [vmem:[%s2 + $0x678] sm:$0xff]
    %v1119 = vld [vmem:[%s2 + $0x680] sm:$0xff]
    %v1120 = vld [vmem:[%s2 + $0x688] sm:$0xff]
    %v1121 = vld [vmem:[%s2 + $0x690] sm:$0xff]
    %v1122 = vld [vmem:[%s2 + $0x698] sm:$0x1]
    %v1123 = vperm.slane %v1122, 0
    %1124 = vmatpush.msra.mxu0 %v1121
    %1125 = vmatpush.msra.mxu0 %v1120
    %1126 = vmatpush.msra.mxu0 %v1119
    %1127 = vmatpush.msra.mxu0 %v1118
    %1128 = vmatpush.msra.mxu0 %v1117
    %1129 = vmatpush.msra.mxu0 %v1116
    %1130 = vmatpush.msra.mxu0 %v1115
    %1131 = vmatpush.msra.mxu0 %v1114
    %1132 = vmatpush.msra.mxu0 %v1113
    %1133 = vmatpush.msra.mxu0 %v1112
    %1134 = vmatpush.msra.mxu0 %v1111
    %1135 = vmatpush.msra.mxu0 %v1110
    %1136 = vmatpush.msra.mxu0 %v1109
    %1137 = vmatpush.msra.mxu0 %v1108
    %1138 = vmatpush.msra.mxu0 %v1107
    %1139 = vmatpush.msra.mxu0 %v1106
    %1140 = vmatmul.f32.gmra.mxu0 %v1105
    %v1141 = vpop.f32.mrf.mxu0
    %v1142 = vadd.f32 %v1123, %v1141
    %1143 = vdwg.mxu0
    %v1144 = vadd.f32 %v1029, %v1142
    %v1145 = vld [vmem:[%s1 + $0x2f0] sm:$0xff]
    %v1146 = vld [vmem:[%s1 + $0x2f8] sm:$0xff]
    %v1147 = vld [vmem:[%s1 + $0x300] sm:$0xff]
    %v1148 = vld [vmem:[%s1 + $0x308] sm:$0xff]
    %v1149 = vld [vmem:[%s1 + $0x310] sm:$0xff]
    %v1150 = vld [vmem:[%s1 + $0x318] sm:$0xff]
    %v1151 = vld [vmem:[%s1 + $0x320] sm:$0xff]
    %v1152 = vld [vmem:[%s1 + $0x328] sm:$0xf]
    %v1153 = vld [vmem:[%s1 + $0x32c] sm:$0x1]
    %v1154 = vperm.slane %v1153, 0
    %v1156 = vsel %vm755, %v1144, 0
    %v1159 = vsel %vm773, %v1152, 0
    %1161 = vmatpush.msra.mxu0 0.0
    %1162 = vmatpush.msra.mxu0 0.0
    %1163 = vmatpush.msra.mxu0 0.0
    %1164 = vmatpush.msra.mxu0 0.0
    %1165 = vmatpush.msra.mxu0 0.0
    %1166 = vmatpush.msra.mxu0 0.0
    %1167 = vmatpush.msra.mxu0 0.0
    %1168 = vmatpush.msra.mxu0 0.0
    %1169 = vmatpush.msra.mxu0 %v1159
    %1170 = vmatpush.msra.mxu0 %v1151
    %1171 = vmatpush.msra.mxu0 %v1150
    %1172 = vmatpush.msra.mxu0 %v1149
    %1173 = vmatpush.msra.mxu0 %v1148
    %1174 = vmatpush.msra.mxu0 %v1147
    %1175 = vmatpush.msra.mxu0 %v1146
    %1176 = vmatpush.msra.mxu0 %v1145
    %1177 = vmatmul.f32.gmra.mxu0 %v1156
    %v1178 = vpop.f32.mrf.mxu0
    %v1179 = vadd.f32 %v1154, %v1178
    %1180 = vdwg.mxu0
    %v1181 = vmax.f32 %v1179, 0.0
    %v1182 = vld [vmem:[%s1 + $0x330] sm:$0xff]
    %v1183 = vld [vmem:[%s1 + $0x338] sm:$0xff]
    %v1184 = vld [vmem:[%s1 + $0x340] sm:$0xff]
    %v1185 = vld [vmem:[%s1 + $0x348] sm:$0xff]
    %v1186 = vld [vmem:[%s1 + $0x350] sm:$0xff]
    %v1187 = vld [vmem:[%s1 + $0x358] sm:$0xff]
    %v1188 = vld [vmem:[%s1 + $0x360] sm:$0xff]
    %v1189 = vld [vmem:[%s1 + $0x368] sm:$0xff]
    %v1190 = vld [vmem:[%s1 + $0x370] sm:$0xff]
    %v1191 = vld [vmem:[%s1 + $0x378] sm:$0xff]
    %v1192 = vld [vmem:[%s1 + $0x380] sm:$0xff]
    %v1193 = vld [vmem:[%s1 + $0x388] sm:$0xff]
    %v1194 = vld [vmem:[%s1 + $0x390] sm:$0xff]
    %v1195 = vld [vmem:[%s1 + $0x398] sm:$0xff]
    %v1196 = vld [vmem:[%s1 + $0x3a0] sm:$0xff]
    %v1197 = vld [vmem:[%s1 + $0x3a8] sm:$0xff]
    %v1198 = vld [vmem:[%s1 + $0x3b0] sm:$0x1]
    %v1199 = vperm.slane %v1198, 0
    %1200 = vmatpush.msra.mxu0 %v1197
    %1201 = vmatpush.msra.mxu0 %v1196
    %1202 = vmatpush.msra.mxu0 %v1195
    %1203 = vmatpush.msra.mxu0 %v1194
    %1204 = vmatpush.msra.mxu0 %v1193
    %1205 = vmatpush.msra.mxu0 %v1192
    %1206 = vmatpush.msra.mxu0 %v1191
    %1207 = vmatpush.msra.mxu0 %v1190
    %1208 = vmatpush.msra.mxu0 %v1189
    %1209 = vmatpush.msra.mxu0 %v1188
    %1210 = vmatpush.msra.mxu0 %v1187
    %1211 = vmatpush.msra.mxu0 %v1186
    %1212 = vmatpush.msra.mxu0 %v1185
    %1213 = vmatpush.msra.mxu0 %v1184
    %1214 = vmatpush.msra.mxu0 %v1183
    %1215 = vmatpush.msra.mxu0 %v1182
    %1216 = vmatmul.f32.gmra.mxu0 %v1181
    %v1217 = vpop.f32.mrf.mxu0
    %v1218 = vadd.f32 %v1199, %v1217
    %1219 = vdwg.mxu0
    %v1220 = vmax.f32 %v1218, 0.0
    %v1221 = vld [vmem:[%s2 + $0x6a0] sm:$0xff]
    %v1222 = vld [vmem:[%s2 + $0x6a8] sm:$0xff]
    %v1223 = vld [vmem:[%s2 + $0x6b0] sm:$0xff]
    %v1224 = vld [vmem:[%s2 + $0x6b8] sm:$0xff]
    %v1225 = vld [vmem:[%s2 + $0x6c0] sm:$0xff]
    %v1226 = vld [vmem:[%s2 + $0x6c8] sm:$0xff]
    %v1227 = vld [vmem:[%s2 + $0x6d0] sm:$0xff]
    %v1228 = vld [vmem:[%s2 + $0x6d8] sm:$0xff]
    %v1229 = vld [vmem:[%s2 + $0x6e0] sm:$0xff]
    %v1230 = vld [vmem:[%s2 + $0x6e8] sm:$0xff]
    %v1231 = vld [vmem:[%s2 + $0x6f0] sm:$0xff]
    %v1232 = vld [vmem:[%s2 + $0x6f8] sm:$0xff]
    %v1233 = vld [vmem:[%s2 + $0x700] sm:$0xff]
    %v1234 = vld [vmem:[%s2 + $0x708] sm:$0xff]
    %v1235 = vld [vmem:[%s2 + $0x710] sm:$0xff]
    %v1236 = vld [vmem:[%s2 + $0x718] sm:$0xff]
    %v1237 = vld [vmem:[%s2 + $0x720] sm:$0x1]
    %v1238 = vperm.slane %v1237, 0
    %1239 = vmatpush.msra.mxu0 %v1236
    %1240 = vmatpush.msra.mxu0 %v1235
    %1241 = vmatpush.msra.mxu0 %v1234
    %1242 = vmatpush.msra.mxu0 %v1233
    %1243 = vmatpush.msra.mxu0 %v1232
    %1244 = vmatpush.msra.mxu0 %v1231
    %1245 = vmatpush.msra.mxu0 %v1230
    %1246 = vmatpush.msra.mxu0 %v1229
    %1247 = vmatpush.msra.mxu0 %v1228
    %1248 = vmatpush.msra.mxu0 %v1227
    %1249 = vmatpush.msra.mxu0 %v1226
    %1250 = vmatpush.msra.mxu0 %v1225
    %1251 = vmatpush.msra.mxu0 %v1224
    %1252 = vmatpush.msra.mxu0 %v1223
    %1253 = vmatpush.msra.mxu0 %v1222
    %1254 = vmatpush.msra.mxu0 %v1221
    %1255 = vmatmul.f32.gmra.mxu0 %v1220
    %v1256 = vpop.f32.mrf.mxu0
    %v1257 = vadd.f32 %v1238, %v1256
    %1258 = vdwg.mxu0
    %v1259 = vadd.f32 %v1144, %v1257
    %v1260 = vld [vmem:[%s2 + $0xa0] sm:$0xff]
    %v1261 = vld [vmem:[%s2 + $0xa8] sm:$0xff]
    %v1262 = vld [vmem:[%s2 + $0xb0] sm:$0xff]
    %v1263 = vld [vmem:[%s2 + $0xb8] sm:$0xff]
    %v1264 = vld [vmem:[%s2 + $0xc0] sm:$0xff]
    %v1265 = vld [vmem:[%s2 + $0xc8] sm:$0xff]
    %v1266 = vld [vmem:[%s2 + $0xd0] sm:$0xff]
    %v1267 = vld [vmem:[%s2 + $0xd8] sm:$0xf]
    %v1268 = vld [vmem:[%s2 + $0xe0] sm:$0xff]
    %v1269 = vld [vmem:[%s2 + $0xe8] sm:$0xff]
    %v1270 = vld [vmem:[%s2 + $0xf0] sm:$0xff]
    %v1271 = vld [vmem:[%s2 + $0xf8] sm:$0xff]
    %v1272 = vld [vmem:[%s2 + $0x100] sm:$0xff]
    %v1273 = vld [vmem:[%s2 + $0x108] sm:$0xff]
    %v1274 = vld [vmem:[%s2 + $0x110] sm:$0xff]
    %v1275 = vld [vmem:[%s2 + $0x118] sm:$0xf]
    %v1277 = vsel %vm755, %v1259, 0
    %v1280 = vsel %vm773, %v1275, 0
    %1282 = vmatpush.msra.mxu0 0.0
    %1283 = vmatpush.msra.mxu0 0.0
    %1284 = vmatpush.msra.mxu0 0.0
    %1285 = vmatpush.msra.mxu0 0.0
    %1286 = vmatpush.msra.mxu0 0.0
    %1287 = vmatpush.msra.mxu0 0.0
    %1288 = vmatpush.msra.mxu0 0.0
    %1289 = vmatpush.msra.mxu0 0.0
    %1290 = vmatpush.msra.mxu0 %v1280
    %1291 = vmatpush.msra.mxu0 %v1274
    %1292 = vmatpush.msra.mxu0 %v1273
    %1293 = vmatpush.msra.mxu0 %v1272
    %1294 = vmatpush.msra.mxu0 %v1271
    %1295 = vmatpush.msra.mxu0 %v1270
    %1296 = vmatpush.msra.mxu0 %v1269
    %1297 = vmatpush.msra.mxu0 %v1268
    %1298 = vmatmul.f32.gmra.mxu0 %v1277
    %v1299 = vpop.f32.mrf.mxu0
    %v1300 = vadd.f32 0.0, %v1299
    %1301 = vdwg.mxu0
    %v1303 = vsel %vm773, %v1267, 0
    %1305 = vmatpush.msra.mxu0 0.0
    %1306 = vmatpush.msra.mxu0 0.0
    %1307 = vmatpush.msra.mxu0 0.0
    %1308 = vmatpush.msra.mxu0 0.0
    %1309 = vmatpush.msra.mxu0 0.0
    %1310 = vmatpush.msra.mxu0 0.0
    %1311 = vmatpush.msra.mxu0 0.0
    %1312 = vmatpush.msra.mxu0 0.0
    %1313 = vmatpush.msra.mxu0 %v1303
    %1314 = vmatpush.msra.mxu0 %v1266
    %1315 = vmatpush.msra.mxu0 %v1265
    %1316 = vmatpush.msra.mxu0 %v1264
    %1317 = vmatpush.msra.mxu0 %v1263
    %1318 = vmatpush.msra.mxu0 %v1262
    %1319 = vmatpush.msra.mxu0 %v1261
    %1320 = vmatpush.msra.mxu0 %v1260
    %1321 = vmatmul.f32.gmra.mxu0 %v811
    %v1322 = vpop.f32.mrf.mxu0
    %v1323 = vadd.f32 %v1300, %v1322
    %1324 = vdwg.mxu0
    %v1325 = vadd.f32 %v20, %v620
    %v1326 = vadd.f32 %v1325, %v1323
    %v1327 = vld [vmem:[%s2 + $0x728] sm:$0xff]
    %v1328 = vld [vmem:[%s2 + $0x730] sm:$0x7f]
    %v1329 = vld [vmem:[%s2 + $0x737] sm:$0x1]
    %v1330 = vperm.slane %v1329, 0
    %v1332 = vsel %vm23, %v1326, 0
    %v1335 = vsel %vm27, %v1328, 0
    %1337 = vmatpush.msra.mxu0 0.0
    %1338 = vmatpush.msra.mxu0 0.0
    %1339 = vmatpush.msra.mxu0 0.0
    %1340 = vmatpush.msra.mxu0 0.0
    %1341 = vmatpush.msra.mxu0 0.0
    %1342 = vmatpush.msra.mxu0 0.0
    %1343 = vmatpush.msra.mxu0 0.0
    %1344 = vmatpush.msra.mxu0 0.0
    %1345 = vmatpush.msra.mxu0 0.0
    %1346 = vmatpush.msra.mxu0 0.0
    %1347 = vmatpush.msra.mxu0 0.0
    %1348 = vmatpush.msra.mxu0 0.0
    %1349 = vmatpush.msra.mxu0 0.0
    %1350 = vmatpush.msra.mxu0 0.0
    %1351 = vmatpush.msra.mxu0 %v1335
    %1352 = vmatpush.msra.mxu0 %v1327
    %1353 = vmatmul.f32.gmra.mxu0 %v1332
    %v1354 = vpop.f32.mrf.mxu0
    %v1355 = vadd.f32 %v1330, %v1354
    %1356 = vdwg.mxu0
    %v1357 = vmax.f32 %v1355, 0.0
    %v1358 = vld [vmem:[%s2 + $0x738] sm:$0xff]
    %v1359 = vld [vmem:[%s2 + $0x740] sm:$0xff]
    %v1360 = vld [vmem:[%s2 + $0x748] sm:$0xff]
    %v1361 = vld [vmem:[%s2 + $0x750] sm:$0xff]
    %v1362 = vld [vmem:[%s2 + $0x758] sm:$0x1]
    %v1363 = vperm.slane %v1362, 0
    %vm1364 = vcmask 261120
    %v1366 = vsel %vm1364, %v1357, 0
    %1368 = vmatpush.msra.mxu0 0.0
    %1369 = vmatpush.msra.mxu0 0.0
    %1370 = vmatpush.msra.mxu0 0.0
    %1371 = vmatpush.msra.mxu0 0.0
    %1372 = vmatpush.msra.mxu0 0.0
    %1373 = vmatpush.msra.mxu0 0.0
    %1374 = vmatpush.msra.mxu0 0.0
    %1375 = vmatpush.msra.mxu0 0.0
    %1376 = vmatpush.msra.mxu0 0.0
    %1377 = vmatpush.msra.mxu0 0.0
    %1378 = vmatpush.msra.mxu0 0.0
    %1379 = vmatpush.msra.mxu0 0.0
    %1380 = vmatpush.msra.mxu0 %v1361
    %1381 = vmatpush.msra.mxu0 %v1360
    %1382 = vmatpush.msra.mxu0 %v1359
    %1383 = vmatpush.msra.mxu0 %v1358
    %1384 = vmatmul.f32.gmra.mxu0 %v1366
    %v1385 = vpop.f32.mrf.mxu0
    %v1386 = vadd.f32 %v1363, %v1385
    %1387 = vdwg.mxu0
    %v1388 = vmax.f32 %v1386, 0.0
    %v1389 = vld [vmem:[%s2 + $0x760] sm:$0xff]
    %v1390 = vld [vmem:[%s2 + $0x768] sm:$0xff]
    %v1391 = vld [vmem:[%s2 + $0x770] sm:$0xff]
    %v1392 = vld [vmem:[%s2 + $0x778] sm:$0xff]
    %v1393 = vld [vmem:[%s2 + $0x780] sm:$0x1]
    %v1394 = vperm.slane %v1393, 0
    %v1396 = vsel %vm1364, %v1388, 0
    %1398 = vmatpush.msra.mxu0 0.0
    %1399 = vmatpush.msra.mxu0 0.0
    %1400 = vmatpush.msra.mxu0 0.0
    %1401 = vmatpush.msra.mxu0 0.0
    %1402 = vmatpush.msra.mxu0 0.0
    %1403 = vmatpush.msra.mxu0 0.0
    %1404 = vmatpush.msra.mxu0 0.0
    %1405 = vmatpush.msra.mxu0 0.0
    %1406 = vmatpush.msra.mxu0 0.0
    %1407 = vmatpush.msra.mxu0 0.0
    %1408 = vmatpush.msra.mxu0 0.0
    %1409 = vmatpush.msra.mxu0 0.0
    %1410 = vmatpush.msra.mxu0 %v1392
    %1411 = vmatpush.msra.mxu0 %v1391
    %1412 = vmatpush.msra.mxu0 %v1390
    %1413 = vmatpush.msra.mxu0 %v1389
    %1414 = vmatmul.f32.gmra.mxu0 %v1396
    %v1415 = vpop.f32.mrf.mxu0
    %v1416 = vadd.f32 %v1394, %v1415
    %1417 = vdwg.mxu0
    %v1418 = vadd.f32 %v1326, %v1416
    %v1420 = vsel %vm23, %v1418, 0
    %1422 = vmatpush.msra.mxu0 0.0
    %1423 = vmatpush.msra.mxu0 0.0
    %1424 = vmatpush.msra.mxu0 0.0
    %1425 = vmatpush.msra.mxu0 0.0
    %1426 = vmatpush.msra.mxu0 0.0
    %1427 = vmatpush.msra.mxu0 0.0
    %1428 = vmatpush.msra.mxu0 0.0
    %1429 = vmatpush.msra.mxu0 0.0
    %1430 = vmatpush.msra.mxu0 0.0
    %1431 = vmatpush.msra.mxu0 0.0
    %1432 = vmatpush.msra.mxu0 0.0
    %1433 = vmatpush.msra.mxu0 0.0
    %1434 = vmatpush.msra.mxu0 0.0
    %1435 = vmatpush.msra.mxu0 0.0
    %1436 = vmatpush.msra.mxu0 %v29
    %1437 = vmatpush.msra.mxu0 %v21
    %1438 = vmatmul.f32.gmra.mxu0 %v1420
    %v1439 = vpop.f32.mrf.mxu0
    %v1440 = vadd.f32 0.0, %v1439
    %1441 = vdwg.mxu0
    %v1442 = vld [vmem:[%s2 + $0x788] sm:$0xff]
    %v1443 = vld [vmem:[%s2 + $0x790] sm:$0x7f]
    %v1444 = vld [vmem:[%s2 + $0x797] sm:$0x1]
    %v1445 = vperm.slane %v1444, 0
    %v1447 = vsel %vm27, %v1443, 0
    %1449 = vmatpush.msra.mxu0 0.0
    %1450 = vmatpush.msra.mxu0 0.0
    %1451 = vmatpush.msra.mxu0 0.0
    %1452 = vmatpush.msra.mxu0 0.0
    %1453 = vmatpush.msra.mxu0 0.0
    %1454 = vmatpush.msra.mxu0 0.0
    %1455 = vmatpush.msra.mxu0 0.0
    %1456 = vmatpush.msra.mxu0 0.0
    %1457 = vmatpush.msra.mxu0 0.0
    %1458 = vmatpush.msra.mxu0 0.0
    %1459 = vmatpush.msra.mxu0 0.0
    %1460 = vmatpush.msra.mxu0 0.0
    %1461 = vmatpush.msra.mxu0 0.0
    %1462 = vmatpush.msra.mxu0 0.0
    %1463 = vmatpush.msra.mxu0 %v1447
    %1464 = vmatpush.msra.mxu0 %v1442
    %1465 = vmatmul.f32.gmra.mxu0 %v1420
    %v1466 = vpop.f32.mrf.mxu0
    %v1467 = vadd.f32 %v1445, %v1466
    %1468 = vdwg.mxu0
    %v1469 = vmax.f32 %v1467, 0.0
    %v1470 = vld [vmem:[%s2 + $0x798] sm:$0xff]
    %v1471 = vld [vmem:[%s2 + $0x7a0] sm:$0xff]
    %v1472 = vld [vmem:[%s2 + $0x7a8] sm:$0xff]
    %v1473 = vld [vmem:[%s2 + $0x7b0] sm:$0xff]
    %v1474 = vld [vmem:[%s2 + $0x7b8] sm:$0xff]
    %v1475 = vld [vmem:[%s2 + $0x7c0] sm:$0xff]
    %v1476 = vld [vmem:[%s2 + $0x7c8] sm:$0xff]
    %v1477 = vld [vmem:[%s2 + $0x7d0] sm:$0xff]
    %v1478 = vld [vmem:[%s2 + $0x7d8] sm:$0x1]
    %v1479 = vperm.slane %v1478, 0
    %v1481 = vsel %vm89, %v1469, 0
    %1483 = vmatpush.msra.mxu0 0.0
    %1484 = vmatpush.msra.mxu0 0.0
    %1485 = vmatpush.msra.mxu0 0.0
    %1486 = vmatpush.msra.mxu0 0.0
    %1487 = vmatpush.msra.mxu0 0.0
    %1488 = vmatpush.msra.mxu0 0.0
    %1489 = vmatpush.msra.mxu0 0.0
    %1490 = vmatpush.msra.mxu0 0.0
    %1491 = vmatpush.msra.mxu0 %v1477
    %1492 = vmatpush.msra.mxu0 %v1476
    %1493 = vmatpush.msra.mxu0 %v1475
    %1494 = vmatpush.msra.mxu0 %v1474
    %1495 = vmatpush.msra.mxu0 %v1473
    %1496 = vmatpush.msra.mxu0 %v1472
    %1497 = vmatpush.msra.mxu0 %v1471
    %1498 = vmatpush.msra.mxu0 %v1470
    %1499 = vmatmul.f32.gmra.mxu0 %v1481
    %v1500 = vpop.f32.mrf.mxu0
    %v1501 = vadd.f32 %v1479, %v1500
    %1502 = vdwg.mxu0
    %v1503 = vmax.f32 %v1501, 0.0
    %v1504 = vld [vmem:[%s2 + $0x7e0] sm:$0xff]
    %v1505 = vld [vmem:[%s2 + $0x7e8] sm:$0xff]
    %v1506 = vld [vmem:[%s2 + $0x7f0] sm:$0xff]
    %v1507 = vld [vmem:[%s2 + $0x7f8] sm:$0xff]
    %v1508 = vld [vmem:[%s2 + $0x800] sm:$0xff]
    %v1509 = vld [vmem:[%s2 + $0x808] sm:$0xff]
    %v1510 = vld [vmem:[%s2 + $0x810] sm:$0xff]
    %v1511 = vld [vmem:[%s2 + $0x818] sm:$0xff]
    %v1512 = vld [vmem:[%s2 + $0x820] sm:$0x1]
    %v1513 = vperm.slane %v1512, 0
    %v1515 = vsel %vm89, %v1503, 0
    %1517 = vmatpush.msra.mxu0 0.0
    %1518 = vmatpush.msra.mxu0 0.0
    %1519 = vmatpush.msra.mxu0 0.0
    %1520 = vmatpush.msra.mxu0 0.0
    %1521 = vmatpush.msra.mxu0 0.0
    %1522 = vmatpush.msra.mxu0 0.0
    %1523 = vmatpush.msra.mxu0 0.0
    %1524 = vmatpush.msra.mxu0 0.0
    %1525 = vmatpush.msra.mxu0 %v1511
    %1526 = vmatpush.msra.mxu0 %v1510
    %1527 = vmatpush.msra.mxu0 %v1509
    %1528 = vmatpush.msra.mxu0 %v1508
    %1529 = vmatpush.msra.mxu0 %v1507
    %1530 = vmatpush.msra.mxu0 %v1506
    %1531 = vmatpush.msra.mxu0 %v1505
    %1532 = vmatpush.msra.mxu0 %v1504
    %1533 = vmatmul.f32.gmra.mxu0 %v1515
    %v1534 = vpop.f32.mrf.mxu0
    %v1535 = vadd.f32 %v1513, %v1534
    %1536 = vdwg.mxu0
    %v1537 = vsel %vm147, %v1535, -inf
    %1538 = vmax.xlane.f32.xlu0 %v1537
    %v1539 = vpop.xlane.xlu0 %1538
    %v1540 = vsub.f32 %v1535, %v1539
    %v1541 = vmul.f32 %v1540, 1.442695
    %v1542 = vpow.pop %v1541
    %v1544 = vsel %vm147, %v1542, 0
    %1546 = vmatpush.msra.mxu0 0.0
    %1547 = vmatpush.msra.mxu0 0.0
    %1548 = vmatpush.msra.mxu0 0.0
    %1549 = vmatpush.msra.mxu0 0.0
    %1550 = vmatpush.msra.mxu0 0.0
    %1551 = vmatpush.msra.mxu0 0.0
    %1552 = vmatpush.msra.mxu0 0.0
    %1553 = vmatpush.msra.mxu0 0.0
    %1554 = vmatpush.msra.mxu0 0.0
    %1555 = vmatpush.msra.mxu0 0.0
    %1556 = vmatpush.msra.mxu0 0.0
    %1557 = vmatpush.msra.mxu0 0.0
    %1558 = vmatpush.msra.mxu0 %v163
    %1559 = vmatpush.msra.mxu0 %v156
    %1560 = vmatpush.msra.mxu0 %v155
    %1561 = vmatpush.msra.mxu0 %v154
    %1562 = vmatmul.f32.gmra.mxu0 %v1544
    %v1563 = vpop.f32.mrf.mxu0
    %v1564 = vadd.f32 0.0, %v1563
    %1565 = vdwg.mxu0
    %v1566 = vrcp.pop %v1564
    %v1567 = vmul.f32 %v1542, %v1566
    %v1568 = vmul.f32 %v1440, %v1567
    %v1569 = vld [vmem:[%s2 + $0x828] sm:$0xff]
    %v1570 = vld [vmem:[%s2 + $0x830] sm:$0xff]
    %v1571 = vld [vmem:[%s2 + $0x838] sm:$0xff]
    %v1572 = vld [vmem:[%s2 + $0x840] sm:$0x3f]
    %v1573 = vld [vmem:[%s2 + $0x846] sm:$0x1]
    %v1574 = vperm.slane %v1573, 0
    %v1576 = vsel %vm147, %v1568, 0
    %v1579 = vsel %vm161, %v1572, 0
    %1581 = vmatpush.msra.mxu0 0.0
    %1582 = vmatpush.msra.mxu0 0.0
    %1583 = vmatpush.msra.mxu0 0.0
    %1584 = vmatpush.msra.mxu0 0.0
    %1585 = vmatpush.msra.mxu0 0.0
    %1586 = vmatpush.msra.mxu0 0.0
    %1587 = vmatpush.msra.mxu0 0.0
    %1588 = vmatpush.msra.mxu0 0.0
    %1589 = vmatpush.msra.mxu0 0.0
    %1590 = vmatpush.msra.mxu0 0.0
    %1591 = vmatpush.msra.mxu0 0.0
    %1592 = vmatpush.msra.mxu0 0.0
    %1593 = vmatpush.msra.mxu0 %v1579
    %1594 = vmatpush.msra.mxu0 %v1571
    %1595 = vmatpush.msra.mxu0 %v1570
    %1596 = vmatpush.msra.mxu0 %v1569
    %1597 = vmatmul.f32.gmra.mxu0 %v1576
    %v1598 = vpop.f32.mrf.mxu0
    %v1599 = vadd.f32 %v1574, %v1598
    %1600 = vdwg.mxu0
    %v1601 = vmax.f32 %v1599, 0.0
    %v1602 = vld [vmem:[%s2 + $0x848] sm:$0xff]
    %v1603 = vld [vmem:[%s2 + $0x850] sm:$0xff]
    %v1604 = vld [vmem:[%s2 + $0x858] sm:$0xff]
    %v1605 = vld [vmem:[%s2 + $0x860] sm:$0xff]
    %v1606 = vld [vmem:[%s2 + $0x868] sm:$0xff]
    %v1607 = vld [vmem:[%s2 + $0x870] sm:$0xff]
    %v1608 = vld [vmem:[%s2 + $0x878] sm:$0xff]
    %v1609 = vld [vmem:[%s2 + $0x880] sm:$0xff]
    %v1610 = vld [vmem:[%s2 + $0x888] sm:$0x1]
    %v1611 = vperm.slane %v1610, 0
    %v1613 = vsel %vm89, %v1601, 0
    %1615 = vmatpush.msra.mxu0 0.0
    %1616 = vmatpush.msra.mxu0 0.0
    %1617 = vmatpush.msra.mxu0 0.0
    %1618 = vmatpush.msra.mxu0 0.0
    %1619 = vmatpush.msra.mxu0 0.0
    %1620 = vmatpush.msra.mxu0 0.0
    %1621 = vmatpush.msra.mxu0 0.0
    %1622 = vmatpush.msra.mxu0 0.0
    %1623 = vmatpush.msra.mxu0 %v1609
    %1624 = vmatpush.msra.mxu0 %v1608
    %1625 = vmatpush.msra.mxu0 %v1607
    %1626 = vmatpush.msra.mxu0 %v1606
    %1627 = vmatpush.msra.mxu0 %v1605
    %1628 = vmatpush.msra.mxu0 %v1604
    %1629 = vmatpush.msra.mxu0 %v1603
    %1630 = vmatpush.msra.mxu0 %v1602
    %1631 = vmatmul.f32.gmra.mxu0 %v1613
    %v1632 = vpop.f32.mrf.mxu0
    %v1633 = vadd.f32 %v1611, %v1632
    %1634 = vdwg.mxu0
    %v1635 = vmax.f32 %v1633, 0.0
    %v1636 = vld [vmem:[%s2 + $0x890] sm:$0xff]
    %v1637 = vld [vmem:[%s2 + $0x898] sm:$0xff]
    %v1638 = vld [vmem:[%s2 + $0x8a0] sm:$0xff]
    %v1639 = vld [vmem:[%s2 + $0x8a8] sm:$0xff]
    %v1640 = vld [vmem:[%s2 + $0x8b0] sm:$0xff]
    %v1641 = vld [vmem:[%s2 + $0x8b8] sm:$0xff]
    %v1642 = vld [vmem:[%s2 + $0x8c0] sm:$0xff]
    %v1643 = vld [vmem:[%s2 + $0x8c8] sm:$0xff]
    %v1644 = vld [vmem:[%s2 + $0x8d0] sm:$0x1]
    %v1645 = vperm.slane %v1644, 0
    %v1647 = vsel %vm89, %v1635, 0
    %1649 = vmatpush.msra.mxu0 0.0
    %1650 = vmatpush.msra.mxu0 0.0
    %1651 = vmatpush.msra.mxu0 0.0
    %1652 = vmatpush.msra.mxu0 0.0
    %1653 = vmatpush.msra.mxu0 0.0
    %1654 = vmatpush.msra.mxu0 0.0
    %1655 = vmatpush.msra.mxu0 0.0
    %1656 = vmatpush.msra.mxu0 0.0
    %1657 = vmatpush.msra.mxu0 %v1643
    %1658 = vmatpush.msra.mxu0 %v1642
    %1659 = vmatpush.msra.mxu0 %v1641
    %1660 = vmatpush.msra.mxu0 %v1640
    %1661 = vmatpush.msra.mxu0 %v1639
    %1662 = vmatpush.msra.mxu0 %v1638
    %1663 = vmatpush.msra.mxu0 %v1637
    %1664 = vmatpush.msra.mxu0 %v1636
    %1665 = vmatmul.f32.gmra.mxu0 %v1647
    %v1666 = vpop.f32.mrf.mxu0
    %v1667 = vadd.f32 %v1645, %v1666
    %1668 = vdwg.mxu0
    %v1669 = vadd.f32 %v1568, %v1667
    %v1670 = vld [vmem:[%s2 + $0x8d8] sm:$0xff]
    %v1671 = vld [vmem:[%s2 + $0x8e0] sm:$0xff]
    %v1672 = vld [vmem:[%s2 + $0x8e8] sm:$0xff]
    %v1673 = vld [vmem:[%s2 + $0x8f0] sm:$0x3f]
    %v1674 = vld [vmem:[%s2 + $0x8f6] sm:$0x1]
    %v1675 = vperm.slane %v1674, 0
    %v1677 = vsel %vm147, %v1669, 0
    %v1680 = vsel %vm161, %v1673, 0
    %1682 = vmatpush.msra.mxu0 0.0
    %1683 = vmatpush.msra.mxu0 0.0
    %1684 = vmatpush.msra.mxu0 0.0
    %1685 = vmatpush.msra.mxu0 0.0
    %1686 = vmatpush.msra.mxu0 0.0
    %1687 = vmatpush.msra.mxu0 0.0
    %1688 = vmatpush.msra.mxu0 0.0
    %1689 = vmatpush.msra.mxu0 0.0
    %1690 = vmatpush.msra.mxu0 0.0
    %1691 = vmatpush.msra.mxu0 0.0
    %1692 = vmatpush.msra.mxu0 0.0
    %1693 = vmatpush.msra.mxu0 0.0
    %1694 = vmatpush.msra.mxu0 %v1680
    %1695 = vmatpush.msra.mxu0 %v1672
    %1696 = vmatpush.msra.mxu0 %v1671
    %1697 = vmatpush.msra.mxu0 %v1670
    %1698 = vmatmul.f32.gmra.mxu0 %v1677
    %v1699 = vpop.f32.mrf.mxu0
    %v1700 = vadd.f32 %v1675, %v1699
    %1701 = vdwg.mxu0
    %v1702 = vmax.f32 %v1700, 0.0
    %v1703 = vld [vmem:[%s2 + $0x8f8] sm:$0xff]
    %v1704 = vld [vmem:[%s2 + $0x900] sm:$0xff]
    %v1705 = vld [vmem:[%s2 + $0x908] sm:$0xff]
    %v1706 = vld [vmem:[%s2 + $0x910] sm:$0xff]
    %v1707 = vld [vmem:[%s2 + $0x918] sm:$0xff]
    %v1708 = vld [vmem:[%s2 + $0x920] sm:$0xff]
    %v1709 = vld [vmem:[%s2 + $0x928] sm:$0xff]
    %v1710 = vld [vmem:[%s2 + $0x930] sm:$0xff]
    %v1711 = vld [vmem:[%s2 + $0x938] sm:$0x1]
    %v1712 = vperm.slane %v1711, 0
    %v1714 = vsel %vm89, %v1702, 0
    %1716 = vmatpush.msra.mxu0 0.0
    %1717 = vmatpush.msra.mxu0 0.0
    %1718 = vmatpush.msra.mxu0 0.0
    %1719 = vmatpush.msra.mxu0 0.0
    %1720 = vmatpush.msra.mxu0 0.0
    %1721 = vmatpush.msra.mxu0 0.0
    %1722 = vmatpush.msra.mxu0 0.0
    %1723 = vmatpush.msra.mxu0 0.0
    %1724 = vmatpush.msra.mxu0 %v1710
    %1725 = vmatpush.msra.mxu0 %v1709
    %1726 = vmatpush.msra.mxu0 %v1708
    %1727 = vmatpush.msra.mxu0 %v1707
    %1728 = vmatpush.msra.mxu0 %v1706
    %1729 = vmatpush.msra.mxu0 %v1705
    %1730 = vmatpush.msra.mxu0 %v1704
    %1731 = vmatpush.msra.mxu0 %v1703
    %1732 = vmatmul.f32.gmra.mxu0 %v1714
    %v1733 = vpop.f32.mrf.mxu0
    %v1734 = vadd.f32 %v1712, %v1733
    %1735 = vdwg.mxu0
    %v1736 = vmax.f32 %v1734, 0.0
    %v1737 = vld [vmem:[%s2 + $0x940] sm:$0xff]
    %v1738 = vld [vmem:[%s2 + $0x948] sm:$0xff]
    %v1739 = vld [vmem:[%s2 + $0x950] sm:$0xff]
    %v1740 = vld [vmem:[%s2 + $0x958] sm:$0xff]
    %v1741 = vld [vmem:[%s2 + $0x960] sm:$0xff]
    %v1742 = vld [vmem:[%s2 + $0x968] sm:$0xff]
    %v1743 = vld [vmem:[%s2 + $0x970] sm:$0xff]
    %v1744 = vld [vmem:[%s2 + $0x978] sm:$0xff]
    %v1745 = vld [vmem:[%s2 + $0x980] sm:$0x1]
    %v1746 = vperm.slane %v1745, 0
    %v1748 = vsel %vm89, %v1736, 0
    %1750 = vmatpush.msra.mxu0 0.0
    %1751 = vmatpush.msra.mxu0 0.0
    %1752 = vmatpush.msra.mxu0 0.0
    %1753 = vmatpush.msra.mxu0 0.0
    %1754 = vmatpush.msra.mxu0 0.0
    %1755 = vmatpush.msra.mxu0 0.0
    %1756 = vmatpush.msra.mxu0 0.0
    %1757 = vmatpush.msra.mxu0 0.0
    %1758 = vmatpush.msra.mxu0 %v1744
    %1759 = vmatpush.msra.mxu0 %v1743
    %1760 = vmatpush.msra.mxu0 %v1742
    %1761 = vmatpush.msra.mxu0 %v1741
    %1762 = vmatpush.msra.mxu0 %v1740
    %1763 = vmatpush.msra.mxu0 %v1739
    %1764 = vmatpush.msra.mxu0 %v1738
    %1765 = vmatpush.msra.mxu0 %v1737
    %1766 = vmatmul.f32.gmra.mxu0 %v1748
    %v1767 = vpop.f32.mrf.mxu0
    %v1768 = vadd.f32 %v1746, %v1767
    %1769 = vdwg.mxu0
    %v1770 = vadd.f32 %v1669, %v1768
    %v1771 = vld [vmem:[%s2 + $0x988] sm:$0xff]
    %v1772 = vld [vmem:[%s2 + $0x990] sm:$0xff]
    %v1773 = vld [vmem:[%s2 + $0x998] sm:$0xff]
    %v1774 = vld [vmem:[%s2 + $0x9a0] sm:$0x3f]
    %v1775 = vld [vmem:[%s2 + $0x9a6] sm:$0x1]
    %v1776 = vperm.slane %v1775, 0
    %v1778 = vsel %vm147, %v1770, 0
    %v1781 = vsel %vm161, %v1774, 0
    %1783 = vmatpush.msra.mxu0 0.0
    %1784 = vmatpush.msra.mxu0 0.0
    %1785 = vmatpush.msra.mxu0 0.0
    %1786 = vmatpush.msra.mxu0 0.0
    %1787 = vmatpush.msra.mxu0 0.0
    %1788 = vmatpush.msra.mxu0 0.0
    %1789 = vmatpush.msra.mxu0 0.0
    %1790 = vmatpush.msra.mxu0 0.0
    %1791 = vmatpush.msra.mxu0 0.0
    %1792 = vmatpush.msra.mxu0 0.0
    %1793 = vmatpush.msra.mxu0 0.0
    %1794 = vmatpush.msra.mxu0 0.0
    %1795 = vmatpush.msra.mxu0 %v1781
    %1796 = vmatpush.msra.mxu0 %v1773
    %1797 = vmatpush.msra.mxu0 %v1772
    %1798 = vmatpush.msra.mxu0 %v1771
    %1799 = vmatmul.f32.gmra.mxu0 %v1778
    %v1800 = vpop.f32.mrf.mxu0
    %v1801 = vadd.f32 %v1776, %v1800
    %1802 = vdwg.mxu0
    %v1803 = vmax.f32 %v1801, 0.0
    %v1804 = vld [vmem:[%s2 + $0x9a8] sm:$0xff]
    %v1805 = vld [vmem:[%s2 + $0x9b0] sm:$0xff]
    %v1806 = vld [vmem:[%s2 + $0x9b8] sm:$0xff]
    %v1807 = vld [vmem:[%s2 + $0x9c0] sm:$0xff]
    %v1808 = vld [vmem:[%s2 + $0x9c8] sm:$0xff]
    %v1809 = vld [vmem:[%s2 + $0x9d0] sm:$0xff]
    %v1810 = vld [vmem:[%s2 + $0x9d8] sm:$0xff]
    %v1811 = vld [vmem:[%s2 + $0x9e0] sm:$0xff]
    %v1812 = vld [vmem:[%s2 + $0x9e8] sm:$0x1]
    %v1813 = vperm.slane %v1812, 0
    %v1815 = vsel %vm89, %v1803, 0
    %1817 = vmatpush.msra.mxu0 0.0
    %1818 = vmatpush.msra.mxu0 0.0
    %1819 = vmatpush.msra.mxu0 0.0
    %1820 = vmatpush.msra.mxu0 0.0
    %1821 = vmatpush.msra.mxu0 0.0
    %1822 = vmatpush.msra.mxu0 0.0
    %1823 = vmatpush.msra.mxu0 0.0
    %1824 = vmatpush.msra.mxu0 0.0
    %1825 = vmatpush.msra.mxu0 %v1811
    %1826 = vmatpush.msra.mxu0 %v1810
    %1827 = vmatpush.msra.mxu0 %v1809
    %1828 = vmatpush.msra.mxu0 %v1808
    %1829 = vmatpush.msra.mxu0 %v1807
    %1830 = vmatpush.msra.mxu0 %v1806
    %1831 = vmatpush.msra.mxu0 %v1805
    %1832 = vmatpush.msra.mxu0 %v1804
    %1833 = vmatmul.f32.gmra.mxu0 %v1815
    %v1834 = vpop.f32.mrf.mxu0
    %v1835 = vadd.f32 %v1813, %v1834
    %1836 = vdwg.mxu0
    %v1837 = vmax.f32 %v1835, 0.0
    %v1838 = vld [vmem:[%s2 + $0x9f0] sm:$0xff]
    %v1839 = vld [vmem:[%s2 + $0x9f8] sm:$0xff]
    %v1840 = vld [vmem:[%s2 + $0xa00] sm:$0xff]
    %v1841 = vld [vmem:[%s2 + $0xa08] sm:$0xff]
    %v1842 = vld [vmem:[%s2 + $0xa10] sm:$0xff]
    %v1843 = vld [vmem:[%s2 + $0xa18] sm:$0xff]
    %v1844 = vld [vmem:[%s2 + $0xa20] sm:$0xff]
    %v1845 = vld [vmem:[%s2 + $0xa28] sm:$0xff]
    %v1846 = vld [vmem:[%s2 + $0xa30] sm:$0x1]
    %v1847 = vperm.slane %v1846, 0
    %v1849 = vsel %vm89, %v1837, 0
    %1851 = vmatpush.msra.mxu0 0.0
    %1852 = vmatpush.msra.mxu0 0.0
    %1853 = vmatpush.msra.mxu0 0.0
    %1854 = vmatpush.msra.mxu0 0.0
    %1855 = vmatpush.msra.mxu0 0.0
    %1856 = vmatpush.msra.mxu0 0.0
    %1857 = vmatpush.msra.mxu0 0.0
    %1858 = vmatpush.msra.mxu0 0.0
    %1859 = vmatpush.msra.mxu0 %v1845
    %1860 = vmatpush.msra.mxu0 %v1844
    %1861 = vmatpush.msra.mxu0 %v1843
    %1862 = vmatpush.msra.mxu0 %v1842
    %1863 = vmatpush.msra.mxu0 %v1841
    %1864 = vmatpush.msra.mxu0 %v1840
    %1865 = vmatpush.msra.mxu0 %v1839
    %1866 = vmatpush.msra.mxu0 %v1838
    %1867 = vmatmul.f32.gmra.mxu0 %v1849
    %v1868 = vpop.f32.mrf.mxu0
    %v1869 = vadd.f32 %v1847, %v1868
    %1870 = vdwg.mxu0
    %v1871 = vadd.f32 %v1770, %v1869
    %v1872 = vld [vmem:[%s2 + $0xa38] sm:$0xff]
    %v1873 = vld [vmem:[%s2 + $0xa40] sm:$0xff]
    %v1874 = vld [vmem:[%s2 + $0xa48] sm:$0xff]
    %v1875 = vld [vmem:[%s2 + $0xa50] sm:$0x3f]
    %v1876 = vld [vmem:[%s2 + $0xa56] sm:$0x1]
    %v1877 = vperm.slane %v1876, 0
    %v1879 = vsel %vm147, %v1871, 0
    %v1882 = vsel %vm161, %v1875, 0
    %1884 = vmatpush.msra.mxu0 0.0
    %1885 = vmatpush.msra.mxu0 0.0
    %1886 = vmatpush.msra.mxu0 0.0
    %1887 = vmatpush.msra.mxu0 0.0
    %1888 = vmatpush.msra.mxu0 0.0
    %1889 = vmatpush.msra.mxu0 0.0
    %1890 = vmatpush.msra.mxu0 0.0
    %1891 = vmatpush.msra.mxu0 0.0
    %1892 = vmatpush.msra.mxu0 0.0
    %1893 = vmatpush.msra.mxu0 0.0
    %1894 = vmatpush.msra.mxu0 0.0
    %1895 = vmatpush.msra.mxu0 0.0
    %1896 = vmatpush.msra.mxu0 %v1882
    %1897 = vmatpush.msra.mxu0 %v1874
    %1898 = vmatpush.msra.mxu0 %v1873
    %1899 = vmatpush.msra.mxu0 %v1872
    %1900 = vmatmul.f32.gmra.mxu0 %v1879
    %v1901 = vpop.f32.mrf.mxu0
    %v1902 = vadd.f32 %v1877, %v1901
    %1903 = vdwg.mxu0
    %v1904 = vmax.f32 %v1902, 0.0
    %v1905 = vld [vmem:[%s2 + $0xa58] sm:$0xff]
    %v1906 = vld [vmem:[%s2 + $0xa60] sm:$0xff]
    %v1907 = vld [vmem:[%s2 + $0xa68] sm:$0xff]
    %v1908 = vld [vmem:[%s2 + $0xa70] sm:$0xff]
    %v1909 = vld [vmem:[%s2 + $0xa78] sm:$0xff]
    %v1910 = vld [vmem:[%s2 + $0xa80] sm:$0xff]
    %v1911 = vld [vmem:[%s2 + $0xa88] sm:$0xff]
    %v1912 = vld [vmem:[%s2 + $0xa90] sm:$0xff]
    %v1913 = vld [vmem:[%s2 + $0xa98] sm:$0x1]
    %v1914 = vperm.slane %v1913, 0
    %v1916 = vsel %vm89, %v1904, 0
    %1918 = vmatpush.msra.mxu0 0.0
    %1919 = vmatpush.msra.mxu0 0.0
    %1920 = vmatpush.msra.mxu0 0.0
    %1921 = vmatpush.msra.mxu0 0.0
    %1922 = vmatpush.msra.mxu0 0.0
    %1923 = vmatpush.msra.mxu0 0.0
    %1924 = vmatpush.msra.mxu0 0.0
    %1925 = vmatpush.msra.mxu0 0.0
    %1926 = vmatpush.msra.mxu0 %v1912
    %1927 = vmatpush.msra.mxu0 %v1911
    %1928 = vmatpush.msra.mxu0 %v1910
    %1929 = vmatpush.msra.mxu0 %v1909
    %1930 = vmatpush.msra.mxu0 %v1908
    %1931 = vmatpush.msra.mxu0 %v1907
    %1932 = vmatpush.msra.mxu0 %v1906
    %1933 = vmatpush.msra.mxu0 %v1905
    %1934 = vmatmul.f32.gmra.mxu0 %v1916
    %v1935 = vpop.f32.mrf.mxu0
    %v1936 = vadd.f32 %v1914, %v1935
    %1937 = vdwg.mxu0
    %v1938 = vmax.f32 %v1936, 0.0
    %v1939 = vld [vmem:[%s2 + $0xaa0] sm:$0xff]
    %v1940 = vld [vmem:[%s2 + $0xaa8] sm:$0xff]
    %v1941 = vld [vmem:[%s2 + $0xab0] sm:$0xff]
    %v1942 = vld [vmem:[%s2 + $0xab8] sm:$0xff]
    %v1943 = vld [vmem:[%s2 + $0xac0] sm:$0xff]
    %v1944 = vld [vmem:[%s2 + $0xac8] sm:$0xff]
    %v1945 = vld [vmem:[%s2 + $0xad0] sm:$0xff]
    %v1946 = vld [vmem:[%s2 + $0xad8] sm:$0xff]
    %v1947 = vld [vmem:[%s2 + $0xae0] sm:$0x1]
    %v1948 = vperm.slane %v1947, 0
    %v1950 = vsel %vm89, %v1938, 0
    %1952 = vmatpush.msra.mxu0 0.0
    %1953 = vmatpush.msra.mxu0 0.0
    %1954 = vmatpush.msra.mxu0 0.0
    %1955 = vmatpush.msra.mxu0 0.0
    %1956 = vmatpush.msra.mxu0 0.0
    %1957 = vmatpush.msra.mxu0 0.0
    %1958 = vmatpush.msra.mxu0 0.0
    %1959 = vmatpush.msra.mxu0 0.0
    %1960 = vmatpush.msra.mxu0 %v1946
    %1961 = vmatpush.msra.mxu0 %v1945
    %1962 = vmatpush.msra.mxu0 %v1944
    %1963 = vmatpush.msra.mxu0 %v1943
    %1964 = vmatpush.msra.mxu0 %v1942
    %1965 = vmatpush.msra.mxu0 %v1941
    %1966 = vmatpush.msra.mxu0 %v1940
    %1967 = vmatpush.msra.mxu0 %v1939
    %1968 = vmatmul.f32.gmra.mxu0 %v1950
    %v1969 = vpop.f32.mrf.mxu0
    %v1970 = vadd.f32 %v1948, %v1969
    %1971 = vdwg.mxu0
    %v1972 = vadd.f32 %v1871, %v1970
    %v1974 = vsel %vm147, %v1972, 0
    %1976 = vmatpush.msra.mxu0 0.0
    %1977 = vmatpush.msra.mxu0 0.0
    %1978 = vmatpush.msra.mxu0 0.0
    %1979 = vmatpush.msra.mxu0 0.0
    %1980 = vmatpush.msra.mxu0 0.0
    %1981 = vmatpush.msra.mxu0 0.0
    %1982 = vmatpush.msra.mxu0 0.0
    %1983 = vmatpush.msra.mxu0 0.0
    %1984 = vmatpush.msra.mxu0 0.0
    %1985 = vmatpush.msra.mxu0 0.0
    %1986 = vmatpush.msra.mxu0 0.0
    %1987 = vmatpush.msra.mxu0 0.0
    %1988 = vmatpush.msra.mxu0 %v600
    %1989 = vmatpush.msra.mxu0 %v594
    %1990 = vmatpush.msra.mxu0 %v593
    %1991 = vmatpush.msra.mxu0 %v592
    %1992 = vmatmul.f32.gmra.mxu0 %v1974
    %v1993 = vpop.f32.mrf.mxu0
    %v1994 = vadd.f32 0.0, %v1993
    %1995 = vdwg.mxu0
    %v1997 = vsel %vm23, %v1994, 0
    %1999 = vmatpush.msra.mxu0 0.0
    %2000 = vmatpush.msra.mxu0 0.0
    %2001 = vmatpush.msra.mxu0 0.0
    %2002 = vmatpush.msra.mxu0 0.0
    %2003 = vmatpush.msra.mxu0 0.0
    %2004 = vmatpush.msra.mxu0 0.0
    %2005 = vmatpush.msra.mxu0 0.0
    %2006 = vmatpush.msra.mxu0 0.0
    %2007 = vmatpush.msra.mxu0 0.0
    %2008 = vmatpush.msra.mxu0 0.0
    %2009 = vmatpush.msra.mxu0 0.0
    %2010 = vmatpush.msra.mxu0 0.0
    %2011 = vmatpush.msra.mxu0 0.0
    %2012 = vmatpush.msra.mxu0 0.0
    %2013 = vmatpush.msra.mxu0 %v628
    %2014 = vmatpush.msra.mxu0 %v622
    %2015 = vmatmul.f32.gmra.mxu0 %v1997
    %v2016 = vpop.f32.mrf.mxu0
    %v2017 = vadd.f32 0.0, %v2016
    %2018 = vdwg.mxu0
    %v2019 = vld [vmem:[%s1 + $0x3b8] sm:$0xff]
    %v2020 = vld [vmem:[%s1 + $0x3c0] sm:$0x7f]
    %v2021 = vld [vmem:[%s1 + $0x3c7] sm:$0x1]
    %v2022 = vperm.slane %v2021, 0
    %v2024 = vsel %vm27, %v2020, 0
    %2026 = vmatpush.msra.mxu0 0.0
    %2027 = vmatpush.msra.mxu0 0.0
    %2028 = vmatpush.msra.mxu0 0.0
    %2029 = vmatpush.msra.mxu0 0.0
    %2030 = vmatpush.msra.mxu0 0.0
    %2031 = vmatpush.msra.mxu0 0.0
    %2032 = vmatpush.msra.mxu0 0.0
    %2033 = vmatpush.msra.mxu0 0.0
    %2034 = vmatpush.msra.mxu0 0.0
    %2035 = vmatpush.msra.mxu0 0.0
    %2036 = vmatpush.msra.mxu0 0.0
    %2037 = vmatpush.msra.mxu0 0.0
    %2038 = vmatpush.msra.mxu0 0.0
    %2039 = vmatpush.msra.mxu0 0.0
    %2040 = vmatpush.msra.mxu0 %v2024
    %2041 = vmatpush.msra.mxu0 %v2019
    %2042 = vmatmul.f32.gmra.mxu0 %v1997
    %v2043 = vpop.f32.mrf.mxu0
    %v2044 = vadd.f32 %v2022, %v2043
    %2045 = vdwg.mxu0
    %v2046 = vmax.f32 %v2044, 0.0
    %v2047 = vld [vmem:[%s1 + $0x3c8] sm:$0xff]
    %v2048 = vld [vmem:[%s1 + $0x3d0] sm:$0xff]
    %v2049 = vld [vmem:[%s1 + $0x3d8] sm:$0xff]
    %v2050 = vld [vmem:[%s1 + $0x3e0] sm:$0xff]
    %v2051 = vld [vmem:[%s1 + $0x3e8] sm:$0xff]
    %v2052 = vld [vmem:[%s1 + $0x3f0] sm:$0xff]
    %v2053 = vld [vmem:[%s1 + $0x3f8] sm:$0xff]
    %v2054 = vld [vmem:[%s1 + $0x400] sm:$0xff]
    %v2055 = vld [vmem:[%s1 + $0x408] sm:$0xff]
    %v2056 = vld [vmem:[%s1 + $0x410] sm:$0xff]
    %v2057 = vld [vmem:[%s1 + $0x418] sm:$0xff]
    %v2058 = vld [vmem:[%s1 + $0x420] sm:$0xff]
    %v2059 = vld [vmem:[%s1 + $0x428] sm:$0xff]
    %v2060 = vld [vmem:[%s1 + $0x430] sm:$0xff]
    %v2061 = vld [vmem:[%s1 + $0x438] sm:$0xff]
    %v2062 = vld [vmem:[%s1 + $0x440] sm:$0xff]
    %v2063 = vld [vmem:[%s1 + $0x448] sm:$0x1]
    %v2064 = vperm.slane %v2063, 0
    %2065 = vmatpush.msra.mxu0 %v2062
    %2066 = vmatpush.msra.mxu0 %v2061
    %2067 = vmatpush.msra.mxu0 %v2060
    %2068 = vmatpush.msra.mxu0 %v2059
    %2069 = vmatpush.msra.mxu0 %v2058
    %2070 = vmatpush.msra.mxu0 %v2057
    %2071 = vmatpush.msra.mxu0 %v2056
    %2072 = vmatpush.msra.mxu0 %v2055
    %2073 = vmatpush.msra.mxu0 %v2054
    %2074 = vmatpush.msra.mxu0 %v2053
    %2075 = vmatpush.msra.mxu0 %v2052
    %2076 = vmatpush.msra.mxu0 %v2051
    %2077 = vmatpush.msra.mxu0 %v2050
    %2078 = vmatpush.msra.mxu0 %v2049
    %2079 = vmatpush.msra.mxu0 %v2048
    %2080 = vmatpush.msra.mxu0 %v2047
    %2081 = vmatmul.f32.gmra.mxu0 %v2046
    %v2082 = vpop.f32.mrf.mxu0
    %v2083 = vadd.f32 %v2064, %v2082
    %2084 = vdwg.mxu0
    %v2085 = vmax.f32 %v2083, 0.0
    %v2086 = vld [vmem:[%s2 + $0xae8] sm:$0xff]
    %v2087 = vld [vmem:[%s2 + $0xaf0] sm:$0xff]
    %v2088 = vld [vmem:[%s2 + $0xaf8] sm:$0xff]
    %v2089 = vld [vmem:[%s2 + $0xb00] sm:$0xff]
    %v2090 = vld [vmem:[%s2 + $0xb08] sm:$0xff]
    %v2091 = vld [vmem:[%s2 + $0xb10] sm:$0xff]
    %v2092 = vld [vmem:[%s2 + $0xb18] sm:$0xff]
    %v2093 = vld [vmem:[%s2 + $0xb20] sm:$0xff]
    %v2094 = vld [vmem:[%s2 + $0xb28] sm:$0xff]
    %v2095 = vld [vmem:[%s2 + $0xb30] sm:$0xff]
    %v2096 = vld [vmem:[%s2 + $0xb38] sm:$0xff]
    %v2097 = vld [vmem:[%s2 + $0xb40] sm:$0xff]
    %v2098 = vld [vmem:[%s2 + $0xb48] sm:$0xff]
    %v2099 = vld [vmem:[%s2 + $0xb50] sm:$0xff]
    %v2100 = vld [vmem:[%s2 + $0xb58] sm:$0xff]
    %v2101 = vld [vmem:[%s2 + $0xb60] sm:$0xff]
    %v2102 = vld [vmem:[%s2 + $0xb68] sm:$0x1]
    %v2103 = vperm.slane %v2102, 0
    %2104 = vmatpush.msra.mxu0 %v2101
    %2105 = vmatpush.msra.mxu0 %v2100
    %2106 = vmatpush.msra.mxu0 %v2099
    %2107 = vmatpush.msra.mxu0 %v2098
    %2108 = vmatpush.msra.mxu0 %v2097
    %2109 = vmatpush.msra.mxu0 %v2096
    %2110 = vmatpush.msra.mxu0 %v2095
    %2111 = vmatpush.msra.mxu0 %v2094
    %2112 = vmatpush.msra.mxu0 %v2093
    %2113 = vmatpush.msra.mxu0 %v2092
    %2114 = vmatpush.msra.mxu0 %v2091
    %2115 = vmatpush.msra.mxu0 %v2090
    %2116 = vmatpush.msra.mxu0 %v2089
    %2117 = vmatpush.msra.mxu0 %v2088
    %2118 = vmatpush.msra.mxu0 %v2087
    %2119 = vmatpush.msra.mxu0 %v2086
    %2120 = vmatmul.f32.gmra.mxu0 %v2085
    %v2121 = vpop.f32.mrf.mxu0
    %v2122 = vadd.f32 %v2103, %v2121
    %2123 = vdwg.mxu0
    %v2124 = vsel %vm755, %v2122, -inf
    %2125 = vmax.xlane.f32.xlu0 %v2124
    %v2126 = vpop.xlane.xlu0 %2125
    %v2127 = vsub.f32 %v2122, %v2126
    %v2128 = vmul.f32 %v2127, 1.442695
    %v2129 = vpow.pop %v2128
    %v2131 = vsel %vm755, %v2129, 0
    %2133 = vmatpush.msra.mxu0 0.0
    %2134 = vmatpush.msra.mxu0 0.0
    %2135 = vmatpush.msra.mxu0 0.0
    %2136 = vmatpush.msra.mxu0 0.0
    %2137 = vmatpush.msra.mxu0 0.0
    %2138 = vmatpush.msra.mxu0 0.0
    %2139 = vmatpush.msra.mxu0 0.0
    %2140 = vmatpush.msra.mxu0 0.0
    %2141 = vmatpush.msra.mxu0 %v775
    %2142 = vmatpush.msra.mxu0 %v768
    %2143 = vmatpush.msra.mxu0 %v767
    %2144 = vmatpush.msra.mxu0 %v766
    %2145 = vmatpush.msra.mxu0 %v765
    %2146 = vmatpush.msra.mxu0 %v764
    %2147 = vmatpush.msra.mxu0 %v763
    %2148 = vmatpush.msra.mxu0 %v762
    %2149 = vmatmul.f32.gmra.mxu0 %v2131
    %v2150 = vpop.f32.mrf.mxu0
    %v2151 = vadd.f32 0.0, %v2150
    %2152 = vdwg.mxu0
    %v2153 = vrcp.pop %v2151
    %v2154 = vmul.f32 %v2129, %v2153
    %v2155 = vmul.f32 %v2017, %v2154
    %v2156 = vld [vmem:[%s1 + $0x450] sm:$0xff]
    %v2157 = vld [vmem:[%s1 + $0x458] sm:$0xff]
    %v2158 = vld [vmem:[%s1 + $0x460] sm:$0xff]
    %v2159 = vld [vmem:[%s1 + $0x468] sm:$0xff]
    %v2160 = vld [vmem:[%s1 + $0x470] sm:$0xff]
    %v2161 = vld [vmem:[%s1 + $0x478] sm:$0xff]
    %v2162 = vld [vmem:[%s1 + $0x480] sm:$0xff]
    %v2163 = vld [vmem:[%s1 + $0x488] sm:$0xf]
    %v2164 = vld [vmem:[%s1 + $0x48c] sm:$0x1]
    %v2165 = vperm.slane %v2164, 0
    %v2167 = vsel %vm755, %v2155, 0
    %v2170 = vsel %vm773, %v2163, 0
    %2172 = vmatpush.msra.mxu0 0.0
    %2173 = vmatpush.msra.mxu0 0.0
    %2174 = vmatpush.msra.mxu0 0.0
    %2175 = vmatpush.msra.mxu0 0.0
    %2176 = vmatpush.msra.mxu0 0.0
    %2177 = vmatpush.msra.mxu0 0.0
    %2178 = vmatpush.msra.mxu0 0.0
    %2179 = vmatpush.msra.mxu0 0.0
    %2180 = vmatpush.msra.mxu0 %v2170
    %2181 = vmatpush.msra.mxu0 %v2162
    %2182 = vmatpush.msra.mxu0 %v2161
    %2183 = vmatpush.msra.mxu0 %v2160
    %2184 = vmatpush.msra.mxu0 %v2159
    %2185 = vmatpush.msra.mxu0 %v2158
    %2186 = vmatpush.msra.mxu0 %v2157
    %2187 = vmatpush.msra.mxu0 %v2156
    %2188 = vmatmul.f32.gmra.mxu0 %v2167
    %v2189 = vpop.f32.mrf.mxu0
    %v2190 = vadd.f32 %v2165, %v2189
    %2191 = vdwg.mxu0
    %v2192 = vmax.f32 %v2190, 0.0
    %v2193 = vld [vmem:[%s1 + $0x490] sm:$0xff]
    %v2194 = vld [vmem:[%s1 + $0x498] sm:$0xff]
    %v2195 = vld [vmem:[%s1 + $0x4a0] sm:$0xff]
    %v2196 = vld [vmem:[%s1 + $0x4a8] sm:$0xff]
    %v2197 = vld [vmem:[%s1 + $0x4b0] sm:$0xff]
    %v2198 = vld [vmem:[%s1 + $0x4b8] sm:$0xff]
    %v2199 = vld [vmem:[%s1 + $0x4c0] sm:$0xff]
    %v2200 = vld [vmem:[%s1 + $0x4c8] sm:$0xff]
    %v2201 = vld [vmem:[%s1 + $0x4d0] sm:$0xff]
    %v2202 = vld [vmem:[%s1 + $0x4d8] sm:$0xff]
    %v2203 = vld [vmem:[%s1 + $0x4e0] sm:$0xff]
    %v2204 = vld [vmem:[%s1 + $0x4e8] sm:$0xff]
    %v2205 = vld [vmem:[%s1 + $0x4f0] sm:$0xff]
    %v2206 = vld [vmem:[%s1 + $0x4f8] sm:$0xff]
    %v2207 = vld [vmem:[%s1 + $0x500] sm:$0xff]
    %v2208 = vld [vmem:[%s1 + $0x508] sm:$0xff]
    %v2209 = vld [vmem:[%s1 + $0x510] sm:$0x1]
    %v2210 = vperm.slane %v2209, 0
    %2211 = vmatpush.msra.mxu0 %v2208
    %2212 = vmatpush.msra.mxu0 %v2207
    %2213 = vmatpush.msra.mxu0 %v2206
    %2214 = vmatpush.msra.mxu0 %v2205
    %2215 = vmatpush.msra.mxu0 %v2204
    %2216 = vmatpush.msra.mxu0 %v2203
    %2217 = vmatpush.msra.mxu0 %v2202
    %2218 = vmatpush.msra.mxu0 %v2201
    %2219 = vmatpush.msra.mxu0 %v2200
    %2220 = vmatpush.msra.mxu0 %v2199
    %2221 = vmatpush.msra.mxu0 %v2198
    %2222 = vmatpush.msra.mxu0 %v2197
    %2223 = vmatpush.msra.mxu0 %v2196
    %2224 = vmatpush.msra.mxu0 %v2195
    %2225 = vmatpush.msra.mxu0 %v2194
    %2226 = vmatpush.msra.mxu0 %v2193
    %2227 = vmatmul.f32.gmra.mxu0 %v2192
    %v2228 = vpop.f32.mrf.mxu0
    %v2229 = vadd.f32 %v2210, %v2228
    %2230 = vdwg.mxu0
    %v2231 = vmax.f32 %v2229, 0.0
    %v2232 = vld [vmem:[%s2 + $0xb70] sm:$0xff]
    %v2233 = vld [vmem:[%s2 + $0xb78] sm:$0xff]
    %v2234 = vld [vmem:[%s2 + $0xb80] sm:$0xff]
    %v2235 = vld [vmem:[%s2 + $0xb88] sm:$0xff]
    %v2236 = vld [vmem:[%s2 + $0xb90] sm:$0xff]
    %v2237 = vld [vmem:[%s2 + $0xb98] sm:$0xff]
    %v2238 = vld [vmem:[%s2 + $0xba0] sm:$0xff]
    %v2239 = vld [vmem:[%s2 + $0xba8] sm:$0xff]
    %v2240 = vld [vmem:[%s2 + $0xbb0] sm:$0xff]
    %v2241 = vld [vmem:[%s2 + $0xbb8] sm:$0xff]
    %v2242 = vld [vmem:[%s2 + $0xbc0] sm:$0xff]
    %v2243 = vld [vmem:[%s2 + $0xbc8] sm:$0xff]
    %v2244 = vld [vmem:[%s2 + $0xbd0] sm:$0xff]
    %v2245 = vld [vmem:[%s2 + $0xbd8] sm:$0xff]
    %v2246 = vld [vmem:[%s2 + $0xbe0] sm:$0xff]
    %v2247 = vld [vmem:[%s2 + $0xbe8] sm:$0xff]
    %v2248 = vld [vmem:[%s2 + $0xbf0] sm:$0x1]
    %v2249 = vperm.slane %v2248, 0
    %2250 = vmatpush.msra.mxu0 %v2247
    %2251 = vmatpush.msra.mxu0 %v2246
    %2252 = vmatpush.msra.mxu0 %v2245
    %2253 = vmatpush.msra.mxu0 %v2244
    %2254 = vmatpush.msra.mxu0 %v2243
    %2255 = vmatpush.msra.mxu0 %v2242
    %2256 = vmatpush.msra.mxu0 %v2241
    %2257 = vmatpush.msra.mxu0 %v2240
    %2258 = vmatpush.msra.mxu0 %v2239
    %2259 = vmatpush.msra.mxu0 %v2238
    %2260 = vmatpush.msra.mxu0 %v2237
    %2261 = vmatpush.msra.mxu0 %v2236
    %2262 = vmatpush.msra.mxu0 %v2235
    %2263 = vmatpush.msra.mxu0 %v2234
    %2264 = vmatpush.msra.mxu0 %v2233
    %2265 = vmatpush.msra.mxu0 %v2232
    %2266 = vmatmul.f32.gmra.mxu0 %v2231
    %v2267 = vpop.f32.mrf.mxu0
    %v2268 = vadd.f32 %v2249, %v2267
    %2269 = vdwg.mxu0
    %v2270 = vadd.f32 %v2155, %v2268
    %v2271 = vld [vmem:[%s1 + $0x518] sm:$0xff]
    %v2272 = vld [vmem:[%s1 + $0x520] sm:$0xff]
    %v2273 = vld [vmem:[%s1 + $0x528] sm:$0xff]
    %v2274 = vld [vmem:[%s1 + $0x530] sm:$0xff]
    %v2275 = vld [vmem:[%s1 + $0x538] sm:$0xff]
    %v2276 = vld [vmem:[%s1 + $0x540] sm:$0xff]
    %v2277 = vld [vmem:[%s1 + $0x548] sm:$0xff]
    %v2278 = vld [vmem:[%s1 + $0x550] sm:$0xf]
    %v2279 = vld [vmem:[%s1 + $0x554] sm:$0x1]
    %v2280 = vperm.slane %v2279, 0
    %v2282 = vsel %vm755, %v2270, 0
    %v2285 = vsel %vm773, %v2278, 0
    %2287 = vmatpush.msra.mxu0 0.0
    %2288 = vmatpush.msra.mxu0 0.0
    %2289 = vmatpush.msra.mxu0 0.0
    %2290 = vmatpush.msra.mxu0 0.0
    %2291 = vmatpush.msra.mxu0 0.0
    %2292 = vmatpush.msra.mxu0 0.0
    %2293 = vmatpush.msra.mxu0 0.0
    %2294 = vmatpush.msra.mxu0 0.0
    %2295 = vmatpush.msra.mxu0 %v2285
    %2296 = vmatpush.msra.mxu0 %v2277
    %2297 = vmatpush.msra.mxu0 %v2276
    %2298 = vmatpush.msra.mxu0 %v2275
    %2299 = vmatpush.msra.mxu0 %v2274
    %2300 = vmatpush.msra.mxu0 %v2273
    %2301 = vmatpush.msra.mxu0 %v2272
    %2302 = vmatpush.msra.mxu0 %v2271
    %2303 = vmatmul.f32.gmra.mxu0 %v2282
    %v2304 = vpop.f32.mrf.mxu0
    %v2305 = vadd.f32 %v2280, %v2304
    %2306 = vdwg.mxu0
    %v2307 = vmax.f32 %v2305, 0.0
    %v2308 = vld [vmem:[%s1 + $0x558] sm:$0xff]
    %v2309 = vld [vmem:[%s1 + $0x560] sm:$0xff]
    %v2310 = vld [vmem:[%s1 + $0x568] sm:$0xff]
    %v2311 = vld [vmem:[%s1 + $0x570] sm:$0xff]
    %v2312 = vld [vmem:[%s1 + $0x578] sm:$0xff]
    %v2313 = vld [vmem:[%s1 + $0x580] sm:$0xff]
    %v2314 = vld [vmem:[%s1 + $0x588] sm:$0xff]
    %v2315 = vld [vmem:[%s1 + $0x590] sm:$0xff]
    %v2316 = vld [vmem:[%s1 + $0x598] sm:$0xff]
    %v2317 = vld [vmem:[%s1 + $0x5a0] sm:$0xff]
    %v2318 = vld [vmem:[%s1 + $0x5a8] sm:$0xff]
    %v2319 = vld [vmem:[%s1 + $0x5b0] sm:$0xff]
    %v2320 = vld [vmem:[%s1 + $0x5b8] sm:$0xff]
    %v2321 = vld [vmem:[%s1 + $0x5c0] sm:$0xff]
    %v2322 = vld [vmem:[%s1 + $0x5c8] sm:$0xff]
    %v2323 = vld [vmem:[%s1 + $0x5d0] sm:$0xff]
    %v2324 = vld [vmem:[%s1 + $0x5d8] sm:$0x1]
    %v2325 = vperm.slane %v2324, 0
    %2326 = vmatpush.msra.mxu0 %v2323
    %2327 = vmatpush.msra.mxu0 %v2322
    %2328 = vmatpush.msra.mxu0 %v2321
    %2329 = vmatpush.msra.mxu0 %v2320
    %2330 = vmatpush.msra.mxu0 %v2319
    %2331 = vmatpush.msra.mxu0 %v2318
    %2332 = vmatpush.msra.mxu0 %v2317
    %2333 = vmatpush.msra.mxu0 %v2316
    %2334 = vmatpush.msra.mxu0 %v2315
    %2335 = vmatpush.msra.mxu0 %v2314
    %2336 = vmatpush.msra.mxu0 %v2313
    %2337 = vmatpush.msra.mxu0 %v2312
    %2338 = vmatpush.msra.mxu0 %v2311
    %2339 = vmatpush.msra.mxu0 %v2310
    %2340 = vmatpush.msra.mxu0 %v2309
    %2341 = vmatpush.msra.mxu0 %v2308
    %2342 = vmatmul.f32.gmra.mxu0 %v2307
    %v2343 = vpop.f32.mrf.mxu0
    %v2344 = vadd.f32 %v2325, %v2343
    %2345 = vdwg.mxu0
    %v2346 = vmax.f32 %v2344, 0.0
    %v2347 = vld [vmem:[%s2 + $0xbf8] sm:$0xff]
    %v2348 = vld [vmem:[%s2 + $0xc00] sm:$0xff]
    %v2349 = vld [vmem:[%s2 + $0xc08] sm:$0xff]
    %v2350 = vld [vmem:[%s2 + $0xc10] sm:$0xff]
    %v2351 = vld [vmem:[%s2 + $0xc18] sm:$0xff]
    %v2352 = vld [vmem:[%s2 + $0xc20] sm:$0xff]
    %v2353 = vld [vmem:[%s2 + $0xc28] sm:$0xff]
    %v2354 = vld [vmem:[%s2 + $0xc30] sm:$0xff]
    %v2355 = vld [vmem:[%s2 + $0xc38] sm:$0xff]
    %v2356 = vld [vmem:[%s2 + $0xc40] sm:$0xff]
    %v2357 = vld [vmem:[%s2 + $0xc48] sm:$0xff]
    %v2358 = vld [vmem:[%s2 + $0xc50] sm:$0xff]
    %v2359 = vld [vmem:[%s2 + $0xc58] sm:$0xff]
    %v2360 = vld [vmem:[%s2 + $0xc60] sm:$0xff]
    %v2361 = vld [vmem:[%s2 + $0xc68] sm:$0xff]
    %v2362 = vld [vmem:[%s2 + $0xc70] sm:$0xff]
    %v2363 = vld [vmem:[%s2 + $0xc78] sm:$0x1]
    %v2364 = vperm.slane %v2363, 0
    %2365 = vmatpush.msra.mxu0 %v2362
    %2366 = vmatpush.msra.mxu0 %v2361
    %2367 = vmatpush.msra.mxu0 %v2360
    %2368 = vmatpush.msra.mxu0 %v2359
    %2369 = vmatpush.msra.mxu0 %v2358
    %2370 = vmatpush.msra.mxu0 %v2357
    %2371 = vmatpush.msra.mxu0 %v2356
    %2372 = vmatpush.msra.mxu0 %v2355
    %2373 = vmatpush.msra.mxu0 %v2354
    %2374 = vmatpush.msra.mxu0 %v2353
    %2375 = vmatpush.msra.mxu0 %v2352
    %2376 = vmatpush.msra.mxu0 %v2351
    %2377 = vmatpush.msra.mxu0 %v2350
    %2378 = vmatpush.msra.mxu0 %v2349
    %2379 = vmatpush.msra.mxu0 %v2348
    %2380 = vmatpush.msra.mxu0 %v2347
    %2381 = vmatmul.f32.gmra.mxu0 %v2346
    %v2382 = vpop.f32.mrf.mxu0
    %v2383 = vadd.f32 %v2364, %v2382
    %2384 = vdwg.mxu0
    %v2385 = vadd.f32 %v2270, %v2383
    %v2386 = vld [vmem:[%s1 + $0x5e0] sm:$0xff]
    %v2387 = vld [vmem:[%s1 + $0x5e8] sm:$0xff]
    %v2388 = vld [vmem:[%s1 + $0x5f0] sm:$0xff]
    %v2389 = vld [vmem:[%s1 + $0x5f8] sm:$0xff]
    %v2390 = vld [vmem:[%s1 + $0x600] sm:$0xff]
    %v2391 = vld [vmem:[%s1 + $0x608] sm:$0xff]
    %v2392 = vld [vmem:[%s1 + $0x610] sm:$0xff]
    %v2393 = vld [vmem:[%s1 + $0x618] sm:$0xf]
    %v2394 = vld [vmem:[%s1 + $0x61c] sm:$0x1]
    %v2395 = vperm.slane %v2394, 0
    %v2397 = vsel %vm755, %v2385, 0
    %v2400 = vsel %vm773, %v2393, 0
    %2402 = vmatpush.msra.mxu0 0.0
    %2403 = vmatpush.msra.mxu0 0.0
    %2404 = vmatpush.msra.mxu0 0.0
    %2405 = vmatpush.msra.mxu0 0.0
    %2406 = vmatpush.msra.mxu0 0.0
    %2407 = vmatpush.msra.mxu0 0.0
    %2408 = vmatpush.msra.mxu0 0.0
    %2409 = vmatpush.msra.mxu0 0.0
    %2410 = vmatpush.msra.mxu0 %v2400
    %2411 = vmatpush.msra.mxu0 %v2392
    %2412 = vmatpush.msra.mxu0 %v2391
    %2413 = vmatpush.msra.mxu0 %v2390
    %2414 = vmatpush.msra.mxu0 %v2389
    %2415 = vmatpush.msra.mxu0 %v2388
    %2416 = vmatpush.msra.mxu0 %v2387
    %2417 = vmatpush.msra.mxu0 %v2386
    %2418 = vmatmul.f32.gmra.mxu0 %v2397
    %v2419 = vpop.f32.mrf.mxu0
    %v2420 = vadd.f32 %v2395, %v2419
    %2421 = vdwg.mxu0
    %v2422 = vmax.f32 %v2420, 0.0
    %v2423 = vld [vmem:[%s1 + $0x620] sm:$0xff]
    %v2424 = vld [vmem:[%s1 + $0x628] sm:$0xff]
    %v2425 = vld [vmem:[%s1 + $0x630] sm:$0xff]
    %v2426 = vld [vmem:[%s1 + $0x638] sm:$0xff]
    %v2427 = vld [vmem:[%s1 + $0x640] sm:$0xff]
    %v2428 = vld [vmem:[%s1 + $0x648] sm:$0xff]
    %v2429 = vld [vmem:[%s1 + $0x650] sm:$0xff]
    %v2430 = vld [vmem:[%s1 + $0x658] sm:$0xff]
    %v2431 = vld [vmem:[%s1 + $0x660] sm:$0xff]
    %v2432 = vld [vmem:[%s1 + $0x668] sm:$0xff]
    %v2433 = vld [vmem:[%s1 + $0x670] sm:$0xff]
    %v2434 = vld [vmem:[%s1 + $0x678] sm:$0xff]
    %v2435 = vld [vmem:[%s1 + $0x680] sm:$0xff]
    %v2436 = vld [vmem:[%s1 + $0x688] sm:$0xff]
    %v2437 = vld [vmem:[%s1 + $0x690] sm:$0xff]
    %v2438 = vld [vmem:[%s1 + $0x698] sm:$0xff]
    %v2439 = vld [vmem:[%s1 + $0x6a0] sm:$0x1]
    %v2440 = vperm.slane %v2439, 0
    %2441 = vmatpush.msra.mxu0 %v2438
    %2442 = vmatpush.msra.mxu0 %v2437
    %2443 = vmatpush.msra.mxu0 %v2436
    %2444 = vmatpush.msra.mxu0 %v2435
    %2445 = vmatpush.msra.mxu0 %v2434
    %2446 = vmatpush.msra.mxu0 %v2433
    %2447 = vmatpush.msra.mxu0 %v2432
    %2448 = vmatpush.msra.mxu0 %v2431
    %2449 = vmatpush.msra.mxu0 %v2430
    %2450 = vmatpush.msra.mxu0 %v2429
    %2451 = vmatpush.msra.mxu0 %v2428
    %2452 = vmatpush.msra.mxu0 %v2427
    %2453 = vmatpush.msra.mxu0 %v2426
    %2454 = vmatpush.msra.mxu0 %v2425
    %2455 = vmatpush.msra.mxu0 %v2424
    %2456 = vmatpush.msra.mxu0 %v2423
    %2457 = vmatmul.f32.gmra.mxu0 %v2422
    %v2458 = vpop.f32.mrf.mxu0
    %v2459 = vadd.f32 %v2440, %v2458
    %2460 = vdwg.mxu0
    %v2461 = vmax.f32 %v2459, 0.0
    %v2462 = vld [vmem:[%s2 + $0xc80] sm:$0xff]
    %v2463 = vld [vmem:[%s2 + $0xc88] sm:$0xff]
    %v2464 = vld [vmem:[%s2 + $0xc90] sm:$0xff]
    %v2465 = vld [vmem:[%s2 + $0xc98] sm:$0xff]
    %v2466 = vld [vmem:[%s2 + $0xca0] sm:$0xff]
    %v2467 = vld [vmem:[%s2 + $0xca8] sm:$0xff]
    %v2468 = vld [vmem:[%s2 + $0xcb0] sm:$0xff]
    %v2469 = vld [vmem:[%s2 + $0xcb8] sm:$0xff]
    %v2470 = vld [vmem:[%s2 + $0xcc0] sm:$0xff]
    %v2471 = vld [vmem:[%s2 + $0xcc8] sm:$0xff]
    %v2472 = vld [vmem:[%s2 + $0xcd0] sm:$0xff]
    %v2473 = vld [vmem:[%s2 + $0xcd8] sm:$0xff]
    %v2474 = vld [vmem:[%s2 + $0xce0] sm:$0xff]
    %v2475 = vld [vmem:[%s2 + $0xce8] sm:$0xff]
    %v2476 = vld [vmem:[%s2 + $0xcf0] sm:$0xff]
    %v2477 = vld [vmem:[%s2 + $0xcf8] sm:$0xff]
    %v2478 = vld [vmem:[%s2 + $0xd00] sm:$0x1]
    %v2479 = vperm.slane %v2478, 0
    %2480 = vmatpush.msra.mxu0 %v2477
    %2481 = vmatpush.msra.mxu0 %v2476
    %2482 = vmatpush.msra.mxu0 %v2475
    %2483 = vmatpush.msra.mxu0 %v2474
    %2484 = vmatpush.msra.mxu0 %v2473
    %2485 = vmatpush.msra.mxu0 %v2472
    %2486 = vmatpush.msra.mxu0 %v2471
    %2487 = vmatpush.msra.mxu0 %v2470
    %2488 = vmatpush.msra.mxu0 %v2469
    %2489 = vmatpush.msra.mxu0 %v2468
    %2490 = vmatpush.msra.mxu0 %v2467
    %2491 = vmatpush.msra.mxu0 %v2466
    %2492 = vmatpush.msra.mxu0 %v2465
    %2493 = vmatpush.msra.mxu0 %v2464
    %2494 = vmatpush.msra.mxu0 %v2463
    %2495 = vmatpush.msra.mxu0 %v2462
    %2496 = vmatmul.f32.gmra.mxu0 %v2461
    %v2497 = vpop.f32.mrf.mxu0
    %v2498 = vadd.f32 %v2479, %v2497
    %2499 = vdwg.mxu0
    %v2500 = vadd.f32 %v2385, %v2498
    %v2501 = vld [vmem:[%s1 + $0x6a8] sm:$0xff]
    %v2502 = vld [vmem:[%s1 + $0x6b0] sm:$0xff]
    %v2503 = vld [vmem:[%s1 + $0x6b8] sm:$0xff]
    %v2504 = vld [vmem:[%s1 + $0x6c0] sm:$0xff]
    %v2505 = vld [vmem:[%s1 + $0x6c8] sm:$0xff]
    %v2506 = vld [vmem:[%s1 + $0x6d0] sm:$0xff]
    %v2507 = vld [vmem:[%s1 + $0x6d8] sm:$0xff]
    %v2508 = vld [vmem:[%s1 + $0x6e0] sm:$0xf]
    %v2509 = vld [vmem:[%s1 + $0x6e4] sm:$0x1]
    %v2510 = vperm.slane %v2509, 0
    %v2512 = vsel %vm755, %v2500, 0
    %v2515 = vsel %vm773, %v2508, 0
    %2517 = vmatpush.msra.mxu0 0.0
    %2518 = vmatpush.msra.mxu0 0.0
    %2519 = vmatpush.msra.mxu0 0.0
    %2520 = vmatpush.msra.mxu0 0.0
    %2521 = vmatpush.msra.mxu0 0.0
    %2522 = vmatpush.msra.mxu0 0.0
    %2523 = vmatpush.msra.mxu0 0.0
    %2524 = vmatpush.msra.mxu0 0.0
    %2525 = vmatpush.msra.mxu0 %v2515
    %2526 = vmatpush.msra.mxu0 %v2507
    %2527 = vmatpush.msra.mxu0 %v2506
    %2528 = vmatpush.msra.mxu0 %v2505
    %2529 = vmatpush.msra.mxu0 %v2504
    %2530 = vmatpush.msra.mxu0 %v2503
    %2531 = vmatpush.msra.mxu0 %v2502
    %2532 = vmatpush.msra.mxu0 %v2501
    %2533 = vmatmul.f32.gmra.mxu0 %v2512
    %v2534 = vpop.f32.mrf.mxu0
    %v2535 = vadd.f32 %v2510, %v2534
    %2536 = vdwg.mxu0
    %v2537 = vmax.f32 %v2535, 0.0
    %v2538 = vld [vmem:[%s1 + $0x6e8] sm:$0xff]
    %v2539 = vld [vmem:[%s1 + $0x6f0] sm:$0xff]
    %v2540 = vld [vmem:[%s1 + $0x6f8] sm:$0xff]
    %v2541 = vld [vmem:[%s1 + $0x700] sm:$0xff]
    %v2542 = vld [vmem:[%s1 + $0x708] sm:$0xff]
    %v2543 = vld [vmem:[%s1 + $0x710] sm:$0xff]
    %v2544 = vld [vmem:[%s1 + $0x718] sm:$0xff]
    %v2545 = vld [vmem:[%s1 + $0x720] sm:$0xff]
    %v2546 = vld [vmem:[%s1 + $0x728] sm:$0xff]
    %v2547 = vld [vmem:[%s1 + $0x730] sm:$0xff]
    %v2548 = vld [vmem:[%s1 + $0x738] sm:$0xff]
    %v2549 = vld [vmem:[%s1 + $0x740] sm:$0xff]
    %v2550 = vld [vmem:[%s1 + $0x748] sm:$0xff]
    %v2551 = vld [vmem:[%s1 + $0x750] sm:$0xff]
    %v2552 = vld [vmem:[%s1 + $0x758] sm:$0xff]
    %v2553 = vld [vmem:[%s1 + $0x760] sm:$0xff]
    %v2554 = vld [vmem:[%s1 + $0x768] sm:$0x1]
    %v2555 = vperm.slane %v2554, 0
    %2556 = vmatpush.msra.mxu0 %v2553
    %2557 = vmatpush.msra.mxu0 %v2552
    %2558 = vmatpush.msra.mxu0 %v2551
    %2559 = vmatpush.msra.mxu0 %v2550
    %2560 = vmatpush.msra.mxu0 %v2549
    %2561 = vmatpush.msra.mxu0 %v2548
    %2562 = vmatpush.msra.mxu0 %v2547
    %2563 = vmatpush.msra.mxu0 %v2546
    %2564 = vmatpush.msra.mxu0 %v2545
    %2565 = vmatpush.msra.mxu0 %v2544
    %2566 = vmatpush.msra.mxu0 %v2543
    %2567 = vmatpush.msra.mxu0 %v2542
    %2568 = vmatpush.msra.mxu0 %v2541
    %2569 = vmatpush.msra.mxu0 %v2540
    %2570 = vmatpush.msra.mxu0 %v2539
    %2571 = vmatpush.msra.mxu0 %v2538
    %2572 = vmatmul.f32.gmra.mxu0 %v2537
    %v2573 = vpop.f32.mrf.mxu0
    %v2574 = vadd.f32 %v2555, %v2573
    %2575 = vdwg.mxu0
    %v2576 = vmax.f32 %v2574, 0.0
    %v2577 = vld [vmem:[%s2 + $0xd08] sm:$0xff]
    %v2578 = vld [vmem:[%s2 + $0xd10] sm:$0xff]
    %v2579 = vld [vmem:[%s2 + $0xd18] sm:$0xff]
    %v2580 = vld [vmem:[%s2 + $0xd20] sm:$0xff]
    %v2581 = vld [vmem:[%s2 + $0xd28] sm:$0xff]
    %v2582 = vld [vmem:[%s2 + $0xd30] sm:$0xff]
    %v2583 = vld [vmem:[%s2 + $0xd38] sm:$0xff]
    %v2584 = vld [vmem:[%s2 + $0xd40] sm:$0xff]
    %v2585 = vld [vmem:[%s2 + $0xd48] sm:$0xff]
    %v2586 = vld [vmem:[%s2 + $0xd50] sm:$0xff]
    %v2587 = vld [vmem:[%s2 + $0xd58] sm:$0xff]
    %v2588 = vld [vmem:[%s2 + $0xd60] sm:$0xff]
    %v2589 = vld [vmem:[%s2 + $0xd68] sm:$0xff]
    %v2590 = vld [vmem:[%s2 + $0xd70] sm:$0xff]
    %v2591 = vld [vmem:[%s2 + $0xd78] sm:$0xff]
    %v2592 = vld [vmem:[%s2 + $0xd80] sm:$0xff]
    %v2593 = vld [vmem:[%s2 + $0xd88] sm:$0x1]
    %v2594 = vperm.slane %v2593, 0
    %2595 = vmatpush.msra.mxu0 %v2592
    %2596 = vmatpush.msra.mxu0 %v2591
    %2597 = vmatpush.msra.mxu0 %v2590
    %2598 = vmatpush.msra.mxu0 %v2589
    %2599 = vmatpush.msra.mxu0 %v2588
    %2600 = vmatpush.msra.mxu0 %v2587
    %2601 = vmatpush.msra.mxu0 %v2586
    %2602 = vmatpush.msra.mxu0 %v2585
    %2603 = vmatpush.msra.mxu0 %v2584
    %2604 = vmatpush.msra.mxu0 %v2583
    %2605 = vmatpush.msra.mxu0 %v2582
    %2606 = vmatpush.msra.mxu0 %v2581
    %2607 = vmatpush.msra.mxu0 %v2580
    %2608 = vmatpush.msra.mxu0 %v2579
    %2609 = vmatpush.msra.mxu0 %v2578
    %2610 = vmatpush.msra.mxu0 %v2577
    %2611 = vmatmul.f32.gmra.mxu0 %v2576
    %v2612 = vpop.f32.mrf.mxu0
    %v2613 = vadd.f32 %v2594, %v2612
    %2614 = vdwg.mxu0
    %v2615 = vadd.f32 %v2500, %v2613
    %v2617 = vsel %vm755, %v2615, 0
    %2619 = vmatpush.msra.mxu0 0.0
    %2620 = vmatpush.msra.mxu0 0.0
    %2621 = vmatpush.msra.mxu0 0.0
    %2622 = vmatpush.msra.mxu0 0.0
    %2623 = vmatpush.msra.mxu0 0.0
    %2624 = vmatpush.msra.mxu0 0.0
    %2625 = vmatpush.msra.mxu0 0.0
    %2626 = vmatpush.msra.mxu0 0.0
    %2627 = vmatpush.msra.mxu0 %v1280
    %2628 = vmatpush.msra.mxu0 %v1274
    %2629 = vmatpush.msra.mxu0 %v1273
    %2630 = vmatpush.msra.mxu0 %v1272
    %2631 = vmatpush.msra.mxu0 %v1271
    %2632 = vmatpush.msra.mxu0 %v1270
    %2633 = vmatpush.msra.mxu0 %v1269
    %2634 = vmatpush.msra.mxu0 %v1268
    %2635 = vmatmul.f32.gmra.mxu0 %v2617
    %v2636 = vpop.f32.mrf.mxu0
    %v2637 = vadd.f32 0.0, %v2636
    %2638 = vdwg.mxu0
    %2639 = vmatpush.msra.mxu0 0.0
    %2640 = vmatpush.msra.mxu0 0.0
    %2641 = vmatpush.msra.mxu0 0.0
    %2642 = vmatpush.msra.mxu0 0.0
    %2643 = vmatpush.msra.mxu0 0.0
    %2644 = vmatpush.msra.mxu0 0.0
    %2645 = vmatpush.msra.mxu0 0.0
    %2646 = vmatpush.msra.mxu0 0.0
    %2647 = vmatpush.msra.mxu0 %v1303
    %2648 = vmatpush.msra.mxu0 %v1266
    %2649 = vmatpush.msra.mxu0 %v1265
    %2650 = vmatpush.msra.mxu0 %v1264
    %2651 = vmatpush.msra.mxu0 %v1263
    %2652 = vmatpush.msra.mxu0 %v1262
    %2653 = vmatpush.msra.mxu0 %v1261
    %2654 = vmatpush.msra.mxu0 %v1260
    %2655 = vmatmul.f32.gmra.mxu0 %v2167
    %v2656 = vpop.f32.mrf.mxu0
    %v2657 = vadd.f32 %v2637, %v2656
    %2658 = vdwg.mxu0
    %v2659 = vadd.f32 %v1418, %v1994
    %v2660 = vadd.f32 %v2659, %v2657
    %v2661 = vld [vmem:[%s2 + $0xd90] sm:$0xff]
    %v2662 = vld [vmem:[%s2 + $0xd98] sm:$0x7f]
    %v2663 = vld [vmem:[%s2 + $0xd9f] sm:$0x1]
    %v2664 = vperm.slane %v2663, 0
    %v2666 = vsel %vm23, %v2660, 0
    %v2669 = vsel %vm27, %v2662, 0
    %2671 = vmatpush.msra.mxu0 0.0
    %2672 = vmatpush.msra.mxu0 0.0
    %2673 = vmatpush.msra.mxu0 0.0
    %2674 = vmatpush.msra.mxu0 0.0
    %2675 = vmatpush.msra.mxu0 0.0
    %2676 = vmatpush.msra.mxu0 0.0
    %2677 = vmatpush.msra.mxu0 0.0
    %2678 = vmatpush.msra.mxu0 0.0
    %2679 = vmatpush.msra.mxu0 0.0
    %2680 = vmatpush.msra.mxu0 0.0
    %2681 = vmatpush.msra.mxu0 0.0
    %2682 = vmatpush.msra.mxu0 0.0
    %2683 = vmatpush.msra.mxu0 0.0
    %2684 = vmatpush.msra.mxu0 0.0
    %2685 = vmatpush.msra.mxu0 %v2669
    %2686 = vmatpush.msra.mxu0 %v2661
    %2687 = vmatmul.f32.gmra.mxu0 %v2666
    %v2688 = vpop.f32.mrf.mxu0
    %v2689 = vadd.f32 %v2664, %v2688
    %2690 = vdwg.mxu0
    %v2691 = vmax.f32 %v2689, 0.0
    %v2692 = vld [vmem:[%s2 + $0xda0] sm:$0xff]
    %v2693 = vld [vmem:[%s2 + $0xda8] sm:$0xff]
    %v2694 = vld [vmem:[%s2 + $0xdb0] sm:$0xff]
    %v2695 = vld [vmem:[%s2 + $0xdb8] sm:$0xff]
    %v2696 = vld [vmem:[%s2 + $0xdc0] sm:$0x1]
    %v2697 = vperm.slane %v2696, 0
    %v2699 = vsel %vm1364, %v2691, 0
    %2701 = vmatpush.msra.mxu0 0.0
    %2702 = vmatpush.msra.mxu0 0.0
    %2703 = vmatpush.msra.mxu0 0.0
    %2704 = vmatpush.msra.mxu0 0.0
    %2705 = vmatpush.msra.mxu0 0.0
    %2706 = vmatpush.msra.mxu0 0.0
    %2707 = vmatpush.msra.mxu0 0.0
    %2708 = vmatpush.msra.mxu0 0.0
    %2709 = vmatpush.msra.mxu0 0.0
    %2710 = vmatpush.msra.mxu0 0.0
    %2711 = vmatpush.msra.mxu0 0.0
    %2712 = vmatpush.msra.mxu0 0.0
    %2713 = vmatpush.msra.mxu0 %v2695
    %2714 = vmatpush.msra.mxu0 %v2694
    %2715 = vmatpush.msra.mxu0 %v2693
    %2716 = vmatpush.msra.mxu0 %v2692
    %2717 = vmatmul.f32.gmra.mxu0 %v2699
    %v2718 = vpop.f32.mrf.mxu0
    %v2719 = vadd.f32 %v2697, %v2718
    %2720 = vdwg.mxu0
    %v2721 = vmax.f32 %v2719, 0.0
    %v2722 = vld [vmem:[%s2 + $0xdc8] sm:$0xff]
    %v2723 = vld [vmem:[%s2 + $0xdd0] sm:$0xff]
    %v2724 = vld [vmem:[%s2 + $0xdd8] sm:$0xff]
    %v2725 = vld [vmem:[%s2 + $0xde0] sm:$0xff]
    %v2726 = vld [vmem:[%s2 + $0xde8] sm:$0x1]
    %v2727 = vperm.slane %v2726, 0
    %v2729 = vsel %vm1364, %v2721, 0
    %2731 = vmatpush.msra.mxu0 0.0
    %2732 = vmatpush.msra.mxu0 0.0
    %2733 = vmatpush.msra.mxu0 0.0
    %2734 = vmatpush.msra.mxu0 0.0
    %2735 = vmatpush.msra.mxu0 0.0
    %2736 = vmatpush.msra.mxu0 0.0
    %2737 = vmatpush.msra.mxu0 0.0
    %2738 = vmatpush.msra.mxu0 0.0
    %2739 = vmatpush.msra.mxu0 0.0
    %2740 = vmatpush.msra.mxu0 0.0
    %2741 = vmatpush.msra.mxu0 0.0
    %2742 = vmatpush.msra.mxu0 0.0
    %2743 = vmatpush.msra.mxu0 %v2725
    %2744 = vmatpush.msra.mxu0 %v2724
    %2745 = vmatpush.msra.mxu0 %v2723
    %2746 = vmatpush.msra.mxu0 %v2722
    %2747 = vmatmul.f32.gmra.mxu0 %v2729
    %v2748 = vpop.f32.mrf.mxu0
    %v2749 = vadd.f32 %v2727, %v2748
    %2750 = vdwg.mxu0
    %v2751 = vadd.f32 %v2660, %v2749
    %2752 = vst.msk [vmem:[#allocation2] sm:$0xff] %vm19, %v2751
    %2754 = vrot.lane.b32.xlu0 %v2751, 118
    %v2755 = vpop.permute.xlu0 %2754
    %vm2757 = vcmask 39936
    %2758 = vst.msk [vmem:[#allocation4] sm:$0xff] %vm2757, %v2755
    // Predicated region
    $region14: #{_lambda_.1} parent=1 // pred_check
      _
    $region15: #{_lambda_.1} parent=1 // pred_check_branch
      %2760 = sbr.rel (0) target = $region17
    $region16: #{_lambda_.1} parent=1 // pred_region
      %2762 = vsyncadd [#allocation3], 0
      %s2764 = sshll.u32 [#allocation2], 4
      %s2765 = int_to_ptr.vmem [resolvable:$true] %s2764
      %s2766 = sshll.u32 %s3, 4
      %s2767 = int_to_ptr.hbm [resolvable:$true] %s2766
      %2769 = dma.vmem_to_hbm [thread:$0]  %s2765, 128, %s2767, [#allocation3]
    $region17: #{_lambda_.1} parent=1 // pred_fallthru
      _
    // Predicated region
    $region18: #{_lambda_.1} parent=1 // pred_check
      _
    $region19: #{_lambda_.1} parent=1 // pred_check_branch
      %2771 = sbr.rel (0) target = $region21
    $region20: #{_lambda_.1} parent=1 // pred_region
      %2773 = vsyncadd [#allocation5], 0
      %s2775 = sshll.u32 [#allocation4], 4
      %s2776 = int_to_ptr.vmem [resolvable:$true] %s2775
      %s2777 = sshll.u32 %s4, 4
      %s2778 = int_to_ptr.hbm [resolvable:$true] %s2777
      %2780 = dma.vmem_to_hbm [thread:$0]  %s2776, 128, %s2778, [#allocation5]
    $region21: #{_lambda_.1} parent=1 // pred_fallthru
      _
    // Predicated region
    $region22: #{_lambda_.1} parent=1 // pred_check
      _
    $region23: #{_lambda_.1} parent=1 // pred_check_branch
      %2782 = sbr.rel (0) target = $region25
    $region24: #{_lambda_.1} parent=1 // pred_region
      %2784 = dma.done [#allocation3], 128
    $region25: #{_lambda_.1} parent=1 // pred_fallthru
      _
    // Predicated region
    $region26: #{_lambda_.1} parent=1 // pred_check
      _
    $region27: #{_lambda_.1} parent=1 // pred_check_branch
      %2786 = sbr.rel (0) target = $region29
    $region28: #{_lambda_.1} parent=1 // pred_region
      %2788 = dma.done [#allocation5], 128
    $region29: #{_lambda_.1} parent=1 // pred_fallthru
      _
    %2789 = vsyncpa [#allocation3], 1
    %2790 = vsyncpa [#allocation5], 1

</llo_original>
